<compile_context>
chip_gen: v5e
topology: v5e:2x2
jax: 0.10.0
libtpu: 0.0.40
codegen_flags: <defaults>
</compile_context>

<pallas_src>
import numpy as np
import jax
import jax.numpy as jnp
from jax.experimental import pallas as pl
from jax.experimental.pallas import tpu as pltpu


# ----------------------------- model / layout config -----------------------------

N_BATCH = 2
C_IN = 3
IMG = 28                      # 28x28 input so two 2x pools give 7x7 (matches fc 32*7*7)
POOL = 2
CONV1_C, CONV2_C = 16, 32
KSIZE = 3
FC_HIDDEN = 128
OUT_SIZE = 9

GRID = IMG + 2                # 30: conv grid including the 1-pixel zero border
S = GRID * GRID * N_BATCH     # 1800 flat lane positions: lane = (row*30 + col)*N + n
S_PAD = 1920                  # lane width, multiple of 128
MARGIN = 128                  # zero margin so shifted windows never go out of range
IN_OFF = 64                   # conv1 tap shifts are within +/-62 lanes
IN_LANES = 2048               # IN_OFF + S + right pad (>= IN_OFF + 62 + S_PAD)
P2 = IMG // (POOL * POOL)     # 7
K1 = C_IN * KSIZE * KSIZE     # 27
K1_PAD = 32                   # pad contraction dim (zero cols / zero rows)
K2 = CONV1_C * KSIZE * KSIZE  # 144
FC_IN = CONV2_C * P2 * P2     # 1568


def _tap_offsets(dil):
    """Lane offset of conv tap (kh,kw) relative to the output lane (dilation dil)."""
    return [((kh - 1) * dil * GRID + (kw - 1) * dil) * N_BATCH
            for kh in range(KSIZE) for kw in range(KSIZE)]


def _pool_offsets(dil):
    """Lane offsets of the 2x2 pool window relative to its origin (dilation dil)."""
    return [(di * dil * GRID + dj * dil) * N_BATCH
            for di in range(POOL) for dj in range(POOL)]


# lane positions of the 49 pooled (7x7) outputs of layer 2 on the flat 30x30 grid
_FC_POS = [((POOL * POOL * h3 + 1) * GRID + (POOL * POOL * w3 + 1)) * N_BATCH
           for h3 in range(P2) for w3 in range(P2)]


# --------------------------------- fused kernel ----------------------------------

def _cnn_fused_kernel(xp_ref, mask_ref, w1_ref, b1_ref, w2_ref, b2_ref,
                      w0_ref, b0_ref, wo_ref, bo_ref, out_ref):
    f32 = jnp.float32
    bf16 = jnp.bfloat16

    # ---- conv1 (3x3, pad 1): in-kernel im2col via shifted windows + one MXU dot ----
    col1 = jnp.concatenate(
        [xp_ref[:, IN_OFF + d: IN_OFF + d + S_PAD] for d in _tap_offsets(1)]
        + [jnp.zeros((K1_PAD - K1, S_PAD), bf16)], axis=0)              # (32, 1920)
    conv1 = jnp.dot(w1_ref[...], col1, preferred_element_type=f32)      # (16, 1920)

    # ---- 2x2/2 maxpool as 3 VPU maxes of shifted windows, then bias + ReLU ----
    conv1p = jnp.concatenate([conv1, jnp.zeros((CONV1_C, 64), f32)], axis=1)
    win1 = conv1p[:, 0:S_PAD]
    for e in _pool_offsets(1)[1:]:
        win1 = jnp.maximum(win1, conv1p[:, e:e + S_PAD])
    act1 = jnp.maximum(win1 + b1_ref[...], 0.0)
    # keep only pool-window-origin (odd,odd) lanes; all other lanes must be exact
    # zeros so they serve as conv2's zero padding (jnp.where so junk never leaks).
    act1 = jnp.where(mask_ref[...] > 0.5, act1, 0.0).astype(bf16)       # (16, 1920)
    zpad = jnp.zeros((CONV1_C, MARGIN), bf16)
    act1p = jnp.concatenate([zpad, act1, zpad], axis=1)                 # (16, 2176)

    # ---- conv2: same grid, 2x-dilated taps (no subsample / relayout needed) ----
    col2 = jnp.concatenate(
        [act1p[:, MARGIN + d: MARGIN + d + S_PAD] for d in _tap_offsets(POOL)],
        axis=0)                                                         # (144, 1920)
    conv2 = jnp.dot(w2_ref[...], col2, preferred_element_type=f32)      # (32, 1920)

    conv2p = jnp.concatenate([conv2, jnp.zeros((CONV2_C, MARGIN), f32)], axis=1)
    win2 = conv2p[:, 0:S_PAD]
    for e in _pool_offsets(POOL)[1:]:
        win2 = jnp.maximum(win2, conv2p[:, e:e + S_PAD])
    act2 = jnp.maximum(win2 + b2_ref[...], 0.0).astype(bf16)            # (32, 1920)

    # ---- flatten: 49 tiny (32, N) copies -> (1568, N), feature order matches the
    #      init-time permutation of the first FC weight ----
    fcin = jnp.concatenate([act2[:, s:s + N_BATCH] for s in _FC_POS], axis=0)

    # ---- FC stack: Linear -> ReLU -> Linear (dropout p=0 -> identity) ----
    h = jnp.dot(w0_ref[...], fcin, preferred_element_type=f32) + b0_ref[...]
    h = jnp.maximum(h, 0.0).astype(bf16)                                # (128, N)
    out = jnp.dot(wo_ref[...], h, preferred_element_type=f32) + bo_ref[...]
    out_ref[...] = out                                                  # (9, N) f32


# --------------------------------- wrapper / init --------------------------------

def _spec(shape):
    return pl.BlockSpec(shape, lambda i: (0,) * len(shape))


@jax.jit
def cnn_forward(x, params):
    """x: (N, C, 28, 28) f32 (NCHW, like the PyTorch module) -> (N, 9) f32."""
    # tiny wrapper-side prep only: channels-major, zero spatial border, flat lanes.
    xt = jnp.transpose(x, (1, 2, 3, 0)).astype(jnp.bfloat16)          # (C, 28, 28, N)
    xt = jnp.pad(xt, ((0, 0), (1, 1), (1, 1), (0, 0)))                # (C, 30, 30, N)
    xp = jnp.pad(xt.reshape(C_IN, S),
                 ((0, 0), (IN_OFF, IN_LANES - IN_OFF - S)))           # (C, 2048)

    args = (xp, params["mask"],
            params["w1"], params["b1"], params["w2"], params["b2"],
            params["w0"], params["b0"], params["w_out"], params["b_out"])

    out = pl.pallas_call(
        _cnn_fused_kernel,
        out_shape=jax.ShapeDtypeStruct((OUT_SIZE, N_BATCH), jnp.float32),
        grid=(1,),
        in_specs=[_spec(a.shape) for a in args],
        out_specs=_spec((OUT_SIZE, N_BATCH)),
        compiler_params=pltpu.CompilerParams(dimension_semantics=("arbitrary",)),
    )(*args)
    return out.T                                                      # (N, 9)


def init_params(key):
    ks = jax.random.split(key, 8)
    w1 = jax.random.normal(ks[0], (CONV1_C, C_IN, KSIZE, KSIZE), jnp.float32) * 0.05
    b1 = jax.random.normal(ks[1], (CONV1_C,), jnp.float32) * 0.05
    w2 = jax.random.normal(ks[2], (CONV2_C, CONV1_C, KSIZE, KSIZE), jnp.float32) * 0.05
    b2 = jax.random.normal(ks[3], (CONV2_C,), jnp.float32) * 0.05
    w0 = jax.random.normal(ks[4], (FC_HIDDEN, FC_IN), jnp.float32) * 0.02
    b0 = jax.random.normal(ks[5], (FC_HIDDEN,), jnp.float32) * 0.02
    wo = jax.random.normal(ks[6], (OUT_SIZE, FC_HIDDEN), jnp.float32) * 0.02
    bo = jax.random.normal(ks[7], (OUT_SIZE,), jnp.float32) * 0.02

    # conv weights (torch (OutC, Cin, kh, kw)) -> flat tap-major (kh, kw, cin) columns,
    # matching the in-kernel im2col row order; conv1 K padded 27 -> 32.  Init-time only.
    w1k = jnp.transpose(w1, (0, 2, 3, 1)).reshape(CONV1_C, K1)
    w1k = jnp.pad(w1k, ((0, 0), (0, K1_PAD - K1))).astype(jnp.bfloat16)
    w2k = jnp.transpose(w2, (0, 2, 3, 1)).reshape(CONV2_C, K2).astype(jnp.bfloat16)
    # first FC weight: permute columns from torch flatten order (c, h, w) to the
    # kernel's flatten order ((h*7+w) major, channel minor).  Init-time only.
    w0k = (w0.reshape(FC_HIDDEN, CONV2_C, P2 * P2)
             .transpose(0, 2, 1).reshape(FC_HIDDEN, FC_IN).astype(jnp.bfloat16))

    # lane mask: 1.0 on the pool-window-origin (odd,odd) lanes of the 30x30 grid.
    mask = np.zeros((1, S_PAD), np.float32)
    for r in range(1, IMG, POOL):
        for c in range(1, IMG, POOL):
            base = (r * GRID + c) * N_BATCH
            mask[0, base:base + N_BATCH] = 1.0

    return {
        "mask": jnp.asarray(mask),
        "w1": w1k, "b1": b1.reshape(-1, 1),
        "w2": w2k, "b2": b2.reshape(-1, 1),
        "w0": w0k, "b0": b0.reshape(-1, 1),
        "w_out": wo.astype(jnp.bfloat16), "b_out": bo.reshape(-1, 1),
    }


if __name__ == "__main__":
    key = jax.random.PRNGKey(0)
    pkey, xkey = jax.random.split(key)
    params = init_params(pkey)
    x = jax.random.normal(xkey, (N_BATCH, C_IN, IMG, IMG), jnp.float32)  # NCHW
    out = cnn_forward(x, params)
    out = jax.block_until_ready(out)
    assert out.shape == (N_BATCH, OUT_SIZE), out.shape
    assert bool(jnp.all(jnp.isfinite(out)))
    print("KERNEL_OK")
</pallas_src>

<mosaic_0001>
module attributes {stable_mosaic.version = 11 : i64} {
  func.func @_cnn_fused_kernel(%arg0: i32, %arg1: memref<3x2048xbf16, #tpu.memory_space<vmem>>, %arg2: memref<1x1920xf32, #tpu.memory_space<vmem>>, %arg3: memref<16x32xbf16, #tpu.memory_space<vmem>>, %arg4: memref<16x1xf32, #tpu.memory_space<vmem>>, %arg5: memref<32x144xbf16, #tpu.memory_space<vmem>>, %arg6: memref<32x1xf32, #tpu.memory_space<vmem>>, %arg7: memref<128x1568xbf16, #tpu.memory_space<vmem>>, %arg8: memref<128x1xf32, #tpu.memory_space<vmem>>, %arg9: memref<9x128xbf16, #tpu.memory_space<vmem>>, %arg10: memref<9x1xf32, #tpu.memory_space<vmem>>, %arg11: memref<9x2xf32, #tpu.memory_space<vmem>>) attributes {dimension_semantics = [#tpu.dimension_semantics<arbitrary>], iteration_bounds = array<i64: 1>, scalar_prefetch = 0 : i64, scratch_operands = 0 : i64, tpu.core_type = #tpu.core_type<tc>, window_params = [{pipeline_mode = #tpu.pipeline_mode<synchronous>, transform_indices = @transform_0, window_bounds = array<i64: 3, 2048>}, {pipeline_mode = #tpu.pipeline_mode<synchronous>, transform_indices = @transform_1, window_bounds = array<i64: 1, 1920>}, {pipeline_mode = #tpu.pipeline_mode<synchronous>, transform_indices = @transform_2, window_bounds = array<i64: 16, 32>}, {pipeline_mode = #tpu.pipeline_mode<synchronous>, transform_indices = @transform_3, window_bounds = array<i64: 16, 1>}, {pipeline_mode = #tpu.pipeline_mode<synchronous>, transform_indices = @transform_4, window_bounds = array<i64: 32, 144>}, {pipeline_mode = #tpu.pipeline_mode<synchronous>, transform_indices = @transform_5, window_bounds = array<i64: 32, 1>}, {pipeline_mode = #tpu.pipeline_mode<synchronous>, transform_indices = @transform_6, window_bounds = array<i64: 128, 1568>}, {pipeline_mode = #tpu.pipeline_mode<synchronous>, transform_indices = @transform_7, window_bounds = array<i64: 128, 1>}, {pipeline_mode = #tpu.pipeline_mode<synchronous>, transform_indices = @transform_8, window_bounds = array<i64: 9, 128>}, {pipeline_mode = #tpu.pipeline_mode<synchronous>, transform_indices = @transform_9, window_bounds = array<i64: 9, 1>}, {pipeline_mode = #tpu.pipeline_mode<synchronous>, transform_indices = @transform_10, window_bounds = array<i64: 9, 2>}]} {
    %c0 = arith.constant 0 : index
    %c2 = arith.constant 2 : index
    %0 = vector.load %arg1[%c0, %c2] : memref<3x2048xbf16, #tpu.memory_space<vmem>>, vector<3x1920xbf16>
    %c0_0 = arith.constant 0 : index
    %c4 = arith.constant 4 : index
    %1 = vector.load %arg1[%c0_0, %c4] : memref<3x2048xbf16, #tpu.memory_space<vmem>>, vector<3x1920xbf16>
    %c0_1 = arith.constant 0 : index
    %c6 = arith.constant 6 : index
    %2 = vector.load %arg1[%c0_1, %c6] : memref<3x2048xbf16, #tpu.memory_space<vmem>>, vector<3x1920xbf16>
    %c0_2 = arith.constant 0 : index
    %c62 = arith.constant 62 : index
    %3 = vector.load %arg1[%c0_2, %c62] : memref<3x2048xbf16, #tpu.memory_space<vmem>>, vector<3x1920xbf16>
    %c0_3 = arith.constant 0 : index
    %c64 = arith.constant 64 : index
    %4 = vector.load %arg1[%c0_3, %c64] : memref<3x2048xbf16, #tpu.memory_space<vmem>>, vector<3x1920xbf16>
    %c0_4 = arith.constant 0 : index
    %c66 = arith.constant 66 : index
    %5 = vector.load %arg1[%c0_4, %c66] : memref<3x2048xbf16, #tpu.memory_space<vmem>>, vector<3x1920xbf16>
    %c0_5 = arith.constant 0 : index
    %c122 = arith.constant 122 : index
    %6 = vector.load %arg1[%c0_5, %c122] : memref<3x2048xbf16, #tpu.memory_space<vmem>>, vector<3x1920xbf16>
    %c0_6 = arith.constant 0 : index
    %c124 = arith.constant 124 : index
    %7 = vector.load %arg1[%c0_6, %c124] : memref<3x2048xbf16, #tpu.memory_space<vmem>>, vector<3x1920xbf16>
    %c0_7 = arith.constant 0 : index
    %c126 = arith.constant 126 : index
    %8 = vector.load %arg1[%c0_7, %c126] : memref<3x2048xbf16, #tpu.memory_space<vmem>>, vector<3x1920xbf16>
    %cst = arith.constant 0.000000e+00 : bf16
    %9 = vector.broadcast %cst : bf16 to vector<5x1920xbf16>
    %10 = tpu.concatenate %0, %1, %2, %3, %4, %5, %6, %7, %8, %9 in 0 : vector<3x1920xbf16>, vector<3x1920xbf16>, vector<3x1920xbf16>, vector<3x1920xbf16>, vector<3x1920xbf16>, vector<3x1920xbf16>, vector<3x1920xbf16>, vector<3x1920xbf16>, vector<3x1920xbf16>, vector<5x1920xbf16> -> vector<32x1920xbf16>
    %c0_8 = arith.constant 0 : index
    %c0_9 = arith.constant 0 : index
    %11 = vector.load %arg3[%c0_8, %c0_9] : memref<16x32xbf16, #tpu.memory_space<vmem>>, vector<16x32xbf16>
    %cst_10 = arith.constant dense<0.000000e+00> : vector<16x1920xf32>
    %12 = tpu.matmul %11, %10, %cst_10 {dimension_numbers = #tpu.dot_dimension_numbers<[1], [0], [0], [1], [0, 0, 1, 1], [], []>} : vector<16x32xbf16>, vector<32x1920xbf16>, vector<16x1920xf32> -> vector<16x1920xf32>
    %cst_11 = arith.constant 0.000000e+00 : f32
    %13 = vector.broadcast %cst_11 : f32 to vector<16x64xf32>
    %14 = tpu.concatenate %12, %13 in 1 : vector<16x1920xf32>, vector<16x64xf32> -> vector<16x1984xf32>
    %15 = vector.extract_strided_slice %14 {offsets = [0, 0], sizes = [16, 1920], strides = [1, 1]} : vector<16x1984xf32> to vector<16x1920xf32>
    %16 = vector.extract_strided_slice %14 {offsets = [0, 2], sizes = [16, 1920], strides = [1, 1]} : vector<16x1984xf32> to vector<16x1920xf32>
    %17 = arith.maximumf %15, %16 : vector<16x1920xf32>
    %18 = vector.extract_strided_slice %14 {offsets = [0, 60], sizes = [16, 1920], strides = [1, 1]} : vector<16x1984xf32> to vector<16x1920xf32>
    %19 = arith.maximumf %17, %18 : vector<16x1920xf32>
    %20 = vector.extract_strided_slice %14 {offsets = [0, 62], sizes = [16, 1920], strides = [1, 1]} : vector<16x1984xf32> to vector<16x1920xf32>
    %21 = arith.maximumf %19, %20 : vector<16x1920xf32>
    %c0_12 = arith.constant 0 : index
    %c0_13 = arith.constant 0 : index
    %22 = vector.load %arg4[%c0_12, %c0_13] : memref<16x1xf32, #tpu.memory_space<vmem>>, vector<16x1xf32>
    %23 = vector.broadcast %22 : vector<16x1xf32> to vector<16x1920xf32>
    %24 = arith.addf %21, %23 : vector<16x1920xf32>
    %cst_14 = arith.constant 0.000000e+00 : f32
    %25 = vector.broadcast %cst_14 : f32 to vector<16x1920xf32>
    %26 = arith.maximumf %24, %25 : vector<16x1920xf32>
    %c0_15 = arith.constant 0 : index
    %c0_16 = arith.constant 0 : index
    %27 = vector.load %arg2[%c0_15, %c0_16] : memref<1x1920xf32, #tpu.memory_space<vmem>>, vector<1x1920xf32>
    %cst_17 = arith.constant 5.000000e-01 : f32
    %28 = vector.broadcast %cst_17 : f32 to vector<1x1920xf32>
    %29 = arith.cmpf ogt, %27, %28 : vector<1x1920xf32>
    %cst_18 = arith.constant 0.000000e+00 : f32
    %30 = vector.shape_cast %29 : vector<1x1920xi1> to vector<1x1920xi1>
    %31 = vector.broadcast %30 : vector<1x1920xi1> to vector<16x1920xi1>
    %32 = vector.broadcast %cst_18 : f32 to vector<16x1920xf32>
    %33 = arith.select %31, %26, %32 : vector<16x1920xi1>, vector<16x1920xf32>
    %34 = arith.truncf %33 : vector<16x1920xf32> to vector<16x1920xbf16>
    %cst_19 = arith.constant 0.000000e+00 : bf16
    %35 = vector.broadcast %cst_19 : bf16 to vector<16x128xbf16>
    %36 = tpu.concatenate %35, %34, %35 in 1 : vector<16x128xbf16>, vector<16x1920xbf16>, vector<16x128xbf16> -> vector<16x2176xbf16>
    %37 = vector.extract_strided_slice %36 {offsets = [0, 4], sizes = [16, 1920], strides = [1, 1]} : vector<16x2176xbf16> to vector<16x1920xbf16>
    %38 = vector.extract_strided_slice %36 {offsets = [0, 8], sizes = [16, 1920], strides = [1, 1]} : vector<16x2176xbf16> to vector<16x1920xbf16>
    %39 = vector.extract_strided_slice %36 {offsets = [0, 12], sizes = [16, 1920], strides = [1, 1]} : vector<16x2176xbf16> to vector<16x1920xbf16>
    %40 = vector.extract_strided_slice %36 {offsets = [0, 124], sizes = [16, 1920], strides = [1, 1]} : vector<16x2176xbf16> to vector<16x1920xbf16>
    %41 = vector.extract_strided_slice %36 {offsets = [0, 128], sizes = [16, 1920], strides = [1, 1]} : vector<16x2176xbf16> to vector<16x1920xbf16>
    %42 = vector.extract_strided_slice %36 {offsets = [0, 132], sizes = [16, 1920], strides = [1, 1]} : vector<16x2176xbf16> to vector<16x1920xbf16>
    %43 = vector.extract_strided_slice %36 {offsets = [0, 244], sizes = [16, 1920], strides = [1, 1]} : vector<16x2176xbf16> to vector<16x1920xbf16>
    %44 = vector.extract_strided_slice %36 {offsets = [0, 248], sizes = [16, 1920], strides = [1, 1]} : vector<16x2176xbf16> to vector<16x1920xbf16>
    %45 = vector.extract_strided_slice %36 {offsets = [0, 252], sizes = [16, 1920], strides = [1, 1]} : vector<16x2176xbf16> to vector<16x1920xbf16>
    %46 = tpu.concatenate %37, %38, %39, %40, %41, %42, %43, %44, %45 in 0 : vector<16x1920xbf16>, vector<16x1920xbf16>, vector<16x1920xbf16>, vector<16x1920xbf16>, vector<16x1920xbf16>, vector<16x1920xbf16>, vector<16x1920xbf16>, vector<16x1920xbf16>, vector<16x1920xbf16> -> vector<144x1920xbf16>
    %c0_20 = arith.constant 0 : index
    %c0_21 = arith.constant 0 : index
    %47 = vector.load %arg5[%c0_20, %c0_21] : memref<32x144xbf16, #tpu.memory_space<vmem>>, vector<32x144xbf16>
    %cst_22 = arith.constant dense<0.000000e+00> : vector<32x1920xf32>
    %48 = tpu.matmul %47, %46, %cst_22 {dimension_numbers = #tpu.dot_dimension_numbers<[1], [0], [0], [1], [0, 0, 1, 1], [], []>} : vector<32x144xbf16>, vector<144x1920xbf16>, vector<32x1920xf32> -> vector<32x1920xf32>
    %cst_23 = arith.constant 0.000000e+00 : f32
    %49 = vector.broadcast %cst_23 : f32 to vector<32x128xf32>
    %50 = tpu.concatenate %48, %49 in 1 : vector<32x1920xf32>, vector<32x128xf32> -> vector<32x2048xf32>
    %51 = vector.extract_strided_slice %50 {offsets = [0, 0], sizes = [32, 1920], strides = [1, 1]} : vector<32x2048xf32> to vector<32x1920xf32>
    %52 = vector.extract_strided_slice %50 {offsets = [0, 4], sizes = [32, 1920], strides = [1, 1]} : vector<32x2048xf32> to vector<32x1920xf32>
    %53 = arith.maximumf %51, %52 : vector<32x1920xf32>
    %54 = vector.extract_strided_slice %50 {offsets = [0, 120], sizes = [32, 1920], strides = [1, 1]} : vector<32x2048xf32> to vector<32x1920xf32>
    %55 = arith.maximumf %53, %54 : vector<32x1920xf32>
    %56 = vector.extract_strided_slice %50 {offsets = [0, 124], sizes = [32, 1920], strides = [1, 1]} : vector<32x2048xf32> to vector<32x1920xf32>
    %57 = arith.maximumf %55, %56 : vector<32x1920xf32>
    %c0_24 = arith.constant 0 : index
    %c0_25 = arith.constant 0 : index
    %58 = vector.load %arg6[%c0_24, %c0_25] : memref<32x1xf32, #tpu.memory_space<vmem>>, vector<32x1xf32>
    %59 = vector.broadcast %58 : vector<32x1xf32> to vector<32x1920xf32>
    %60 = arith.addf %57, %59 : vector<32x1920xf32>
    %cst_26 = arith.constant 0.000000e+00 : f32
    %61 = vector.broadcast %cst_26 : f32 to vector<32x1920xf32>
    %62 = arith.maximumf %60, %61 : vector<32x1920xf32>
    %63 = arith.truncf %62 : vector<32x1920xf32> to vector<32x1920xbf16>
    %64 = vector.extract_strided_slice %63 {offsets = [0, 62], sizes = [32, 2], strides = [1, 1]} : vector<32x1920xbf16> to vector<32x2xbf16>
    %65 = vector.extract_strided_slice %63 {offsets = [0, 70], sizes = [32, 2], strides = [1, 1]} : vector<32x1920xbf16> to vector<32x2xbf16>
    %66 = vector.extract_strided_slice %63 {offsets = [0, 78], sizes = [32, 2], strides = [1, 1]} : vector<32x1920xbf16> to vector<32x2xbf16>
    %67 = vector.extract_strided_slice %63 {offsets = [0, 86], sizes = [32, 2], strides = [1, 1]} : vector<32x1920xbf16> to vector<32x2xbf16>
    %68 = vector.extract_strided_slice %63 {offsets = [0, 94], sizes = [32, 2], strides = [1, 1]} : vector<32x1920xbf16> to vector<32x2xbf16>
    %69 = vector.extract_strided_slice %63 {offsets = [0, 102], sizes = [32, 2], strides = [1, 1]} : vector<32x1920xbf16> to vector<32x2xbf16>
    %70 = vector.extract_strided_slice %63 {offsets = [0, 110], sizes = [32, 2], strides = [1, 1]} : vector<32x1920xbf16> to vector<32x2xbf16>
    %71 = vector.extract_strided_slice %63 {offsets = [0, 302], sizes = [32, 2], strides = [1, 1]} : vector<32x1920xbf16> to vector<32x2xbf16>
    %72 = vector.extract_strided_slice %63 {offsets = [0, 310], sizes = [32, 2], strides = [1, 1]} : vector<32x1920xbf16> to vector<32x2xbf16>
    %73 = vector.extract_strided_slice %63 {offsets = [0, 318], sizes = [32, 2], strides = [1, 1]} : vector<32x1920xbf16> to vector<32x2xbf16>
    %74 = vector.extract_strided_slice %63 {offsets = [0, 326], sizes = [32, 2], strides = [1, 1]} : vector<32x1920xbf16> to vector<32x2xbf16>
    %75 = vector.extract_strided_slice %63 {offsets = [0, 334], sizes = [32, 2], strides = [1, 1]} : vector<32x1920xbf16> to vector<32x2xbf16>
    %76 = vector.extract_strided_slice %63 {offsets = [0, 342], sizes = [32, 2], strides = [1, 1]} : vector<32x1920xbf16> to vector<32x2xbf16>
    %77 = vector.extract_strided_slice %63 {offsets = [0, 350], sizes = [32, 2], strides = [1, 1]} : vector<32x1920xbf16> to vector<32x2xbf16>
    %78 = vector.extract_strided_slice %63 {offsets = [0, 542], sizes = [32, 2], strides = [1, 1]} : vector<32x1920xbf16> to vector<32x2xbf16>
    %79 = vector.extract_strided_slice %63 {offsets = [0, 550], sizes = [32, 2], strides = [1, 1]} : vector<32x1920xbf16> to vector<32x2xbf16>
    %80 = vector.extract_strided_slice %63 {offsets = [0, 558], sizes = [32, 2], strides = [1, 1]} : vector<32x1920xbf16> to vector<32x2xbf16>
    %81 = vector.extract_strided_slice %63 {offsets = [0, 566], sizes = [32, 2], strides = [1, 1]} : vector<32x1920xbf16> to vector<32x2xbf16>
    %82 = vector.extract_strided_slice %63 {offsets = [0, 574], sizes = [32, 2], strides = [1, 1]} : vector<32x1920xbf16> to vector<32x2xbf16>
    %83 = vector.extract_strided_slice %63 {offsets = [0, 582], sizes = [32, 2], strides = [1, 1]} : vector<32x1920xbf16> to vector<32x2xbf16>
    %84 = vector.extract_strided_slice %63 {offsets = [0, 590], sizes = [32, 2], strides = [1, 1]} : vector<32x1920xbf16> to vector<32x2xbf16>
    %85 = vector.extract_strided_slice %63 {offsets = [0, 782], sizes = [32, 2], strides = [1, 1]} : vector<32x1920xbf16> to vector<32x2xbf16>
    %86 = vector.extract_strided_slice %63 {offsets = [0, 790], sizes = [32, 2], strides = [1, 1]} : vector<32x1920xbf16> to vector<32x2xbf16>
    %87 = vector.extract_strided_slice %63 {offsets = [0, 798], sizes = [32, 2], strides = [1, 1]} : vector<32x1920xbf16> to vector<32x2xbf16>
    %88 = vector.extract_strided_slice %63 {offsets = [0, 806], sizes = [32, 2], strides = [1, 1]} : vector<32x1920xbf16> to vector<32x2xbf16>
    %89 = vector.extract_strided_slice %63 {offsets = [0, 814], sizes = [32, 2], strides = [1, 1]} : vector<32x1920xbf16> to vector<32x2xbf16>
    %90 = vector.extract_strided_slice %63 {offsets = [0, 822], sizes = [32, 2], strides = [1, 1]} : vector<32x1920xbf16> to vector<32x2xbf16>
    %91 = vector.extract_strided_slice %63 {offsets = [0, 830], sizes = [32, 2], strides = [1, 1]} : vector<32x1920xbf16> to vector<32x2xbf16>
    %92 = vector.extract_strided_slice %63 {offsets = [0, 1022], sizes = [32, 2], strides = [1, 1]} : vector<32x1920xbf16> to vector<32x2xbf16>
    %93 = vector.extract_strided_slice %63 {offsets = [0, 1030], sizes = [32, 2], strides = [1, 1]} : vector<32x1920xbf16> to vector<32x2xbf16>
    %94 = vector.extract_strided_slice %63 {offsets = [0, 1038], sizes = [32, 2], strides = [1, 1]} : vector<32x1920xbf16> to vector<32x2xbf16>
    %95 = vector.extract_strided_slice %63 {offsets = [0, 1046], sizes = [32, 2], strides = [1, 1]} : vector<32x1920xbf16> to vector<32x2xbf16>
    %96 = vector.extract_strided_slice %63 {offsets = [0, 1054], sizes = [32, 2], strides = [1, 1]} : vector<32x1920xbf16> to vector<32x2xbf16>
    %97 = vector.extract_strided_slice %63 {offsets = [0, 1062], sizes = [32, 2], strides = [1, 1]} : vector<32x1920xbf16> to vector<32x2xbf16>
    %98 = vector.extract_strided_slice %63 {offsets = [0, 1070], sizes = [32, 2], strides = [1, 1]} : vector<32x1920xbf16> to vector<32x2xbf16>
    %99 = vector.extract_strided_slice %63 {offsets = [0, 1262], sizes = [32, 2], strides = [1, 1]} : vector<32x1920xbf16> to vector<32x2xbf16>
    %100 = vector.extract_strided_slice %63 {offsets = [0, 1270], sizes = [32, 2], strides = [1, 1]} : vector<32x1920xbf16> to vector<32x2xbf16>
    %101 = vector.extract_strided_slice %63 {offsets = [0, 1278], sizes = [32, 2], strides = [1, 1]} : vector<32x1920xbf16> to vector<32x2xbf16>
    %102 = vector.extract_strided_slice %63 {offsets = [0, 1286], sizes = [32, 2], strides = [1, 1]} : vector<32x1920xbf16> to vector<32x2xbf16>
    %103 = vector.extract_strided_slice %63 {offsets = [0, 1294], sizes = [32, 2], strides = [1, 1]} : vector<32x1920xbf16> to vector<32x2xbf16>
    %104 = vector.extract_strided_slice %63 {offsets = [0, 1302], sizes = [32, 2], strides = [1, 1]} : vector<32x1920xbf16> to vector<32x2xbf16>
    %105 = vector.extract_strided_slice %63 {offsets = [0, 1310], sizes = [32, 2], strides = [1, 1]} : vector<32x1920xbf16> to vector<32x2xbf16>
    %106 = vector.extract_strided_slice %63 {offsets = [0, 1502], sizes = [32, 2], strides = [1, 1]} : vector<32x1920xbf16> to vector<32x2xbf16>
    %107 = vector.extract_strided_slice %63 {offsets = [0, 1510], sizes = [32, 2], strides = [1, 1]} : vector<32x1920xbf16> to vector<32x2xbf16>
    %108 = vector.extract_strided_slice %63 {offsets = [0, 1518], sizes = [32, 2], strides = [1, 1]} : vector<32x1920xbf16> to vector<32x2xbf16>
    %109 = vector.extract_strided_slice %63 {offsets = [0, 1526], sizes = [32, 2], strides = [1, 1]} : vector<32x1920xbf16> to vector<32x2xbf16>
    %110 = vector.extract_strided_slice %63 {offsets = [0, 1534], sizes = [32, 2], strides = [1, 1]} : vector<32x1920xbf16> to vector<32x2xbf16>
    %111 = vector.extract_strided_slice %63 {offsets = [0, 1542], sizes = [32, 2], strides = [1, 1]} : vector<32x1920xbf16> to vector<32x2xbf16>
    %112 = vector.extract_strided_slice %63 {offsets = [0, 1550], sizes = [32, 2], strides = [1, 1]} : vector<32x1920xbf16> to vector<32x2xbf16>
    %113 = tpu.concatenate %64, %65, %66, %67, %68, %69, %70, %71, %72, %73, %74, %75, %76, %77, %78, %79 in 0 : vector<32x2xbf16>, vector<32x2xbf16>, vector<32x2xbf16>, vector<32x2xbf16>, vector<32x2xbf16>, vector<32x2xbf16>, vector<32x2xbf16>, vector<32x2xbf16>, vector<32x2xbf16>, vector<32x2xbf16>, vector<32x2xbf16>, vector<32x2xbf16>, vector<32x2xbf16>, vector<32x2xbf16>, vector<32x2xbf16>, vector<32x2xbf16> -> vector<512x2xbf16>
    %114 = tpu.concatenate %80, %81, %82, %83, %84, %85, %86, %87, %88, %89, %90, %91, %92, %93, %94, %95 in 0 : vector<32x2xbf16>, vector<32x2xbf16>, vector<32x2xbf16>, vector<32x2xbf16>, vector<32x2xbf16>, vector<32x2xbf16>, vector<32x2xbf16>, vector<32x2xbf16>, vector<32x2xbf16>, vector<32x2xbf16>, vector<32x2xbf16>, vector<32x2xbf16>, vector<32x2xbf16>, vector<32x2xbf16>, vector<32x2xbf16>, vector<32x2xbf16> -> vector<512x2xbf16>
    %115 = tpu.concatenate %96, %97, %98, %99, %100, %101, %102, %103, %104, %105, %106, %107, %108, %109, %110, %111 in 0 : vector<32x2xbf16>, vector<32x2xbf16>, vector<32x2xbf16>, vector<32x2xbf16>, vector<32x2xbf16>, vector<32x2xbf16>, vector<32x2xbf16>, vector<32x2xbf16>, vector<32x2xbf16>, vector<32x2xbf16>, vector<32x2xbf16>, vector<32x2xbf16>, vector<32x2xbf16>, vector<32x2xbf16>, vector<32x2xbf16>, vector<32x2xbf16> -> vector<512x2xbf16>
    %116 = tpu.concatenate %113, %114, %115, %112 in 0 : vector<512x2xbf16>, vector<512x2xbf16>, vector<512x2xbf16>, vector<32x2xbf16> -> vector<1568x2xbf16>
    %c0_27 = arith.constant 0 : index
    %c0_28 = arith.constant 0 : index
    %117 = vector.load %arg7[%c0_27, %c0_28] : memref<128x1568xbf16, #tpu.memory_space<vmem>>, vector<128x1568xbf16>
    %cst_29 = arith.constant dense<0.000000e+00> : vector<128x2xf32>
    %118 = tpu.matmul %117, %116, %cst_29 {dimension_numbers = #tpu.dot_dimension_numbers<[1], [0], [0], [1], [0, 0, 1, 1], [], []>} : vector<128x1568xbf16>, vector<1568x2xbf16>, vector<128x2xf32> -> vector<128x2xf32>
    %c0_30 = arith.constant 0 : index
    %c0_31 = arith.constant 0 : index
    %119 = vector.load %arg8[%c0_30, %c0_31] : memref<128x1xf32, #tpu.memory_space<vmem>>, vector<128x1xf32>
    %120 = vector.broadcast %119 : vector<128x1xf32> to vector<128x2xf32>
    %121 = arith.addf %118, %120 : vector<128x2xf32>
    %cst_32 = arith.constant 0.000000e+00 : f32
    %122 = vector.broadcast %cst_32 : f32 to vector<128x2xf32>
    %123 = arith.maximumf %121, %122 : vector<128x2xf32>
    %124 = arith.truncf %123 : vector<128x2xf32> to vector<128x2xbf16>
    %c0_33 = arith.constant 0 : index
    %c0_34 = arith.constant 0 : index
    %125 = vector.load %arg9[%c0_33, %c0_34] : memref<9x128xbf16, #tpu.memory_space<vmem>>, vector<9x128xbf16>
    %cst_35 = arith.constant dense<0.000000e+00> : vector<9x2xf32>
    %126 = tpu.matmul %125, %124, %cst_35 {dimension_numbers = #tpu.dot_dimension_numbers<[1], [0], [0], [1], [0, 0, 1, 1], [], []>} : vector<9x128xbf16>, vector<128x2xbf16>, vector<9x2xf32> -> vector<9x2xf32>
    %c0_36 = arith.constant 0 : index
    %c0_37 = arith.constant 0 : index
    %127 = vector.load %arg10[%c0_36, %c0_37] : memref<9x1xf32, #tpu.memory_space<vmem>>, vector<9x1xf32>
    %128 = vector.broadcast %127 : vector<9x1xf32> to vector<9x2xf32>
    %129 = arith.addf %126, %128 : vector<9x2xf32>
    %c0_38 = arith.constant 0 : index
    %c0_39 = arith.constant 0 : index
    %130 = vector.load %arg11[%c0_38, %c0_39] : memref<9x2xf32, #tpu.memory_space<vmem>>, vector<9x2xf32>
    tpu.vector_store %arg11[%c0_38, %c0_39], %129 {strides = array<i32>} : memref<9x2xf32, #tpu.memory_space<vmem>>, vector<9x2xf32>,
    return
  }
  func.func @transform_0(%arg0: i32) -> (i32, i32) {
    %c0_i32 = arith.constant 0 : i32
    %c0_i32_0 = arith.constant 0 : i32
    %c0_i32_1 = arith.constant 0 : i32
    return %c0_i32, %c0_i32_0 : i32, i32
  }
  func.func @transform_1(%arg0: i32) -> (i32, i32) {
    %c0_i32 = arith.constant 0 : i32
    %c0_i32_0 = arith.constant 0 : i32
    %c0_i32_1 = arith.constant 0 : i32
    return %c0_i32, %c0_i32_0 : i32, i32
  }
  func.func @transform_2(%arg0: i32) -> (i32, i32) {
    %c0_i32 = arith.constant 0 : i32
    %c0_i32_0 = arith.constant 0 : i32
    %c0_i32_1 = arith.constant 0 : i32
    return %c0_i32, %c0_i32_0 : i32, i32
  }
  func.func @transform_3(%arg0: i32) -> (i32, i32) {
    %c0_i32 = arith.constant 0 : i32
    %c0_i32_0 = arith.constant 0 : i32
    %c0_i32_1 = arith.constant 0 : i32
    return %c0_i32, %c0_i32_0 : i32, i32
  }
  func.func @transform_4(%arg0: i32) -> (i32, i32) {
    %c0_i32 = arith.constant 0 : i32
    %c0_i32_0 = arith.constant 0 : i32
    %c0_i32_1 = arith.constant 0 : i32
    return %c0_i32, %c0_i32_0 : i32, i32
  }
  func.func @transform_5(%arg0: i32) -> (i32, i32) {
    %c0_i32 = arith.constant 0 : i32
    %c0_i32_0 = arith.constant 0 : i32
    %c0_i32_1 = arith.constant 0 : i32
    return %c0_i32, %c0_i32_0 : i32, i32
  }
  func.func @transform_6(%arg0: i32) -> (i32, i32) {
    %c0_i32 = arith.constant 0 : i32
    %c0_i32_0 = arith.constant 0 : i32
    %c0_i32_1 = arith.constant 0 : i32
    return %c0_i32, %c0_i32_0 : i32, i32
  }
  func.func @transform_7(%arg0: i32) -> (i32, i32) {
    %c0_i32 = arith.constant 0 : i32
    %c0_i32_0 = arith.constant 0 : i32
    %c0_i32_1 = arith.constant 0 : i32
    return %c0_i32, %c0_i32_0 : i32, i32
  }
  func.func @transform_8(%arg0: i32) -> (i32, i32) {
    %c0_i32 = arith.constant 0 : i32
    %c0_i32_0 = arith.constant 0 : i32
    %c0_i32_1 = arith.constant 0 : i32
    return %c0_i32, %c0_i32_0 : i32, i32
  }
  func.func @transform_9(%arg0: i32) -> (i32, i32) {
    %c0_i32 = arith.constant 0 : i32
    %c0_i32_0 = arith.constant 0 : i32
    %c0_i32_1 = arith.constant 0 : i32
    return %c0_i32, %c0_i32_0 : i32, i32
  }
  func.func @transform_10(%arg0: i32) -> (i32, i32) {
    %c0_i32 = arith.constant 0 : i32
    %c0_i32_0 = arith.constant 0 : i32
    %c0_i32_1 = arith.constant 0 : i32
    return %c0_i32, %c0_i32_0 : i32, i32
  }
}

</mosaic_0001>

<llo_original>
// kernel: cnn_forward.1
$region0: #{cnn_forward.1}
  #allocation0 [shape = 'u32[]', space=smem, size = 0x4, offset = 0x4, fixed_abs, tag = 'smem constant byte address 0x4 - core index']
  #allocation1 [shape = 'u32[72,128]{1,0:T(1,128)}', space=vmem, size = 0x9000, scoped, tag = 'internal scratch']
  %s0 = inlined_call_operand.vmem [shape: bf16[3,2048], index: 0, kind: input, shape index: {}]
  %s1 = inlined_call_operand.vmem [shape: f32[1,1920], index: 1, kind: input, shape index: {}]
  %s2 = inlined_call_operand.vmem [shape: bf16[16,32], index: 2, kind: input, shape index: {}]
  %s3 = inlined_call_operand.vmem [shape: f32[16,1], index: 3, kind: input, shape index: {}]
  %s4 = inlined_call_operand.vmem [shape: bf16[32,144], index: 4, kind: input, shape index: {}]
  %s5 = inlined_call_operand.vmem [shape: f32[32,1], index: 5, kind: input, shape index: {}]
  %s6 = inlined_call_operand.vmem [shape: bf16[128,1568], index: 6, kind: input, shape index: {}]
  %s7 = inlined_call_operand.vmem [shape: f32[128,1], index: 7, kind: input, shape index: {}]
  %s8 = inlined_call_operand.vmem [shape: bf16[9,128], index: 8, kind: input, shape index: {}]
  %s9 = inlined_call_operand.vmem [shape: f32[9,1], index: 9, kind: input, shape index: {}]
  %s10 = inlined_call_operand.vmem [shape: f32[9,2], index: 10, kind: output, shape index: {}]
  %s11 = sld [smem:[#allocation0]]
  $region50: #{cnn_forward.1} parent=0
    _
  %s13 = ssub.s32 1, %s11
  %s14 = scalar_select 0, %s13, %s11
  // Predicated region
  $region2: #{cnn_forward.1} parent=0 // pred_check
    _
  $region3: #{cnn_forward.1} parent=0 // pred_check_branch
    %16 = sbr.rel (0) target = $region5
  $region4: #{cnn_forward.1} parent=0 // pred_region
    _
  $region5: #{cnn_forward.1} parent=0 // pred_fallthru
    _
  // Predicated region
  $region6: #{cnn_forward.1} parent=0 // pred_check
    _
  $region7: #{cnn_forward.1} parent=0 // pred_check_branch
    %18 = sbr.rel (0) target = $region9
  $region8: #{cnn_forward.1} parent=0 // pred_region
    _
  $region9: #{cnn_forward.1} parent=0 // pred_fallthru
    _
  // Predicated region
  $region10: #{cnn_forward.1} parent=0 // pred_check
    _
  $region11: #{cnn_forward.1} parent=0 // pred_check_branch
    %20 = sbr.rel (0) target = $region13
  $region12: #{cnn_forward.1} parent=0 // pred_region
    _
  $region13: #{cnn_forward.1} parent=0 // pred_fallthru
    _
  // Predicated region
  $region14: #{cnn_forward.1} parent=0 // pred_check
    _
  $region15: #{cnn_forward.1} parent=0 // pred_check_branch
    %22 = sbr.rel (0) target = $region17
  $region16: #{cnn_forward.1} parent=0 // pred_region
    _
  $region17: #{cnn_forward.1} parent=0 // pred_fallthru
    _
  // Predicated region
  $region18: #{cnn_forward.1} parent=0 // pred_check
    _
  $region19: #{cnn_forward.1} parent=0 // pred_check_branch
    %24 = sbr.rel (0) target = $region21
  $region20: #{cnn_forward.1} parent=0 // pred_region
    _
  $region21: #{cnn_forward.1} parent=0 // pred_fallthru
    _
  // Predicated region
  $region22: #{cnn_forward.1} parent=0 // pred_check
    _
  $region23: #{cnn_forward.1} parent=0 // pred_check_branch
    %26 = sbr.rel (0) target = $region25
  $region24: #{cnn_forward.1} parent=0 // pred_region
    _
  $region25: #{cnn_forward.1} parent=0 // pred_fallthru
    _
  // Predicated region
  $region26: #{cnn_forward.1} parent=0 // pred_check
    _
  $region27: #{cnn_forward.1} parent=0 // pred_check_branch
    %28 = sbr.rel (0) target = $region29
  $region28: #{cnn_forward.1} parent=0 // pred_region
    _
  $region29: #{cnn_forward.1} parent=0 // pred_fallthru
    _
  // Predicated region
  $region30: #{cnn_forward.1} parent=0 // pred_check
    _
  $region31: #{cnn_forward.1} parent=0 // pred_check_branch
    %30 = sbr.rel (0) target = $region33
  $region32: #{cnn_forward.1} parent=0 // pred_region
    _
  $region33: #{cnn_forward.1} parent=0 // pred_fallthru
    _
  // Predicated region
  $region34: #{cnn_forward.1} parent=0 // pred_check
    _
  $region35: #{cnn_forward.1} parent=0 // pred_check_branch
    %32 = sbr.rel (0) target = $region37
  $region36: #{cnn_forward.1} parent=0 // pred_region
    _
  $region37: #{cnn_forward.1} parent=0 // pred_fallthru
    _
  // Predicated region
  $region38: #{cnn_forward.1} parent=0 // pred_check
    _
  $region39: #{cnn_forward.1} parent=0 // pred_check_branch
    %34 = sbr.rel (0) target = $region41
  $region40: #{cnn_forward.1} parent=0 // pred_region
    _
  $region41: #{cnn_forward.1} parent=0 // pred_fallthru
    _
  %v36 = vld [vmem:[%s0] sm:$0xff]
  %v37 = vld [vmem:[%s0 + $0x8] sm:$0xff]
  %v38 = vld [vmem:[%s0 + $0x10] sm:$0xff]
  %v39 = vld [vmem:[%s0 + $0x18] sm:$0xff]
  %41 = vst [vmem:[#allocation1] ss:$4 sm:$0xff] %v36
  %s43 = scalar_lea.vmem [#allocation1], 32
  %44 = vst [vmem:[%s43] ss:$4 sm:$0xff] %v37
  %v45 = vld.sshfl [vmem:[#allocation1] sm:$0xff pattern:$0x73625140]
  %v46 = vld.sshfl [vmem:[#allocation1 + $0x8] sm:$0xff pattern:$0x73625140]
  %v47 = vld.sshfl [vmem:[#allocation1 + $0x10] sm:$0xff pattern:$0x73625140]
  %v48 = vld.sshfl [vmem:[#allocation1 + $0x18] sm:$0xff pattern:$0x73625140]
  %v49 = vld.sshfl [vmem:[#allocation1 + $0x20] sm:$0xff pattern:$0x73625140]
  %v50 = vld.sshfl [vmem:[#allocation1 + $0x28] sm:$0xff pattern:$0x73625140]
  %v51 = vld.sshfl [vmem:[#allocation1 + $0x30] sm:$0xff pattern:$0x73625140]
  %v52 = vld.sshfl [vmem:[#allocation1 + $0x38] sm:$0xff pattern:$0x73625140]
  %54 = vst [vmem:[#allocation1] ss:$4 sm:$0xff] %v38
  %56 = vst [vmem:[%s43] ss:$4 sm:$0xff] %v39
  %v57 = vld.sshfl [vmem:[#allocation1] sm:$0xff pattern:$0x73625140]
  %v58 = vld.sshfl [vmem:[#allocation1 + $0x8] sm:$0xff pattern:$0x73625140]
  %v59 = vld.sshfl [vmem:[#allocation1 + $0x10] sm:$0xff pattern:$0x73625140]
  %v60 = vld.sshfl [vmem:[#allocation1 + $0x18] sm:$0xff pattern:$0x73625140]
  %v61 = vld.sshfl [vmem:[#allocation1 + $0x20] sm:$0xff pattern:$0x73625140]
  %v62 = vld.sshfl [vmem:[#allocation1 + $0x28] sm:$0xff pattern:$0x73625140]
  %v63 = vld.sshfl [vmem:[#allocation1 + $0x30] sm:$0xff pattern:$0x73625140]
  %v64 = vld.sshfl [vmem:[#allocation1 + $0x38] sm:$0xff pattern:$0x73625140]
  %81 = vst [vmem:[#allocation1] ss:$4 sm:$0xff] %v36
  %s82 = scalar_lea.vmem [#allocation1], 32
  %83 = vst [vmem:[%s82] ss:$4 sm:$0xff] %v37
  %v84 = vld.sshfl [vmem:[#allocation1] sm:$0xff pattern:$0x73625140]
  %v85 = vld.sshfl [vmem:[#allocation1 + $0x8] sm:$0xff pattern:$0x73625140]
  %v86 = vld.sshfl [vmem:[#allocation1 + $0x10] sm:$0xff pattern:$0x73625140]
  %v87 = vld.sshfl [vmem:[#allocation1 + $0x18] sm:$0xff pattern:$0x73625140]
  %v88 = vld.sshfl [vmem:[#allocation1 + $0x20] sm:$0xff pattern:$0x73625140]
  %v89 = vld.sshfl [vmem:[#allocation1 + $0x28] sm:$0xff pattern:$0x73625140]
  %v90 = vld.sshfl [vmem:[#allocation1 + $0x30] sm:$0xff pattern:$0x73625140]
  %v91 = vld.sshfl [vmem:[#allocation1 + $0x38] sm:$0xff pattern:$0x73625140]
  %92 = vst [vmem:[#allocation1] ss:$4 sm:$0xff] %v38
  %93 = vst [vmem:[%s82] ss:$4 sm:$0xff] %v39
  %v94 = vld.sshfl [vmem:[#allocation1] sm:$0xff pattern:$0x73625140]
  %v95 = vld.sshfl [vmem:[#allocation1 + $0x8] sm:$0xff pattern:$0x73625140]
  %v96 = vld.sshfl [vmem:[#allocation1 + $0x10] sm:$0xff pattern:$0x73625140]
  %v97 = vld.sshfl [vmem:[#allocation1 + $0x18] sm:$0xff pattern:$0x73625140]
  %v98 = vld.sshfl [vmem:[#allocation1 + $0x20] sm:$0xff pattern:$0x73625140]
  %v99 = vld.sshfl [vmem:[#allocation1 + $0x28] sm:$0xff pattern:$0x73625140]
  %v100 = vld.sshfl [vmem:[#allocation1 + $0x30] sm:$0xff pattern:$0x73625140]
  %v101 = vld.sshfl [vmem:[#allocation1 + $0x38] sm:$0xff pattern:$0x73625140]
  %v102 = vshrl.u32 %v84, 16
  %v104 = vrot.slane %v102, 6
  %v105 = vshll.u32 %v84, 16
  %v107 = vrot.slane %v105, 7
  %v108 = vor.u32 %v104, %v107
  %v109 = vshrl.u32 %v85, 16
  %v111 = vrot.slane %v109, 6
  %v112 = vshll.u32 %v85, 16
  %v114 = vrot.slane %v112, 7
  %v115 = vor.u32 %v111, %v114
  %v116 = vshrl.u32 %v86, 16
  %v118 = vrot.slane %v116, 6
  %v119 = vshll.u32 %v86, 16
  %v121 = vrot.slane %v119, 7
  %v122 = vor.u32 %v118, %v121
  %v123 = vshrl.u32 %v87, 16
  %v125 = vrot.slane %v123, 6
  %v126 = vshll.u32 %v87, 16
  %v128 = vrot.slane %v126, 7
  %v129 = vor.u32 %v125, %v128
  %v130 = vshrl.u32 %v88, 16
  %v132 = vrot.slane %v130, 6
  %v133 = vshll.u32 %v88, 16
  %v135 = vrot.slane %v133, 7
  %v136 = vor.u32 %v132, %v135
  %v137 = vshrl.u32 %v89, 16
  %v139 = vrot.slane %v137, 6
  %v140 = vshll.u32 %v89, 16
  %v142 = vrot.slane %v140, 7
  %v143 = vor.u32 %v139, %v142
  %v144 = vshrl.u32 %v90, 16
  %v146 = vrot.slane %v144, 6
  %v147 = vshll.u32 %v90, 16
  %v149 = vrot.slane %v147, 7
  %v150 = vor.u32 %v146, %v149
  %v151 = vshrl.u32 %v91, 16
  %v153 = vrot.slane %v151, 6
  %v154 = vshll.u32 %v91, 16
  %v156 = vrot.slane %v154, 7
  %v157 = vor.u32 %v153, %v156
  %v158 = vshrl.u32 %v94, 16
  %v160 = vrot.slane %v158, 6
  %v161 = vshll.u32 %v94, 16
  %v163 = vrot.slane %v161, 7
  %v164 = vor.u32 %v160, %v163
  %v165 = vshrl.u32 %v95, 16
  %v167 = vrot.slane %v165, 6
  %v168 = vshll.u32 %v95, 16
  %v170 = vrot.slane %v168, 7
  %v171 = vor.u32 %v167, %v170
  %v172 = vshrl.u32 %v96, 16
  %v174 = vrot.slane %v172, 6
  %v175 = vshll.u32 %v96, 16
  %v177 = vrot.slane %v175, 7
  %v178 = vor.u32 %v174, %v177
  %v179 = vshrl.u32 %v97, 16
  %v181 = vrot.slane %v179, 6
  %v182 = vshll.u32 %v97, 16
  %v184 = vrot.slane %v182, 7
  %v185 = vor.u32 %v181, %v184
  %v186 = vshrl.u32 %v98, 16
  %v188 = vrot.slane %v186, 6
  %v189 = vshll.u32 %v98, 16
  %v191 = vrot.slane %v189, 7
  %v192 = vor.u32 %v188, %v191
  %v193 = vshrl.u32 %v99, 16
  %v195 = vrot.slane %v193, 6
  %v196 = vshll.u32 %v99, 16
  %v198 = vrot.slane %v196, 7
  %v199 = vor.u32 %v195, %v198
  %v200 = vshrl.u32 %v100, 16
  %v202 = vrot.slane %v200, 6
  %v203 = vshll.u32 %v100, 16
  %v205 = vrot.slane %v203, 7
  %v206 = vor.u32 %v202, %v205
  %v207 = vshrl.u32 %v101, 16
  %v209 = vrot.slane %v207, 6
  %v210 = vshll.u32 %v101, 16
  %v212 = vrot.slane %v210, 7
  %v213 = vor.u32 %v209, %v212
  %214 = vrot.lane.b32.xlu0 %v108, 126
  %v215 = vpop.permute.xlu0 %214
  %216 = vrot.lane.b32.xlu0 %v115, 126
  %v217 = vpop.permute.xlu0 %216
  %218 = vrot.lane.b32.xlu0 %v122, 126
  %v219 = vpop.permute.xlu0 %218
  %220 = vrot.lane.b32.xlu0 %v129, 126
  %v221 = vpop.permute.xlu0 %220
  %222 = vrot.lane.b32.xlu0 %v136, 126
  %v223 = vpop.permute.xlu0 %222
  %224 = vrot.lane.b32.xlu0 %v143, 126
  %v225 = vpop.permute.xlu0 %224
  %226 = vrot.lane.b32.xlu0 %v150, 126
  %v227 = vpop.permute.xlu0 %226
  %228 = vrot.lane.b32.xlu0 %v157, 126
  %v229 = vpop.permute.xlu0 %228
  %230 = vrot.lane.b32.xlu0 %v164, 126
  %v231 = vpop.permute.xlu0 %230
  %232 = vrot.lane.b32.xlu0 %v171, 126
  %v233 = vpop.permute.xlu0 %232
  %234 = vrot.lane.b32.xlu0 %v178, 126
  %v235 = vpop.permute.xlu0 %234
  %236 = vrot.lane.b32.xlu0 %v185, 126
  %v237 = vpop.permute.xlu0 %236
  %238 = vrot.lane.b32.xlu0 %v192, 126
  %v239 = vpop.permute.xlu0 %238
  %240 = vrot.lane.b32.xlu0 %v199, 126
  %v241 = vpop.permute.xlu0 %240
  %242 = vrot.lane.b32.xlu0 %v206, 126
  %v243 = vpop.permute.xlu0 %242
  %244 = vrot.lane.b32.xlu0 %v213, 126
  %v245 = vpop.permute.xlu0 %244
  %vm246 = vcmask 1031168
  %v247 = vsel %vm246, %v215, %v217
  %v248 = vsel %vm246, %v217, %v219
  %v249 = vsel %vm246, %v219, %v221
  %v250 = vsel %vm246, %v221, %v223
  %v251 = vsel %vm246, %v223, %v225
  %v252 = vsel %vm246, %v225, %v227
  %v253 = vsel %vm246, %v227, %v229
  %v254 = vsel %vm246, %v229, %v231
  %v255 = vsel %vm246, %v231, %v233
  %v256 = vsel %vm246, %v233, %v235
  %v257 = vsel %vm246, %v235, %v237
  %v258 = vsel %vm246, %v237, %v239
  %v259 = vsel %vm246, %v239, %v241
  %v260 = vsel %vm246, %v241, %v243
  %v261 = vsel %vm246, %v243, %v245
  %278 = vst [vmem:[#allocation1] ss:$4 sm:$0xff] %v36
  %s279 = scalar_lea.vmem [#allocation1], 32
  %280 = vst [vmem:[%s279] ss:$4 sm:$0xff] %v37
  %v281 = vld.sshfl [vmem:[#allocation1] sm:$0xff pattern:$0x73625140]
  %v283 = vld.sshfl [vmem:[#allocation1 + $0x8] sm:$0xff pattern:$0x73625140]
  %v285 = vld.sshfl [vmem:[#allocation1 + $0x10] sm:$0xff pattern:$0x73625140]
  %v287 = vld.sshfl [vmem:[#allocation1 + $0x18] sm:$0xff pattern:$0x73625140]
  %v289 = vld.sshfl [vmem:[#allocation1 + $0x20] sm:$0xff pattern:$0x73625140]
  %v291 = vld.sshfl [vmem:[#allocation1 + $0x28] sm:$0xff pattern:$0x73625140]
  %v293 = vld.sshfl [vmem:[#allocation1 + $0x30] sm:$0xff pattern:$0x73625140]
  %v295 = vld.sshfl [vmem:[#allocation1 + $0x38] sm:$0xff pattern:$0x73625140]
  %297 = vst [vmem:[#allocation1] ss:$4 sm:$0xff] %v38
  %298 = vst [vmem:[%s279] ss:$4 sm:$0xff] %v39
  %v299 = vld.sshfl [vmem:[#allocation1] sm:$0xff pattern:$0x73625140]
  %v301 = vld.sshfl [vmem:[#allocation1 + $0x8] sm:$0xff pattern:$0x73625140]
  %v303 = vld.sshfl [vmem:[#allocation1 + $0x10] sm:$0xff pattern:$0x73625140]
  %v305 = vld.sshfl [vmem:[#allocation1 + $0x18] sm:$0xff pattern:$0x73625140]
  %v307 = vld.sshfl [vmem:[#allocation1 + $0x20] sm:$0xff pattern:$0x73625140]
  %v309 = vld.sshfl [vmem:[#allocation1 + $0x28] sm:$0xff pattern:$0x73625140]
  %v311 = vld.sshfl [vmem:[#allocation1 + $0x30] sm:$0xff pattern:$0x73625140]
  %v313 = vld.sshfl [vmem:[#allocation1 + $0x38] sm:$0xff pattern:$0x73625140]
  %v315 = vrot.slane %v281, 5
  %v316 = vrot.slane %v283, 5
  %v317 = vrot.slane %v285, 5
  %v318 = vrot.slane %v287, 5
  %v319 = vrot.slane %v289, 5
  %v320 = vrot.slane %v291, 5
  %v321 = vrot.slane %v293, 5
  %v322 = vrot.slane %v295, 5
  %v323 = vrot.slane %v299, 5
  %v324 = vrot.slane %v301, 5
  %v325 = vrot.slane %v303, 5
  %v326 = vrot.slane %v305, 5
  %v327 = vrot.slane %v307, 5
  %v328 = vrot.slane %v309, 5
  %v329 = vrot.slane %v311, 5
  %v330 = vrot.slane %v313, 5
  %331 = vrot.lane.b32.xlu0 %v315, 124
  %v332 = vpop.permute.xlu0 %331
  %333 = vrot.lane.b32.xlu0 %v316, 124
  %v334 = vpop.permute.xlu0 %333
  %335 = vrot.lane.b32.xlu0 %v317, 124
  %v336 = vpop.permute.xlu0 %335
  %337 = vrot.lane.b32.xlu0 %v318, 124
  %v338 = vpop.permute.xlu0 %337
  %339 = vrot.lane.b32.xlu0 %v319, 124
  %v340 = vpop.permute.xlu0 %339
  %341 = vrot.lane.b32.xlu0 %v320, 124
  %v342 = vpop.permute.xlu0 %341
  %343 = vrot.lane.b32.xlu0 %v321, 124
  %v344 = vpop.permute.xlu0 %343
  %345 = vrot.lane.b32.xlu0 %v322, 124
  %v346 = vpop.permute.xlu0 %345
  %347 = vrot.lane.b32.xlu0 %v323, 124
  %v348 = vpop.permute.xlu0 %347
  %349 = vrot.lane.b32.xlu0 %v324, 124
  %v350 = vpop.permute.xlu0 %349
  %351 = vrot.lane.b32.xlu0 %v325, 124
  %v352 = vpop.permute.xlu0 %351
  %353 = vrot.lane.b32.xlu0 %v326, 124
  %v354 = vpop.permute.xlu0 %353
  %355 = vrot.lane.b32.xlu0 %v327, 124
  %v356 = vpop.permute.xlu0 %355
  %357 = vrot.lane.b32.xlu0 %v328, 124
  %v358 = vpop.permute.xlu0 %357
  %359 = vrot.lane.b32.xlu0 %v329, 124
  %v360 = vpop.permute.xlu0 %359
  %361 = vrot.lane.b32.xlu0 %v330, 124
  %v362 = vpop.permute.xlu0 %361
  %vm363 = vcmask 1014784
  %v364 = vsel %vm363, %v332, %v334
  %v365 = vsel %vm363, %v334, %v336
  %v366 = vsel %vm363, %v336, %v338
  %v367 = vsel %vm363, %v338, %v340
  %v368 = vsel %vm363, %v340, %v342
  %v369 = vsel %vm363, %v342, %v344
  %v370 = vsel %vm363, %v344, %v346
  %v371 = vsel %vm363, %v346, %v348
  %v372 = vsel %vm363, %v348, %v350
  %v373 = vsel %vm363, %v350, %v352
  %v374 = vsel %vm363, %v352, %v354
  %v375 = vsel %vm363, %v354, %v356
  %v376 = vsel %vm363, %v356, %v358
  %v377 = vsel %vm363, %v358, %v360
  %v378 = vsel %vm363, %v360, %v362
  %379 = vst [vmem:[#allocation1] ss:$4 sm:$0xff] %v36
  %s380 = scalar_lea.vmem [#allocation1], 32
  %381 = vst [vmem:[%s380] ss:$4 sm:$0xff] %v37
  %v382 = vld.sshfl [vmem:[#allocation1] sm:$0xff pattern:$0x73625140]
  %v383 = vld.sshfl [vmem:[#allocation1 + $0x8] sm:$0xff pattern:$0x73625140]
  %v384 = vld.sshfl [vmem:[#allocation1 + $0x10] sm:$0xff pattern:$0x73625140]
  %v385 = vld.sshfl [vmem:[#allocation1 + $0x18] sm:$0xff pattern:$0x73625140]
  %v386 = vld.sshfl [vmem:[#allocation1 + $0x20] sm:$0xff pattern:$0x73625140]
  %v387 = vld.sshfl [vmem:[#allocation1 + $0x28] sm:$0xff pattern:$0x73625140]
  %v388 = vld.sshfl [vmem:[#allocation1 + $0x30] sm:$0xff pattern:$0x73625140]
  %v389 = vld.sshfl [vmem:[#allocation1 + $0x38] sm:$0xff pattern:$0x73625140]
  %390 = vst [vmem:[#allocation1] ss:$4 sm:$0xff] %v38
  %391 = vst [vmem:[%s380] ss:$4 sm:$0xff] %v39
  %v392 = vld.sshfl [vmem:[#allocation1] sm:$0xff pattern:$0x73625140]
  %v393 = vld.sshfl [vmem:[#allocation1 + $0x8] sm:$0xff pattern:$0x73625140]
  %v394 = vld.sshfl [vmem:[#allocation1 + $0x10] sm:$0xff pattern:$0x73625140]
  %v395 = vld.sshfl [vmem:[#allocation1 + $0x18] sm:$0xff pattern:$0x73625140]
  %v396 = vld.sshfl [vmem:[#allocation1 + $0x20] sm:$0xff pattern:$0x73625140]
  %v397 = vld.sshfl [vmem:[#allocation1 + $0x28] sm:$0xff pattern:$0x73625140]
  %v398 = vld.sshfl [vmem:[#allocation1 + $0x30] sm:$0xff pattern:$0x73625140]
  %v399 = vld.sshfl [vmem:[#allocation1 + $0x38] sm:$0xff pattern:$0x73625140]
  %v400 = vshrl.u32 %v382, 16
  %v402 = vrot.slane %v400, 3
  %v403 = vshll.u32 %v382, 16
  %v405 = vrot.slane %v403, 4
  %v406 = vor.u32 %v402, %v405
  %v407 = vshrl.u32 %v383, 16
  %v409 = vrot.slane %v407, 3
  %v410 = vshll.u32 %v383, 16
  %v412 = vrot.slane %v410, 4
  %v413 = vor.u32 %v409, %v412
  %v414 = vshrl.u32 %v384, 16
  %v416 = vrot.slane %v414, 3
  %v417 = vshll.u32 %v384, 16
  %v419 = vrot.slane %v417, 4
  %v420 = vor.u32 %v416, %v419
  %v421 = vshrl.u32 %v385, 16
  %v423 = vrot.slane %v421, 3
  %v424 = vshll.u32 %v385, 16
  %v426 = vrot.slane %v424, 4
  %v427 = vor.u32 %v423, %v426
  %v428 = vshrl.u32 %v386, 16
  %v430 = vrot.slane %v428, 3
  %v431 = vshll.u32 %v386, 16
  %v433 = vrot.slane %v431, 4
  %v434 = vor.u32 %v430, %v433
  %v435 = vshrl.u32 %v387, 16
  %v437 = vrot.slane %v435, 3
  %v438 = vshll.u32 %v387, 16
  %v440 = vrot.slane %v438, 4
  %v441 = vor.u32 %v437, %v440
  %v442 = vshrl.u32 %v388, 16
  %v444 = vrot.slane %v442, 3
  %v445 = vshll.u32 %v388, 16
  %v447 = vrot.slane %v445, 4
  %v448 = vor.u32 %v444, %v447
  %v449 = vshrl.u32 %v389, 16
  %v451 = vrot.slane %v449, 3
  %v452 = vshll.u32 %v389, 16
  %v454 = vrot.slane %v452, 4
  %v455 = vor.u32 %v451, %v454
  %v456 = vshrl.u32 %v392, 16
  %v458 = vrot.slane %v456, 3
  %v459 = vshll.u32 %v392, 16
  %v461 = vrot.slane %v459, 4
  %v462 = vor.u32 %v458, %v461
  %v463 = vshrl.u32 %v393, 16
  %v465 = vrot.slane %v463, 3
  %v466 = vshll.u32 %v393, 16
  %v468 = vrot.slane %v466, 4
  %v469 = vor.u32 %v465, %v468
  %v470 = vshrl.u32 %v394, 16
  %v472 = vrot.slane %v470, 3
  %v473 = vshll.u32 %v394, 16
  %v475 = vrot.slane %v473, 4
  %v476 = vor.u32 %v472, %v475
  %v477 = vshrl.u32 %v395, 16
  %v479 = vrot.slane %v477, 3
  %v480 = vshll.u32 %v395, 16
  %v482 = vrot.slane %v480, 4
  %v483 = vor.u32 %v479, %v482
  %v484 = vshrl.u32 %v396, 16
  %v486 = vrot.slane %v484, 3
  %v487 = vshll.u32 %v396, 16
  %v489 = vrot.slane %v487, 4
  %v490 = vor.u32 %v486, %v489
  %v491 = vshrl.u32 %v397, 16
  %v493 = vrot.slane %v491, 3
  %v494 = vshll.u32 %v397, 16
  %v496 = vrot.slane %v494, 4
  %v497 = vor.u32 %v493, %v496
  %v498 = vshrl.u32 %v398, 16
  %v500 = vrot.slane %v498, 3
  %v501 = vshll.u32 %v398, 16
  %v503 = vrot.slane %v501, 4
  %v504 = vor.u32 %v500, %v503
  %v505 = vshrl.u32 %v399, 16
  %v507 = vrot.slane %v505, 3
  %v508 = vshll.u32 %v399, 16
  %v510 = vrot.slane %v508, 4
  %v511 = vor.u32 %v507, %v510
  %512 = vrot.lane.b32.xlu0 %v406, 68
  %v513 = vpop.permute.xlu0 %512
  %514 = vrot.lane.b32.xlu0 %v413, 68
  %v515 = vpop.permute.xlu0 %514
  %516 = vrot.lane.b32.xlu0 %v420, 68
  %v517 = vpop.permute.xlu0 %516
  %518 = vrot.lane.b32.xlu0 %v427, 68
  %v519 = vpop.permute.xlu0 %518
  %520 = vrot.lane.b32.xlu0 %v434, 68
  %v521 = vpop.permute.xlu0 %520
  %522 = vrot.lane.b32.xlu0 %v441, 68
  %v523 = vpop.permute.xlu0 %522
  %524 = vrot.lane.b32.xlu0 %v448, 68
  %v525 = vpop.permute.xlu0 %524
  %526 = vrot.lane.b32.xlu0 %v455, 68
  %v527 = vpop.permute.xlu0 %526
  %528 = vrot.lane.b32.xlu0 %v462, 68
  %v529 = vpop.permute.xlu0 %528
  %530 = vrot.lane.b32.xlu0 %v469, 68
  %v531 = vpop.permute.xlu0 %530
  %532 = vrot.lane.b32.xlu0 %v476, 68
  %v533 = vpop.permute.xlu0 %532
  %534 = vrot.lane.b32.xlu0 %v483, 68
  %v535 = vpop.permute.xlu0 %534
  %536 = vrot.lane.b32.xlu0 %v490, 68
  %v537 = vpop.permute.xlu0 %536
  %538 = vrot.lane.b32.xlu0 %v497, 68
  %v539 = vpop.permute.xlu0 %538
  %540 = vrot.lane.b32.xlu0 %v504, 68
  %v541 = vpop.permute.xlu0 %540
  %542 = vrot.lane.b32.xlu0 %v511, 68
  %v543 = vpop.permute.xlu0 %542
  %vm544 = vcmask 556032
  %v545 = vsel %vm544, %v513, %v515
  %v546 = vsel %vm544, %v515, %v517
  %v547 = vsel %vm544, %v517, %v519
  %v548 = vsel %vm544, %v519, %v521
  %v549 = vsel %vm544, %v521, %v523
  %v550 = vsel %vm544, %v523, %v525
  %v551 = vsel %vm544, %v525, %v527
  %v552 = vsel %vm544, %v527, %v529
  %v553 = vsel %vm544, %v529, %v531
  %v554 = vsel %vm544, %v531, %v533
  %v555 = vsel %vm544, %v533, %v535
  %v556 = vsel %vm544, %v535, %v537
  %v557 = vsel %vm544, %v537, %v539
  %v558 = vsel %vm544, %v539, %v541
  %v559 = vsel %vm544, %v541, %v543
  %s576 = scalar_lea.vmem [#allocation1], 3
  %577 = vst [vmem:[%s576] ss:$4 sm:$0xff] %v36
  %s578 = scalar_lea.vmem [#allocation1], 35
  %579 = vst [vmem:[%s578] ss:$4 sm:$0xff] %v37
  %v580 = vld.sshfl [vmem:[#allocation1] sm:$0xff pattern:$0x73625140]
  %v582 = vld.sshfl [vmem:[#allocation1 + $0x8] sm:$0xff pattern:$0x73625140]
  %v584 = vld.sshfl [vmem:[#allocation1 + $0x10] sm:$0xff pattern:$0x73625140]
  %v586 = vld.sshfl [vmem:[#allocation1 + $0x18] sm:$0xff pattern:$0x73625140]
  %v588 = vld.sshfl [vmem:[#allocation1 + $0x20] sm:$0xff pattern:$0x73625140]
  %v590 = vld.sshfl [vmem:[#allocation1 + $0x28] sm:$0xff pattern:$0x73625140]
  %v592 = vld.sshfl [vmem:[#allocation1 + $0x30] sm:$0xff pattern:$0x73625140]
  %v594 = vld.sshfl [vmem:[#allocation1 + $0x38] sm:$0xff pattern:$0x73625140]
  %596 = vst [vmem:[%s576] ss:$4 sm:$0xff] %v38
  %597 = vst [vmem:[%s578] ss:$4 sm:$0xff] %v39
  %v598 = vld.sshfl [vmem:[#allocation1] sm:$0xff pattern:$0x73625140]
  %v600 = vld.sshfl [vmem:[#allocation1 + $0x8] sm:$0xff pattern:$0x73625140]
  %v602 = vld.sshfl [vmem:[#allocation1 + $0x10] sm:$0xff pattern:$0x73625140]
  %v604 = vld.sshfl [vmem:[#allocation1 + $0x18] sm:$0xff pattern:$0x73625140]
  %v606 = vld.sshfl [vmem:[#allocation1 + $0x20] sm:$0xff pattern:$0x73625140]
  %v608 = vld.sshfl [vmem:[#allocation1 + $0x28] sm:$0xff pattern:$0x73625140]
  %v610 = vld.sshfl [vmem:[#allocation1 + $0x30] sm:$0xff pattern:$0x73625140]
  %v612 = vld.sshfl [vmem:[#allocation1 + $0x38] sm:$0xff pattern:$0x73625140]
  %614 = vrot.lane.b32.xlu0 %v580, 66
  %v615 = vpop.permute.xlu0 %614
  %616 = vrot.lane.b32.xlu0 %v582, 66
  %v617 = vpop.permute.xlu0 %616
  %618 = vrot.lane.b32.xlu0 %v584, 66
  %v619 = vpop.permute.xlu0 %618
  %620 = vrot.lane.b32.xlu0 %v586, 66
  %v621 = vpop.permute.xlu0 %620
  %622 = vrot.lane.b32.xlu0 %v588, 66
  %v623 = vpop.permute.xlu0 %622
  %624 = vrot.lane.b32.xlu0 %v590, 66
  %v625 = vpop.permute.xlu0 %624
  %626 = vrot.lane.b32.xlu0 %v592, 66
  %v627 = vpop.permute.xlu0 %626
  %628 = vrot.lane.b32.xlu0 %v594, 66
  %v629 = vpop.permute.xlu0 %628
  %630 = vrot.lane.b32.xlu0 %v598, 66
  %v631 = vpop.permute.xlu0 %630
  %632 = vrot.lane.b32.xlu0 %v600, 66
  %v633 = vpop.permute.xlu0 %632
  %634 = vrot.lane.b32.xlu0 %v602, 66
  %v635 = vpop.permute.xlu0 %634
  %636 = vrot.lane.b32.xlu0 %v604, 66
  %v637 = vpop.permute.xlu0 %636
  %638 = vrot.lane.b32.xlu0 %v606, 66
  %v639 = vpop.permute.xlu0 %638
  %640 = vrot.lane.b32.xlu0 %v608, 66
  %v641 = vpop.permute.xlu0 %640
  %642 = vrot.lane.b32.xlu0 %v610, 66
  %v643 = vpop.permute.xlu0 %642
  %644 = vrot.lane.b32.xlu0 %v612, 66
  %v645 = vpop.permute.xlu0 %644
  %vm646 = vcmask 539648
  %v647 = vsel %vm646, %v615, %v617
  %v648 = vsel %vm646, %v617, %v619
  %v649 = vsel %vm646, %v619, %v621
  %v650 = vsel %vm646, %v621, %v623
  %v651 = vsel %vm646, %v623, %v625
  %v652 = vsel %vm646, %v625, %v627
  %v653 = vsel %vm646, %v627, %v629
  %v654 = vsel %vm646, %v629, %v631
  %v655 = vsel %vm646, %v631, %v633
  %v656 = vsel %vm646, %v633, %v635
  %v657 = vsel %vm646, %v635, %v637
  %v658 = vsel %vm646, %v637, %v639
  %v659 = vsel %vm646, %v639, %v641
  %v660 = vsel %vm646, %v641, %v643
  %v661 = vsel %vm646, %v643, %v645
  %662 = vst [vmem:[#allocation1] ss:$4 sm:$0xff] %v36
  %s663 = scalar_lea.vmem [#allocation1], 32
  %664 = vst [vmem:[%s663] ss:$4 sm:$0xff] %v37
  %v665 = vld.sshfl [vmem:[#allocation1] sm:$0xff pattern:$0x73625140]
  %v666 = vld.sshfl [vmem:[#allocation1 + $0x8] sm:$0xff pattern:$0x73625140]
  %v667 = vld.sshfl [vmem:[#allocation1 + $0x10] sm:$0xff pattern:$0x73625140]
  %v668 = vld.sshfl [vmem:[#allocation1 + $0x18] sm:$0xff pattern:$0x73625140]
  %v669 = vld.sshfl [vmem:[#allocation1 + $0x20] sm:$0xff pattern:$0x73625140]
  %v670 = vld.sshfl [vmem:[#allocation1 + $0x28] sm:$0xff pattern:$0x73625140]
  %v671 = vld.sshfl [vmem:[#allocation1 + $0x30] sm:$0xff pattern:$0x73625140]
  %v672 = vld.sshfl [vmem:[#allocation1 + $0x38] sm:$0xff pattern:$0x73625140]
  %673 = vst [vmem:[#allocation1] ss:$4 sm:$0xff] %v38
  %674 = vst [vmem:[%s663] ss:$4 sm:$0xff] %v39
  %v675 = vld.sshfl [vmem:[#allocation1] sm:$0xff pattern:$0x73625140]
  %v676 = vld.sshfl [vmem:[#allocation1 + $0x8] sm:$0xff pattern:$0x73625140]
  %v677 = vld.sshfl [vmem:[#allocation1 + $0x10] sm:$0xff pattern:$0x73625140]
  %v678 = vld.sshfl [vmem:[#allocation1 + $0x18] sm:$0xff pattern:$0x73625140]
  %v679 = vld.sshfl [vmem:[#allocation1 + $0x20] sm:$0xff pattern:$0x73625140]
  %v680 = vld.sshfl [vmem:[#allocation1 + $0x28] sm:$0xff pattern:$0x73625140]
  %v681 = vld.sshfl [vmem:[#allocation1 + $0x30] sm:$0xff pattern:$0x73625140]
  %v682 = vld.sshfl [vmem:[#allocation1 + $0x38] sm:$0xff pattern:$0x73625140]
  %v683 = vshll.u32 %v665, 16
  %v685 = vrot.slane %v683, 1
  %v686 = vshll.u32 %v666, 16
  %v688 = vrot.slane %v686, 1
  %v689 = vshll.u32 %v667, 16
  %v691 = vrot.slane %v689, 1
  %v692 = vshll.u32 %v668, 16
  %v694 = vrot.slane %v692, 1
  %v695 = vshll.u32 %v669, 16
  %v697 = vrot.slane %v695, 1
  %v698 = vshll.u32 %v670, 16
  %v700 = vrot.slane %v698, 1
  %v701 = vshll.u32 %v671, 16
  %v703 = vrot.slane %v701, 1
  %v704 = vshll.u32 %v672, 16
  %v706 = vrot.slane %v704, 1
  %v707 = vshll.u32 %v675, 16
  %v709 = vrot.slane %v707, 1
  %v710 = vshll.u32 %v676, 16
  %v712 = vrot.slane %v710, 1
  %v713 = vshll.u32 %v677, 16
  %v715 = vrot.slane %v713, 1
  %v716 = vshll.u32 %v678, 16
  %v718 = vrot.slane %v716, 1
  %v719 = vshll.u32 %v679, 16
  %v721 = vrot.slane %v719, 1
  %v722 = vshll.u32 %v680, 16
  %v724 = vrot.slane %v722, 1
  %v725 = vshll.u32 %v681, 16
  %v727 = vrot.slane %v725, 1
  %v728 = vshll.u32 %v682, 16
  %v730 = vrot.slane %v728, 1
  %v731 = vshrl.u32 %v665, 16
  %v733 = vor.u32 %v731, %v685
  %v734 = vshrl.u32 %v666, 16
  %v736 = vor.u32 %v734, %v688
  %v737 = vshrl.u32 %v667, 16
  %v739 = vor.u32 %v737, %v691
  %v740 = vshrl.u32 %v668, 16
  %v742 = vor.u32 %v740, %v694
  %v743 = vshrl.u32 %v669, 16
  %v745 = vor.u32 %v743, %v697
  %v746 = vshrl.u32 %v670, 16
  %v748 = vor.u32 %v746, %v700
  %v749 = vshrl.u32 %v671, 16
  %v751 = vor.u32 %v749, %v703
  %v752 = vshrl.u32 %v672, 16
  %v754 = vor.u32 %v752, %v706
  %v755 = vshrl.u32 %v675, 16
  %v757 = vor.u32 %v755, %v709
  %v758 = vshrl.u32 %v676, 16
  %v760 = vor.u32 %v758, %v712
  %v761 = vshrl.u32 %v677, 16
  %v763 = vor.u32 %v761, %v715
  %v764 = vshrl.u32 %v678, 16
  %v766 = vor.u32 %v764, %v718
  %v767 = vshrl.u32 %v679, 16
  %v769 = vor.u32 %v767, %v721
  %v770 = vshrl.u32 %v680, 16
  %v772 = vor.u32 %v770, %v724
  %v773 = vshrl.u32 %v681, 16
  %v775 = vor.u32 %v773, %v727
  %v776 = vshrl.u32 %v682, 16
  %v778 = vor.u32 %v776, %v730
  %779 = vrot.lane.b32.xlu0 %v685, 64
  %v780 = vpop.permute.xlu0 %779
  %781 = vrot.lane.b32.xlu0 %v688, 64
  %v782 = vpop.permute.xlu0 %781
  %783 = vrot.lane.b32.xlu0 %v691, 64
  %v784 = vpop.permute.xlu0 %783
  %785 = vrot.lane.b32.xlu0 %v694, 64
  %v786 = vpop.permute.xlu0 %785
  %787 = vrot.lane.b32.xlu0 %v697, 64
  %v788 = vpop.permute.xlu0 %787
  %789 = vrot.lane.b32.xlu0 %v700, 64
  %v790 = vpop.permute.xlu0 %789
  %791 = vrot.lane.b32.xlu0 %v703, 64
  %v792 = vpop.permute.xlu0 %791
  %793 = vrot.lane.b32.xlu0 %v706, 64
  %v794 = vpop.permute.xlu0 %793
  %795 = vrot.lane.b32.xlu0 %v709, 64
  %v796 = vpop.permute.xlu0 %795
  %797 = vrot.lane.b32.xlu0 %v712, 64
  %v798 = vpop.permute.xlu0 %797
  %799 = vrot.lane.b32.xlu0 %v715, 64
  %v800 = vpop.permute.xlu0 %799
  %801 = vrot.lane.b32.xlu0 %v718, 64
  %v802 = vpop.permute.xlu0 %801
  %803 = vrot.lane.b32.xlu0 %v721, 64
  %v804 = vpop.permute.xlu0 %803
  %805 = vrot.lane.b32.xlu0 %v724, 64
  %v806 = vpop.permute.xlu0 %805
  %807 = vrot.lane.b32.xlu0 %v727, 64
  %v808 = vpop.permute.xlu0 %807
  %809 = vrot.lane.b32.xlu0 %v730, 64
  %v810 = vpop.permute.xlu0 %809
  %811 = vrot.lane.b32.xlu0 %v733, 64
  %v812 = vpop.permute.xlu0 %811
  %813 = vrot.lane.b32.xlu0 %v736, 64
  %v814 = vpop.permute.xlu0 %813
  %815 = vrot.lane.b32.xlu0 %v739, 64
  %v816 = vpop.permute.xlu0 %815
  %817 = vrot.lane.b32.xlu0 %v742, 64
  %v818 = vpop.permute.xlu0 %817
  %819 = vrot.lane.b32.xlu0 %v745, 64
  %v820 = vpop.permute.xlu0 %819
  %821 = vrot.lane.b32.xlu0 %v748, 64
  %v822 = vpop.permute.xlu0 %821
  %823 = vrot.lane.b32.xlu0 %v751, 64
  %v824 = vpop.permute.xlu0 %823
  %825 = vrot.lane.b32.xlu0 %v754, 64
  %v826 = vpop.permute.xlu0 %825
  %827 = vrot.lane.b32.xlu0 %v757, 64
  %v828 = vpop.permute.xlu0 %827
  %829 = vrot.lane.b32.xlu0 %v760, 64
  %v830 = vpop.permute.xlu0 %829
  %831 = vrot.lane.b32.xlu0 %v763, 64
  %v832 = vpop.permute.xlu0 %831
  %833 = vrot.lane.b32.xlu0 %v766, 64
  %v834 = vpop.permute.xlu0 %833
  %835 = vrot.lane.b32.xlu0 %v769, 64
  %v836 = vpop.permute.xlu0 %835
  %837 = vrot.lane.b32.xlu0 %v772, 64
  %v838 = vpop.permute.xlu0 %837
  %839 = vrot.lane.b32.xlu0 %v775, 64
  %v840 = vpop.permute.xlu0 %839
  %841 = vrot.lane.b32.xlu0 %v778, 64
  %v842 = vpop.permute.xlu0 %841
  %vm843 = vcmask 523264
  %v844 = vsel %vm843, %v780, %v782
  %v845 = vsel %vm843, %v782, %v784
  %v846 = vsel %vm843, %v784, %v786
  %v847 = vsel %vm843, %v786, %v788
  %v848 = vsel %vm843, %v788, %v790
  %v849 = vsel %vm843, %v790, %v792
  %v850 = vsel %vm843, %v792, %v794
  %v851 = vsel %vm843, %v794, %v796
  %v852 = vsel %vm843, %v796, %v798
  %v853 = vsel %vm843, %v798, %v800
  %v854 = vsel %vm843, %v800, %v802
  %v855 = vsel %vm843, %v802, %v804
  %v856 = vsel %vm843, %v804, %v806
  %v857 = vsel %vm843, %v806, %v808
  %v858 = vsel %vm843, %v808, %v810
  %v859 = vsel %vm843, %v812, %v814
  %v860 = vsel %vm843, %v814, %v816
  %v861 = vsel %vm843, %v816, %v818
  %v862 = vsel %vm843, %v818, %v820
  %v863 = vsel %vm843, %v820, %v822
  %v864 = vsel %vm843, %v822, %v824
  %v865 = vsel %vm843, %v824, %v826
  %v866 = vsel %vm843, %v826, %v828
  %v867 = vsel %vm843, %v828, %v830
  %v868 = vsel %vm843, %v830, %v832
  %v869 = vsel %vm843, %v832, %v834
  %v870 = vsel %vm843, %v834, %v836
  %v871 = vsel %vm843, %v836, %v838
  %v872 = vsel %vm843, %v838, %v840
  %v873 = vsel %vm843, %v840, %v842
  %890 = vst [vmem:[#allocation1] ss:$4 sm:$0xff] %v36
  %s891 = scalar_lea.vmem [#allocation1], 32
  %892 = vst [vmem:[%s891] ss:$4 sm:$0xff] %v37
  %v893 = vld.sshfl [vmem:[#allocation1] sm:$0xff pattern:$0x73625140]
  %v895 = vld.sshfl [vmem:[#allocation1 + $0x8] sm:$0xff pattern:$0x73625140]
  %v897 = vld.sshfl [vmem:[#allocation1 + $0x10] sm:$0xff pattern:$0x73625140]
  %v899 = vld.sshfl [vmem:[#allocation1 + $0x18] sm:$0xff pattern:$0x73625140]
  %v901 = vld.sshfl [vmem:[#allocation1 + $0x20] sm:$0xff pattern:$0x73625140]
  %v903 = vld.sshfl [vmem:[#allocation1 + $0x28] sm:$0xff pattern:$0x73625140]
  %v905 = vld.sshfl [vmem:[#allocation1 + $0x30] sm:$0xff pattern:$0x73625140]
  %v907 = vld.sshfl [vmem:[#allocation1 + $0x38] sm:$0xff pattern:$0x73625140]
  %909 = vst [vmem:[#allocation1] ss:$4 sm:$0xff] %v38
  %910 = vst [vmem:[%s891] ss:$4 sm:$0xff] %v39
  %v911 = vld.sshfl [vmem:[#allocation1] sm:$0xff pattern:$0x73625140]
  %v913 = vld.sshfl [vmem:[#allocation1 + $0x8] sm:$0xff pattern:$0x73625140]
  %v915 = vld.sshfl [vmem:[#allocation1 + $0x10] sm:$0xff pattern:$0x73625140]
  %v917 = vld.sshfl [vmem:[#allocation1 + $0x18] sm:$0xff pattern:$0x73625140]
  %v919 = vld.sshfl [vmem:[#allocation1 + $0x20] sm:$0xff pattern:$0x73625140]
  %v921 = vld.sshfl [vmem:[#allocation1 + $0x28] sm:$0xff pattern:$0x73625140]
  %v923 = vld.sshfl [vmem:[#allocation1 + $0x30] sm:$0xff pattern:$0x73625140]
  %v925 = vld.sshfl [vmem:[#allocation1 + $0x38] sm:$0xff pattern:$0x73625140]
  %v927 = vrot.slane %v893, 7
  %v928 = vrot.slane %v895, 7
  %v929 = vrot.slane %v897, 7
  %v930 = vrot.slane %v899, 7
  %v931 = vrot.slane %v901, 7
  %v932 = vrot.slane %v903, 7
  %v933 = vrot.slane %v905, 7
  %v934 = vrot.slane %v907, 7
  %v935 = vrot.slane %v911, 7
  %v936 = vrot.slane %v913, 7
  %v937 = vrot.slane %v915, 7
  %v938 = vrot.slane %v917, 7
  %v939 = vrot.slane %v919, 7
  %v940 = vrot.slane %v921, 7
  %v941 = vrot.slane %v923, 7
  %v942 = vrot.slane %v925, 7
  %943 = vrot.lane.b32.xlu0 %v927, 8
  %v944 = vpop.permute.xlu0 %943
  %945 = vrot.lane.b32.xlu0 %v928, 8
  %v946 = vpop.permute.xlu0 %945
  %947 = vrot.lane.b32.xlu0 %v929, 8
  %v948 = vpop.permute.xlu0 %947
  %949 = vrot.lane.b32.xlu0 %v930, 8
  %v950 = vpop.permute.xlu0 %949
  %951 = vrot.lane.b32.xlu0 %v931, 8
  %v952 = vpop.permute.xlu0 %951
  %953 = vrot.lane.b32.xlu0 %v932, 8
  %v954 = vpop.permute.xlu0 %953
  %955 = vrot.lane.b32.xlu0 %v933, 8
  %v956 = vpop.permute.xlu0 %955
  %957 = vrot.lane.b32.xlu0 %v934, 8
  %v958 = vpop.permute.xlu0 %957
  %959 = vrot.lane.b32.xlu0 %v935, 8
  %v960 = vpop.permute.xlu0 %959
  %961 = vrot.lane.b32.xlu0 %v936, 8
  %v962 = vpop.permute.xlu0 %961
  %963 = vrot.lane.b32.xlu0 %v937, 8
  %v964 = vpop.permute.xlu0 %963
  %965 = vrot.lane.b32.xlu0 %v938, 8
  %v966 = vpop.permute.xlu0 %965
  %967 = vrot.lane.b32.xlu0 %v939, 8
  %v968 = vpop.permute.xlu0 %967
  %969 = vrot.lane.b32.xlu0 %v940, 8
  %v970 = vpop.permute.xlu0 %969
  %971 = vrot.lane.b32.xlu0 %v941, 8
  %v972 = vpop.permute.xlu0 %971
  %973 = vrot.lane.b32.xlu0 %v942, 8
  %v974 = vpop.permute.xlu0 %973
  %vm975 = vcmask 64512
  %v976 = vsel %vm975, %v944, %v946
  %v977 = vsel %vm975, %v946, %v948
  %v978 = vsel %vm975, %v948, %v950
  %v979 = vsel %vm975, %v950, %v952
  %v980 = vsel %vm975, %v952, %v954
  %v981 = vsel %vm975, %v954, %v956
  %v982 = vsel %vm975, %v956, %v958
  %v983 = vsel %vm975, %v958, %v960
  %v984 = vsel %vm975, %v960, %v962
  %v985 = vsel %vm975, %v962, %v964
  %v986 = vsel %vm975, %v964, %v966
  %v987 = vsel %vm975, %v966, %v968
  %v988 = vsel %vm975, %v968, %v970
  %v989 = vsel %vm975, %v970, %v972
  %v990 = vsel %vm975, %v972, %v974
  %991 = vst [vmem:[#allocation1] ss:$4 sm:$0xff] %v36
  %s992 = scalar_lea.vmem [#allocation1], 32
  %993 = vst [vmem:[%s992] ss:$4 sm:$0xff] %v37
  %v994 = vld.sshfl [vmem:[#allocation1] sm:$0xff pattern:$0x73625140]
  %v995 = vld.sshfl [vmem:[#allocation1 + $0x8] sm:$0xff pattern:$0x73625140]
  %v996 = vld.sshfl [vmem:[#allocation1 + $0x10] sm:$0xff pattern:$0x73625140]
  %v997 = vld.sshfl [vmem:[#allocation1 + $0x18] sm:$0xff pattern:$0x73625140]
  %v998 = vld.sshfl [vmem:[#allocation1 + $0x20] sm:$0xff pattern:$0x73625140]
  %v999 = vld.sshfl [vmem:[#allocation1 + $0x28] sm:$0xff pattern:$0x73625140]
  %v1000 = vld.sshfl [vmem:[#allocation1 + $0x30] sm:$0xff pattern:$0x73625140]
  %v1001 = vld.sshfl [vmem:[#allocation1 + $0x38] sm:$0xff pattern:$0x73625140]
  %1002 = vst [vmem:[#allocation1] ss:$4 sm:$0xff] %v38
  %1003 = vst [vmem:[%s992] ss:$4 sm:$0xff] %v39
  %v1004 = vld.sshfl [vmem:[#allocation1] sm:$0xff pattern:$0x73625140]
  %v1005 = vld.sshfl [vmem:[#allocation1 + $0x8] sm:$0xff pattern:$0x73625140]
  %v1006 = vld.sshfl [vmem:[#allocation1 + $0x10] sm:$0xff pattern:$0x73625140]
  %v1007 = vld.sshfl [vmem:[#allocation1 + $0x18] sm:$0xff pattern:$0x73625140]
  %v1008 = vld.sshfl [vmem:[#allocation1 + $0x20] sm:$0xff pattern:$0x73625140]
  %v1009 = vld.sshfl [vmem:[#allocation1 + $0x28] sm:$0xff pattern:$0x73625140]
  %v1010 = vld.sshfl [vmem:[#allocation1 + $0x30] sm:$0xff pattern:$0x73625140]
  %v1011 = vld.sshfl [vmem:[#allocation1 + $0x38] sm:$0xff pattern:$0x73625140]
  %v1012 = vshrl.u32 %v994, 16
  %v1014 = vrot.slane %v1012, 5
  %v1015 = vshll.u32 %v994, 16
  %v1017 = vrot.slane %v1015, 6
  %v1018 = vor.u32 %v1014, %v1017
  %v1019 = vshrl.u32 %v995, 16
  %v1021 = vrot.slane %v1019, 5
  %v1022 = vshll.u32 %v995, 16
  %v1024 = vrot.slane %v1022, 6
  %v1025 = vor.u32 %v1021, %v1024
  %v1026 = vshrl.u32 %v996, 16
  %v1028 = vrot.slane %v1026, 5
  %v1029 = vshll.u32 %v996, 16
  %v1031 = vrot.slane %v1029, 6
  %v1032 = vor.u32 %v1028, %v1031
  %v1033 = vshrl.u32 %v997, 16
  %v1035 = vrot.slane %v1033, 5
  %v1036 = vshll.u32 %v997, 16
  %v1038 = vrot.slane %v1036, 6
  %v1039 = vor.u32 %v1035, %v1038
  %v1040 = vshrl.u32 %v998, 16
  %v1042 = vrot.slane %v1040, 5
  %v1043 = vshll.u32 %v998, 16
  %v1045 = vrot.slane %v1043, 6
  %v1046 = vor.u32 %v1042, %v1045
  %v1047 = vshrl.u32 %v999, 16
  %v1049 = vrot.slane %v1047, 5
  %v1050 = vshll.u32 %v999, 16
  %v1052 = vrot.slane %v1050, 6
  %v1053 = vor.u32 %v1049, %v1052
  %v1054 = vshrl.u32 %v1000, 16
  %v1056 = vrot.slane %v1054, 5
  %v1057 = vshll.u32 %v1000, 16
  %v1059 = vrot.slane %v1057, 6
  %v1060 = vor.u32 %v1056, %v1059
  %v1061 = vshrl.u32 %v1001, 16
  %v1063 = vrot.slane %v1061, 5
  %v1064 = vshll.u32 %v1001, 16
  %v1066 = vrot.slane %v1064, 6
  %v1067 = vor.u32 %v1063, %v1066
  %v1068 = vshrl.u32 %v1004, 16
  %v1070 = vrot.slane %v1068, 5
  %v1071 = vshll.u32 %v1004, 16
  %v1073 = vrot.slane %v1071, 6
  %v1074 = vor.u32 %v1070, %v1073
  %v1075 = vshrl.u32 %v1005, 16
  %v1077 = vrot.slane %v1075, 5
  %v1078 = vshll.u32 %v1005, 16
  %v1080 = vrot.slane %v1078, 6
  %v1081 = vor.u32 %v1077, %v1080
  %v1082 = vshrl.u32 %v1006, 16
  %v1084 = vrot.slane %v1082, 5
  %v1085 = vshll.u32 %v1006, 16
  %v1087 = vrot.slane %v1085, 6
  %v1088 = vor.u32 %v1084, %v1087
  %v1089 = vshrl.u32 %v1007, 16
  %v1091 = vrot.slane %v1089, 5
  %v1092 = vshll.u32 %v1007, 16
  %v1094 = vrot.slane %v1092, 6
  %v1095 = vor.u32 %v1091, %v1094
  %v1096 = vshrl.u32 %v1008, 16
  %v1098 = vrot.slane %v1096, 5
  %v1099 = vshll.u32 %v1008, 16
  %v1101 = vrot.slane %v1099, 6
  %v1102 = vor.u32 %v1098, %v1101
  %v1103 = vshrl.u32 %v1009, 16
  %v1105 = vrot.slane %v1103, 5
  %v1106 = vshll.u32 %v1009, 16
  %v1108 = vrot.slane %v1106, 6
  %v1109 = vor.u32 %v1105, %v1108
  %v1110 = vshrl.u32 %v1010, 16
  %v1112 = vrot.slane %v1110, 5
  %v1113 = vshll.u32 %v1010, 16
  %v1115 = vrot.slane %v1113, 6
  %v1116 = vor.u32 %v1112, %v1115
  %v1117 = vshrl.u32 %v1011, 16
  %v1119 = vrot.slane %v1117, 5
  %v1120 = vshll.u32 %v1011, 16
  %v1122 = vrot.slane %v1120, 6
  %v1123 = vor.u32 %v1119, %v1122
  %1124 = vrot.lane.b32.xlu0 %v1018, 6
  %v1125 = vpop.permute.xlu0 %1124
  %1126 = vrot.lane.b32.xlu0 %v1025, 6
  %v1127 = vpop.permute.xlu0 %1126
  %1128 = vrot.lane.b32.xlu0 %v1032, 6
  %v1129 = vpop.permute.xlu0 %1128
  %1130 = vrot.lane.b32.xlu0 %v1039, 6
  %v1131 = vpop.permute.xlu0 %1130
  %1132 = vrot.lane.b32.xlu0 %v1046, 6
  %v1133 = vpop.permute.xlu0 %1132
  %1134 = vrot.lane.b32.xlu0 %v1053, 6
  %v1135 = vpop.permute.xlu0 %1134
  %1136 = vrot.lane.b32.xlu0 %v1060, 6
  %v1137 = vpop.permute.xlu0 %1136
  %1138 = vrot.lane.b32.xlu0 %v1067, 6
  %v1139 = vpop.permute.xlu0 %1138
  %1140 = vrot.lane.b32.xlu0 %v1074, 6
  %v1141 = vpop.permute.xlu0 %1140
  %1142 = vrot.lane.b32.xlu0 %v1081, 6
  %v1143 = vpop.permute.xlu0 %1142
  %1144 = vrot.lane.b32.xlu0 %v1088, 6
  %v1145 = vpop.permute.xlu0 %1144
  %1146 = vrot.lane.b32.xlu0 %v1095, 6
  %v1147 = vpop.permute.xlu0 %1146
  %1148 = vrot.lane.b32.xlu0 %v1102, 6
  %v1149 = vpop.permute.xlu0 %1148
  %1150 = vrot.lane.b32.xlu0 %v1109, 6
  %v1151 = vpop.permute.xlu0 %1150
  %1152 = vrot.lane.b32.xlu0 %v1116, 6
  %v1153 = vpop.permute.xlu0 %1152
  %1154 = vrot.lane.b32.xlu0 %v1123, 6
  %v1155 = vpop.permute.xlu0 %1154
  %vm1156 = vcmask 48128
  %v1157 = vsel %vm1156, %v1125, %v1127
  %v1158 = vsel %vm1156, %v1127, %v1129
  %v1159 = vsel %vm1156, %v1129, %v1131
  %v1160 = vsel %vm1156, %v1131, %v1133
  %v1161 = vsel %vm1156, %v1133, %v1135
  %v1162 = vsel %vm1156, %v1135, %v1137
  %v1163 = vsel %vm1156, %v1137, %v1139
  %v1164 = vsel %vm1156, %v1139, %v1141
  %v1165 = vsel %vm1156, %v1141, %v1143
  %v1166 = vsel %vm1156, %v1143, %v1145
  %v1167 = vsel %vm1156, %v1145, %v1147
  %v1168 = vsel %vm1156, %v1147, %v1149
  %v1169 = vsel %vm1156, %v1149, %v1151
  %v1170 = vsel %vm1156, %v1151, %v1153
  %v1171 = vsel %vm1156, %v1153, %v1155
  %s1188 = scalar_lea.vmem [#allocation1], 2
  %1189 = vst [vmem:[%s1188] ss:$4 sm:$0xff] %v36
  %s1190 = scalar_lea.vmem [#allocation1], 34
  %1191 = vst [vmem:[%s1190] ss:$4 sm:$0xff] %v37
  %v1192 = vld.sshfl [vmem:[#allocation1] sm:$0xff pattern:$0x73625140]
  %v1194 = vld.sshfl [vmem:[#allocation1 + $0x8] sm:$0xff pattern:$0x73625140]
  %v1196 = vld.sshfl [vmem:[#allocation1 + $0x10] sm:$0xff pattern:$0x73625140]
  %v1198 = vld.sshfl [vmem:[#allocation1 + $0x18] sm:$0xff pattern:$0x73625140]
  %v1200 = vld.sshfl [vmem:[#allocation1 + $0x20] sm:$0xff pattern:$0x73625140]
  %v1202 = vld.sshfl [vmem:[#allocation1 + $0x28] sm:$0xff pattern:$0x73625140]
  %v1204 = vld.sshfl [vmem:[#allocation1 + $0x30] sm:$0xff pattern:$0x73625140]
  %v1206 = vld.sshfl [vmem:[#allocation1 + $0x38] sm:$0xff pattern:$0x73625140]
  %1208 = vst [vmem:[%s1188] ss:$4 sm:$0xff] %v38
  %1209 = vst [vmem:[%s1190] ss:$4 sm:$0xff] %v39
  %v1210 = vld.sshfl [vmem:[#allocation1] sm:$0xff pattern:$0x73625140]
  %v1212 = vld.sshfl [vmem:[#allocation1 + $0x8] sm:$0xff pattern:$0x73625140]
  %v1214 = vld.sshfl [vmem:[#allocation1 + $0x10] sm:$0xff pattern:$0x73625140]
  %v1216 = vld.sshfl [vmem:[#allocation1 + $0x18] sm:$0xff pattern:$0x73625140]
  %v1218 = vld.sshfl [vmem:[#allocation1 + $0x20] sm:$0xff pattern:$0x73625140]
  %v1220 = vld.sshfl [vmem:[#allocation1 + $0x28] sm:$0xff pattern:$0x73625140]
  %v1222 = vld.sshfl [vmem:[#allocation1 + $0x30] sm:$0xff pattern:$0x73625140]
  %v1224 = vld.sshfl [vmem:[#allocation1 + $0x38] sm:$0xff pattern:$0x73625140]
  %1226 = vrot.lane.b32.xlu0 %v1192, 4
  %v1227 = vpop.permute.xlu0 %1226
  %1228 = vrot.lane.b32.xlu0 %v1194, 4
  %v1229 = vpop.permute.xlu0 %1228
  %1230 = vrot.lane.b32.xlu0 %v1196, 4
  %v1231 = vpop.permute.xlu0 %1230
  %1232 = vrot.lane.b32.xlu0 %v1198, 4
  %v1233 = vpop.permute.xlu0 %1232
  %1234 = vrot.lane.b32.xlu0 %v1200, 4
  %v1235 = vpop.permute.xlu0 %1234
  %1236 = vrot.lane.b32.xlu0 %v1202, 4
  %v1237 = vpop.permute.xlu0 %1236
  %1238 = vrot.lane.b32.xlu0 %v1204, 4
  %v1239 = vpop.permute.xlu0 %1238
  %1240 = vrot.lane.b32.xlu0 %v1206, 4
  %v1241 = vpop.permute.xlu0 %1240
  %1242 = vrot.lane.b32.xlu0 %v1210, 4
  %v1243 = vpop.permute.xlu0 %1242
  %1244 = vrot.lane.b32.xlu0 %v1212, 4
  %v1245 = vpop.permute.xlu0 %1244
  %1246 = vrot.lane.b32.xlu0 %v1214, 4
  %v1247 = vpop.permute.xlu0 %1246
  %1248 = vrot.lane.b32.xlu0 %v1216, 4
  %v1249 = vpop.permute.xlu0 %1248
  %1250 = vrot.lane.b32.xlu0 %v1218, 4
  %v1251 = vpop.permute.xlu0 %1250
  %1252 = vrot.lane.b32.xlu0 %v1220, 4
  %v1253 = vpop.permute.xlu0 %1252
  %1254 = vrot.lane.b32.xlu0 %v1222, 4
  %v1255 = vpop.permute.xlu0 %1254
  %1256 = vrot.lane.b32.xlu0 %v1224, 4
  %v1257 = vpop.permute.xlu0 %1256
  %vm1258 = vcmask 31744
  %v1259 = vsel %vm1258, %v1227, %v1229
  %v1260 = vsel %vm1258, %v1229, %v1231
  %v1261 = vsel %vm1258, %v1231, %v1233
  %v1262 = vsel %vm1258, %v1233, %v1235
  %v1263 = vsel %vm1258, %v1235, %v1237
  %v1264 = vsel %vm1258, %v1237, %v1239
  %v1265 = vsel %vm1258, %v1239, %v1241
  %v1266 = vsel %vm1258, %v1241, %v1243
  %v1267 = vsel %vm1258, %v1243, %v1245
  %v1268 = vsel %vm1258, %v1245, %v1247
  %v1269 = vsel %vm1258, %v1247, %v1249
  %v1270 = vsel %vm1258, %v1249, %v1251
  %v1271 = vsel %vm1258, %v1251, %v1253
  %v1272 = vsel %vm1258, %v1253, %v1255
  %v1273 = vsel %vm1258, %v1255, %v1257
  %vm1274 = vcmask 1041408
  %vm1275 = vsmask.f32 1280
  %vm1276 = vmand %vm1274, %vm1275
  %v1277 = vsel %vm1276, %v45, %v247
  %v1278 = vsel %vm1276, %v46, %v248
  %v1279 = vsel %vm1276, %v47, %v249
  %v1280 = vsel %vm1276, %v48, %v250
  %v1281 = vsel %vm1276, %v49, %v251
  %v1282 = vsel %vm1276, %v50, %v252
  %v1283 = vsel %vm1276, %v51, %v253
  %v1284 = vsel %vm1276, %v52, %v254
  %v1285 = vsel %vm1276, %v57, %v255
  %v1286 = vsel %vm1276, %v58, %v256
  %v1287 = vsel %vm1276, %v59, %v257
  %v1288 = vsel %vm1276, %v60, %v258
  %v1289 = vsel %vm1276, %v61, %v259
  %v1290 = vsel %vm1276, %v62, %v260
  %v1291 = vsel %vm1276, %v63, %v261
  %v1292 = vsel %vm1276, %v64, %v245
  %vm1293 = vcmask 1042432
  %v1296 = vsel %vm1293, %v1277, %v364
  %v1300 = vsel %vm1293, %v1278, %v365
  %v1304 = vsel %vm1293, %v1279, %v366
  %v1308 = vsel %vm1293, %v1280, %v367
  %v1312 = vsel %vm1293, %v1281, %v368
  %v1316 = vsel %vm1293, %v1282, %v369
  %v1320 = vsel %vm1293, %v1283, %v370
  %v1324 = vsel %vm1293, %v1284, %v371
  %v1328 = vsel %vm1293, %v1285, %v372
  %v1332 = vsel %vm1293, %v1286, %v373
  %v1336 = vsel %vm1293, %v1287, %v374
  %v1340 = vsel %vm1293, %v1288, %v375
  %v1344 = vsel %vm1293, %v1289, %v376
  %v1348 = vsel %vm1293, %v1290, %v377
  %v1352 = vsel %vm1293, %v1291, %v378
  %v1356 = vsel %vm1293, %v1292, %v362
  %vm1358 = vcmask 1044480
  %vm1359 = vsmask.f32 4352
  %vm1360 = vmand %vm1358, %vm1359
  %v1361 = vsel %vm1360, %v1296, %v545
  %v1362 = vsel %vm1360, %v1300, %v546
  %v1363 = vsel %vm1360, %v1304, %v547
  %v1364 = vsel %vm1360, %v1308, %v548
  %v1365 = vsel %vm1360, %v1312, %v549
  %v1366 = vsel %vm1360, %v1316, %v550
  %v1367 = vsel %vm1360, %v1320, %v551
  %v1368 = vsel %vm1360, %v1324, %v552
  %v1369 = vsel %vm1360, %v1328, %v553
  %v1370 = vsel %vm1360, %v1332, %v554
  %v1371 = vsel %vm1360, %v1336, %v555
  %v1372 = vsel %vm1360, %v1340, %v556
  %v1373 = vsel %vm1360, %v1344, %v557
  %v1374 = vsel %vm1360, %v1348, %v558
  %v1375 = vsel %vm1360, %v1352, %v559
  %v1376 = vsel %vm1360, %v1356, %v543
  %vm1377 = vcmask 1045504
  %v1380 = vsel %vm1377, %v1361, %v647
  %v1384 = vsel %vm1377, %v1362, %v648
  %v1388 = vsel %vm1377, %v1363, %v649
  %v1392 = vsel %vm1377, %v1364, %v650
  %v1396 = vsel %vm1377, %v1365, %v651
  %v1400 = vsel %vm1377, %v1366, %v652
  %v1404 = vsel %vm1377, %v1367, %v653
  %v1408 = vsel %vm1377, %v1368, %v654
  %v1412 = vsel %vm1377, %v1369, %v655
  %v1416 = vsel %vm1377, %v1370, %v656
  %v1420 = vsel %vm1377, %v1371, %v657
  %v1424 = vsel %vm1377, %v1372, %v658
  %v1428 = vsel %vm1377, %v1373, %v659
  %v1432 = vsel %vm1377, %v1374, %v660
  %v1436 = vsel %vm1377, %v1375, %v661
  %v1440 = vsel %vm1377, %v1376, %v645
  %vm1442 = vcmask 1047552
  %vm1443 = vsmask.f32 7424
  %vm1444 = vmand %vm1442, %vm1443
  %v1445 = vsel %vm1444, %v1380, %v844
  %v1446 = vsel %vm1444, %v1384, %v845
  %v1447 = vsel %vm1444, %v1388, %v846
  %v1448 = vsel %vm1444, %v1392, %v847
  %v1449 = vsel %vm1444, %v1396, %v848
  %v1450 = vsel %vm1444, %v1400, %v849
  %v1451 = vsel %vm1444, %v1404, %v850
  %v1452 = vsel %vm1444, %v1408, %v851
  %v1453 = vsel %vm1444, %v1412, %v852
  %v1454 = vsel %vm1444, %v1416, %v853
  %v1455 = vsel %vm1444, %v1420, %v854
  %v1456 = vsel %vm1444, %v1424, %v855
  %v1457 = vsel %vm1444, %v1428, %v856
  %v1458 = vsel %vm1444, %v1432, %v857
  %v1459 = vsel %vm1444, %v1436, %v858
  %v1460 = vsel %vm1444, %v1440, %v810
  %vm1461 = vcmask 1040384
  %v1464 = vsel %vm1461, %v859, %v976
  %v1468 = vsel %vm1461, %v860, %v977
  %v1472 = vsel %vm1461, %v861, %v978
  %v1476 = vsel %vm1461, %v862, %v979
  %v1480 = vsel %vm1461, %v863, %v980
  %v1484 = vsel %vm1461, %v864, %v981
  %v1488 = vsel %vm1461, %v865, %v982
  %v1492 = vsel %vm1461, %v866, %v983
  %v1496 = vsel %vm1461, %v867, %v984
  %v1500 = vsel %vm1461, %v868, %v985
  %v1504 = vsel %vm1461, %v869, %v986
  %v1508 = vsel %vm1461, %v870, %v987
  %v1512 = vsel %vm1461, %v871, %v988
  %v1516 = vsel %vm1461, %v872, %v989
  %v1520 = vsel %vm1461, %v873, %v990
  %v1524 = vsel %vm1461, %v842, %v974
  %vm1526 = vcmask 1042432
  %vm1527 = vsmask.f32 2304
  %vm1528 = vmand %vm1526, %vm1527
  %v1529 = vsel %vm1528, %v1464, %v1157
  %v1530 = vsel %vm1528, %v1468, %v1158
  %v1531 = vsel %vm1528, %v1472, %v1159
  %v1532 = vsel %vm1528, %v1476, %v1160
  %v1533 = vsel %vm1528, %v1480, %v1161
  %v1534 = vsel %vm1528, %v1484, %v1162
  %v1535 = vsel %vm1528, %v1488, %v1163
  %v1536 = vsel %vm1528, %v1492, %v1164
  %v1537 = vsel %vm1528, %v1496, %v1165
  %v1538 = vsel %vm1528, %v1500, %v1166
  %v1539 = vsel %vm1528, %v1504, %v1167
  %v1540 = vsel %vm1528, %v1508, %v1168
  %v1541 = vsel %vm1528, %v1512, %v1169
  %v1542 = vsel %vm1528, %v1516, %v1170
  %v1543 = vsel %vm1528, %v1520, %v1171
  %v1544 = vsel %vm1528, %v1524, %v1155
  %vm1545 = vcmask 1043456
  %v1548 = vsel %vm1545, %v1529, %v1259
  %v1552 = vsel %vm1545, %v1530, %v1260
  %v1556 = vsel %vm1545, %v1531, %v1261
  %v1560 = vsel %vm1545, %v1532, %v1262
  %v1564 = vsel %vm1545, %v1533, %v1263
  %v1568 = vsel %vm1545, %v1534, %v1264
  %v1572 = vsel %vm1545, %v1535, %v1265
  %v1576 = vsel %vm1545, %v1536, %v1266
  %v1580 = vsel %vm1545, %v1537, %v1267
  %v1584 = vsel %vm1545, %v1538, %v1268
  %v1588 = vsel %vm1545, %v1539, %v1269
  %v1592 = vsel %vm1545, %v1540, %v1270
  %v1596 = vsel %vm1545, %v1541, %v1271
  %v1600 = vsel %vm1545, %v1542, %v1272
  %v1604 = vsel %vm1545, %v1543, %v1273
  %v1608 = vsel %vm1545, %v1544, %v1257
  %vm1610 = vcmask 1045504
  %vm1611 = vsmask.f32 5376
  %vm1612 = vmand %vm1610, %vm1611
  %v1613 = vsel %vm1612, %v1548, 0
  %v1614 = vsel %vm1612, %v1552, 0
  %v1615 = vsel %vm1612, %v1556, 0
  %v1616 = vsel %vm1612, %v1560, 0
  %v1617 = vsel %vm1612, %v1564, 0
  %v1618 = vsel %vm1612, %v1568, 0
  %v1619 = vsel %vm1612, %v1572, 0
  %v1620 = vsel %vm1612, %v1576, 0
  %v1621 = vsel %vm1612, %v1580, 0
  %v1622 = vsel %vm1612, %v1584, 0
  %v1623 = vsel %vm1612, %v1588, 0
  %v1624 = vsel %vm1612, %v1592, 0
  %v1625 = vsel %vm1612, %v1596, 0
  %v1626 = vsel %vm1612, %v1600, 0
  %v1627 = vsel %vm1612, %v1604, 0
  %v1628 = vsel %vm1612, %v1608, 0
  %v1629 = vld [vmem:[%s2] sm:$0xf]
  %v1630 = vld [vmem:[%s2 + $0x4] sm:$0xf]
  %v1633 = vunpack.c.l.b16 %v1629
  %v1634 = vunpack.c.l.b16 %v1630
  %v1635 = vpack.c.b16 %v1634, %v1633
  %1668 = vrot.lane.b32.xlu0 %v1445, 126
  %v1669 = vpop.permute.xlu0 %1668
  %1670 = vrot.lane.b32.xlu0 %v1446, 126
  %v1671 = vpop.permute.xlu0 %1670
  %1672 = vrot.lane.b32.xlu0 %v1447, 126
  %v1673 = vpop.permute.xlu0 %1672
  %1674 = vrot.lane.b32.xlu0 %v1448, 126
  %v1675 = vpop.permute.xlu0 %1674
  %1676 = vrot.lane.b32.xlu0 %v1449, 126
  %v1677 = vpop.permute.xlu0 %1676
  %1678 = vrot.lane.b32.xlu0 %v1450, 126
  %v1679 = vpop.permute.xlu0 %1678
  %1680 = vrot.lane.b32.xlu0 %v1451, 126
  %v1681 = vpop.permute.xlu0 %1680
  %1682 = vrot.lane.b32.xlu0 %v1452, 126
  %v1683 = vpop.permute.xlu0 %1682
  %1684 = vrot.lane.b32.xlu0 %v1453, 126
  %v1685 = vpop.permute.xlu0 %1684
  %1686 = vrot.lane.b32.xlu0 %v1454, 126
  %v1687 = vpop.permute.xlu0 %1686
  %1688 = vrot.lane.b32.xlu0 %v1455, 126
  %v1689 = vpop.permute.xlu0 %1688
  %1690 = vrot.lane.b32.xlu0 %v1456, 126
  %v1691 = vpop.permute.xlu0 %1690
  %1692 = vrot.lane.b32.xlu0 %v1457, 126
  %v1693 = vpop.permute.xlu0 %1692
  %1694 = vrot.lane.b32.xlu0 %v1458, 126
  %v1695 = vpop.permute.xlu0 %1694
  %1696 = vrot.lane.b32.xlu0 %v1459, 126
  %v1697 = vpop.permute.xlu0 %1696
  %1698 = vrot.lane.b32.xlu0 %v1460, 126
  %v1699 = vpop.permute.xlu0 %1698
  %1700 = vrot.lane.b32.xlu0 %v1613, 126
  %v1701 = vpop.permute.xlu0 %1700
  %1702 = vrot.lane.b32.xlu0 %v1614, 126
  %v1703 = vpop.permute.xlu0 %1702
  %1704 = vrot.lane.b32.xlu0 %v1615, 126
  %v1705 = vpop.permute.xlu0 %1704
  %1706 = vrot.lane.b32.xlu0 %v1616, 126
  %v1707 = vpop.permute.xlu0 %1706
  %1708 = vrot.lane.b32.xlu0 %v1617, 126
  %v1709 = vpop.permute.xlu0 %1708
  %1710 = vrot.lane.b32.xlu0 %v1618, 126
  %v1711 = vpop.permute.xlu0 %1710
  %1712 = vrot.lane.b32.xlu0 %v1619, 126
  %v1713 = vpop.permute.xlu0 %1712
  %1714 = vrot.lane.b32.xlu0 %v1620, 126
  %v1715 = vpop.permute.xlu0 %1714
  %1716 = vrot.lane.b32.xlu0 %v1621, 126
  %v1717 = vpop.permute.xlu0 %1716
  %1718 = vrot.lane.b32.xlu0 %v1622, 126
  %v1719 = vpop.permute.xlu0 %1718
  %1720 = vrot.lane.b32.xlu0 %v1623, 126
  %v1721 = vpop.permute.xlu0 %1720
  %1722 = vrot.lane.b32.xlu0 %v1624, 126
  %v1723 = vpop.permute.xlu0 %1722
  %1724 = vrot.lane.b32.xlu0 %v1625, 126
  %v1725 = vpop.permute.xlu0 %1724
  %1726 = vrot.lane.b32.xlu0 %v1626, 126
  %v1727 = vpop.permute.xlu0 %1726
  %1728 = vrot.lane.b32.xlu0 %v1627, 126
  %v1729 = vpop.permute.xlu0 %1728
  %1730 = vrot.lane.b32.xlu0 %v1628, 126
  %v1731 = vpop.permute.xlu0 %1730
  %v1732 = vsel %vm246, %v1669, %v1671
  %v1733 = vsel %vm246, %v1671, %v1673
  %v1734 = vsel %vm246, %v1673, %v1675
  %v1735 = vsel %vm246, %v1675, %v1677
  %v1736 = vsel %vm246, %v1677, %v1679
  %v1737 = vsel %vm246, %v1679, %v1681
  %v1738 = vsel %vm246, %v1681, %v1683
  %v1739 = vsel %vm246, %v1683, %v1685
  %v1740 = vsel %vm246, %v1685, %v1687
  %v1741 = vsel %vm246, %v1687, %v1689
  %v1742 = vsel %vm246, %v1689, %v1691
  %v1743 = vsel %vm246, %v1691, %v1693
  %v1744 = vsel %vm246, %v1693, %v1695
  %v1745 = vsel %vm246, %v1695, %v1697
  %v1746 = vsel %vm246, %v1697, %v1699
  %v1747 = vsel %vm246, %v1701, %v1703
  %v1748 = vsel %vm246, %v1703, %v1705
  %v1749 = vsel %vm246, %v1705, %v1707
  %v1750 = vsel %vm246, %v1707, %v1709
  %v1751 = vsel %vm246, %v1709, %v1711
  %v1752 = vsel %vm246, %v1711, %v1713
  %v1753 = vsel %vm246, %v1713, %v1715
  %v1754 = vsel %vm246, %v1715, %v1717
  %v1755 = vsel %vm246, %v1717, %v1719
  %v1756 = vsel %vm246, %v1719, %v1721
  %v1757 = vsel %vm246, %v1721, %v1723
  %v1758 = vsel %vm246, %v1723, %v1725
  %v1759 = vsel %vm246, %v1725, %v1727
  %v1760 = vsel %vm246, %v1727, %v1729
  %v1761 = vsel %vm246, %v1729, %v1731
  %vm1792 = vcmask 261120
  %v1794 = vsel %vm1792, %v1635, 0
  %1796 = vmatpush.bf16.msra.mxu0 0
  %1797 = vmatpush.bf16.msra.mxu0 0
  %1798 = vmatpush.bf16.msra.mxu0 0
  %1799 = vmatpush.bf16.msra.mxu0 0
  %1800 = vmatpush.bf16.msra.mxu0 0
  %1801 = vmatpush.bf16.msra.mxu0 0
  %1802 = vmatpush.bf16.msra.mxu0 %v1747
  %1803 = vmatpush.bf16.msra.mxu0 %v1732
  %1804 = vmatmul.bf16.gmra.mxu0 %v1794
  %v1805 = vpop.f32.mrf.mxu0
  %v1806 = vadd.f32 0.0, %v1805
  %v1807 = vpop.f32.mrf.mxu0
  %v1808 = vadd.f32 0.0, %v1807
  %1809 = vdwg.mxu0
  %1810 = vmatpush.bf16.msra.mxu0 0
  %1811 = vmatpush.bf16.msra.mxu0 0
  %1812 = vmatpush.bf16.msra.mxu0 0
  %1813 = vmatpush.bf16.msra.mxu0 0
  %1814 = vmatpush.bf16.msra.mxu0 0
  %1815 = vmatpush.bf16.msra.mxu0 0
  %1816 = vmatpush.bf16.msra.mxu0 %v1748
  %1817 = vmatpush.bf16.msra.mxu0 %v1733
  %1818 = vmatmul.bf16.gmra.mxu0 %v1794
  %v1819 = vpop.f32.mrf.mxu0
  %v1820 = vadd.f32 0.0, %v1819
  %v1821 = vpop.f32.mrf.mxu0
  %v1822 = vadd.f32 0.0, %v1821
  %1823 = vdwg.mxu0
  %1824 = vmatpush.bf16.msra.mxu0 0
  %1825 = vmatpush.bf16.msra.mxu0 0
  %1826 = vmatpush.bf16.msra.mxu0 0
  %1827 = vmatpush.bf16.msra.mxu0 0
  %1828 = vmatpush.bf16.msra.mxu0 0
  %1829 = vmatpush.bf16.msra.mxu0 0
  %1830 = vmatpush.bf16.msra.mxu0 %v1749
  %1831 = vmatpush.bf16.msra.mxu0 %v1734
  %1832 = vmatmul.bf16.gmra.mxu0 %v1794
  %v1833 = vpop.f32.mrf.mxu0
  %v1834 = vadd.f32 0.0, %v1833
  %v1835 = vpop.f32.mrf.mxu0
  %v1836 = vadd.f32 0.0, %v1835
  %1837 = vdwg.mxu0
  %1838 = vmatpush.bf16.msra.mxu0 0
  %1839 = vmatpush.bf16.msra.mxu0 0
  %1840 = vmatpush.bf16.msra.mxu0 0
  %1841 = vmatpush.bf16.msra.mxu0 0
  %1842 = vmatpush.bf16.msra.mxu0 0
  %1843 = vmatpush.bf16.msra.mxu0 0
  %1844 = vmatpush.bf16.msra.mxu0 %v1750
  %1845 = vmatpush.bf16.msra.mxu0 %v1735
  %1846 = vmatmul.bf16.gmra.mxu0 %v1794
  %v1847 = vpop.f32.mrf.mxu0
  %v1848 = vadd.f32 0.0, %v1847
  %v1849 = vpop.f32.mrf.mxu0
  %v1850 = vadd.f32 0.0, %v1849
  %1851 = vdwg.mxu0
  %1852 = vmatpush.bf16.msra.mxu0 0
  %1853 = vmatpush.bf16.msra.mxu0 0
  %1854 = vmatpush.bf16.msra.mxu0 0
  %1855 = vmatpush.bf16.msra.mxu0 0
  %1856 = vmatpush.bf16.msra.mxu0 0
  %1857 = vmatpush.bf16.msra.mxu0 0
  %1858 = vmatpush.bf16.msra.mxu0 %v1751
  %1859 = vmatpush.bf16.msra.mxu0 %v1736
  %1860 = vmatmul.bf16.gmra.mxu0 %v1794
  %v1861 = vpop.f32.mrf.mxu0
  %v1862 = vadd.f32 0.0, %v1861
  %v1863 = vpop.f32.mrf.mxu0
  %v1864 = vadd.f32 0.0, %v1863
  %1865 = vdwg.mxu0
  %1866 = vmatpush.bf16.msra.mxu0 0
  %1867 = vmatpush.bf16.msra.mxu0 0
  %1868 = vmatpush.bf16.msra.mxu0 0
  %1869 = vmatpush.bf16.msra.mxu0 0
  %1870 = vmatpush.bf16.msra.mxu0 0
  %1871 = vmatpush.bf16.msra.mxu0 0
  %1872 = vmatpush.bf16.msra.mxu0 %v1752
  %1873 = vmatpush.bf16.msra.mxu0 %v1737
  %1874 = vmatmul.bf16.gmra.mxu0 %v1794
  %v1875 = vpop.f32.mrf.mxu0
  %v1876 = vadd.f32 0.0, %v1875
  %v1877 = vpop.f32.mrf.mxu0
  %v1878 = vadd.f32 0.0, %v1877
  %1879 = vdwg.mxu0
  %1880 = vmatpush.bf16.msra.mxu0 0
  %1881 = vmatpush.bf16.msra.mxu0 0
  %1882 = vmatpush.bf16.msra.mxu0 0
  %1883 = vmatpush.bf16.msra.mxu0 0
  %1884 = vmatpush.bf16.msra.mxu0 0
  %1885 = vmatpush.bf16.msra.mxu0 0
  %1886 = vmatpush.bf16.msra.mxu0 %v1753
  %1887 = vmatpush.bf16.msra.mxu0 %v1738
  %1888 = vmatmul.bf16.gmra.mxu0 %v1794
  %v1889 = vpop.f32.mrf.mxu0
  %v1890 = vadd.f32 0.0, %v1889
  %v1891 = vpop.f32.mrf.mxu0
  %v1892 = vadd.f32 0.0, %v1891
  %1893 = vdwg.mxu0
  %1894 = vmatpush.bf16.msra.mxu0 0
  %1895 = vmatpush.bf16.msra.mxu0 0
  %1896 = vmatpush.bf16.msra.mxu0 0
  %1897 = vmatpush.bf16.msra.mxu0 0
  %1898 = vmatpush.bf16.msra.mxu0 0
  %1899 = vmatpush.bf16.msra.mxu0 0
  %1900 = vmatpush.bf16.msra.mxu0 %v1754
  %1901 = vmatpush.bf16.msra.mxu0 %v1739
  %1902 = vmatmul.bf16.gmra.mxu0 %v1794
  %v1903 = vpop.f32.mrf.mxu0
  %v1904 = vadd.f32 0.0, %v1903
  %v1905 = vpop.f32.mrf.mxu0
  %v1906 = vadd.f32 0.0, %v1905
  %1907 = vdwg.mxu0
  %1908 = vmatpush.bf16.msra.mxu0 0
  %1909 = vmatpush.bf16.msra.mxu0 0
  %1910 = vmatpush.bf16.msra.mxu0 0
  %1911 = vmatpush.bf16.msra.mxu0 0
  %1912 = vmatpush.bf16.msra.mxu0 0
  %1913 = vmatpush.bf16.msra.mxu0 0
  %1914 = vmatpush.bf16.msra.mxu0 %v1755
  %1915 = vmatpush.bf16.msra.mxu0 %v1740
  %1916 = vmatmul.bf16.gmra.mxu0 %v1794
  %v1917 = vpop.f32.mrf.mxu0
  %v1918 = vadd.f32 0.0, %v1917
  %v1919 = vpop.f32.mrf.mxu0
  %v1920 = vadd.f32 0.0, %v1919
  %1921 = vdwg.mxu0
  %1922 = vmatpush.bf16.msra.mxu0 0
  %1923 = vmatpush.bf16.msra.mxu0 0
  %1924 = vmatpush.bf16.msra.mxu0 0
  %1925 = vmatpush.bf16.msra.mxu0 0
  %1926 = vmatpush.bf16.msra.mxu0 0
  %1927 = vmatpush.bf16.msra.mxu0 0
  %1928 = vmatpush.bf16.msra.mxu0 %v1756
  %1929 = vmatpush.bf16.msra.mxu0 %v1741
  %1930 = vmatmul.bf16.gmra.mxu0 %v1794
  %v1931 = vpop.f32.mrf.mxu0
  %v1932 = vadd.f32 0.0, %v1931
  %v1933 = vpop.f32.mrf.mxu0
  %v1934 = vadd.f32 0.0, %v1933
  %1935 = vdwg.mxu0
  %1936 = vmatpush.bf16.msra.mxu0 0
  %1937 = vmatpush.bf16.msra.mxu0 0
  %1938 = vmatpush.bf16.msra.mxu0 0
  %1939 = vmatpush.bf16.msra.mxu0 0
  %1940 = vmatpush.bf16.msra.mxu0 0
  %1941 = vmatpush.bf16.msra.mxu0 0
  %1942 = vmatpush.bf16.msra.mxu0 %v1757
  %1943 = vmatpush.bf16.msra.mxu0 %v1742
  %1944 = vmatmul.bf16.gmra.mxu0 %v1794
  %v1945 = vpop.f32.mrf.mxu0
  %v1946 = vadd.f32 0.0, %v1945
  %v1947 = vpop.f32.mrf.mxu0
  %v1948 = vadd.f32 0.0, %v1947
  %1949 = vdwg.mxu0
  %1950 = vmatpush.bf16.msra.mxu0 0
  %1951 = vmatpush.bf16.msra.mxu0 0
  %1952 = vmatpush.bf16.msra.mxu0 0
  %1953 = vmatpush.bf16.msra.mxu0 0
  %1954 = vmatpush.bf16.msra.mxu0 0
  %1955 = vmatpush.bf16.msra.mxu0 0
  %1956 = vmatpush.bf16.msra.mxu0 %v1758
  %1957 = vmatpush.bf16.msra.mxu0 %v1743
  %1958 = vmatmul.bf16.gmra.mxu0 %v1794
  %v1959 = vpop.f32.mrf.mxu0
  %v1960 = vadd.f32 0.0, %v1959
  %v1961 = vpop.f32.mrf.mxu0
  %v1962 = vadd.f32 0.0, %v1961
  %1963 = vdwg.mxu0
  %1964 = vmatpush.bf16.msra.mxu0 0
  %1965 = vmatpush.bf16.msra.mxu0 0
  %1966 = vmatpush.bf16.msra.mxu0 0
  %1967 = vmatpush.bf16.msra.mxu0 0
  %1968 = vmatpush.bf16.msra.mxu0 0
  %1969 = vmatpush.bf16.msra.mxu0 0
  %1970 = vmatpush.bf16.msra.mxu0 %v1759
  %1971 = vmatpush.bf16.msra.mxu0 %v1744
  %1972 = vmatmul.bf16.gmra.mxu0 %v1794
  %v1973 = vpop.f32.mrf.mxu0
  %v1974 = vadd.f32 0.0, %v1973
  %v1975 = vpop.f32.mrf.mxu0
  %v1976 = vadd.f32 0.0, %v1975
  %1977 = vdwg.mxu0
  %1978 = vmatpush.bf16.msra.mxu0 0
  %1979 = vmatpush.bf16.msra.mxu0 0
  %1980 = vmatpush.bf16.msra.mxu0 0
  %1981 = vmatpush.bf16.msra.mxu0 0
  %1982 = vmatpush.bf16.msra.mxu0 0
  %1983 = vmatpush.bf16.msra.mxu0 0
  %1984 = vmatpush.bf16.msra.mxu0 %v1760
  %1985 = vmatpush.bf16.msra.mxu0 %v1745
  %1986 = vmatmul.bf16.gmra.mxu0 %v1794
  %v1987 = vpop.f32.mrf.mxu0
  %v1988 = vadd.f32 0.0, %v1987
  %v1989 = vpop.f32.mrf.mxu0
  %v1990 = vadd.f32 0.0, %v1989
  %1991 = vdwg.mxu0
  %1992 = vmatpush.bf16.msra.mxu0 0
  %1993 = vmatpush.bf16.msra.mxu0 0
  %1994 = vmatpush.bf16.msra.mxu0 0
  %1995 = vmatpush.bf16.msra.mxu0 0
  %1996 = vmatpush.bf16.msra.mxu0 0
  %1997 = vmatpush.bf16.msra.mxu0 0
  %1998 = vmatpush.bf16.msra.mxu0 %v1761
  %1999 = vmatpush.bf16.msra.mxu0 %v1746
  %2000 = vmatmul.bf16.gmra.mxu0 %v1794
  %v2001 = vpop.f32.mrf.mxu0
  %v2002 = vadd.f32 0.0, %v2001
  %v2003 = vpop.f32.mrf.mxu0
  %v2004 = vadd.f32 0.0, %v2003
  %2005 = vdwg.mxu0
  %2037 = vrot.lane.b32.xlu0 %v1806, 126
  %v2038 = vpop.permute.xlu0 %2037
  %2039 = vrot.lane.b32.xlu0 %v1820, 126
  %v2040 = vpop.permute.xlu0 %2039
  %2041 = vrot.lane.b32.xlu0 %v1834, 126
  %v2042 = vpop.permute.xlu0 %2041
  %2043 = vrot.lane.b32.xlu0 %v1848, 126
  %v2044 = vpop.permute.xlu0 %2043
  %2045 = vrot.lane.b32.xlu0 %v1862, 126
  %v2046 = vpop.permute.xlu0 %2045
  %2047 = vrot.lane.b32.xlu0 %v1876, 126
  %v2048 = vpop.permute.xlu0 %2047
  %2049 = vrot.lane.b32.xlu0 %v1890, 126
  %v2050 = vpop.permute.xlu0 %2049
  %2051 = vrot.lane.b32.xlu0 %v1904, 126
  %v2052 = vpop.permute.xlu0 %2051
  %2053 = vrot.lane.b32.xlu0 %v1918, 126
  %v2054 = vpop.permute.xlu0 %2053
  %2055 = vrot.lane.b32.xlu0 %v1932, 126
  %v2056 = vpop.permute.xlu0 %2055
  %2057 = vrot.lane.b32.xlu0 %v1946, 126
  %v2058 = vpop.permute.xlu0 %2057
  %2059 = vrot.lane.b32.xlu0 %v1960, 126
  %v2060 = vpop.permute.xlu0 %2059
  %2061 = vrot.lane.b32.xlu0 %v1974, 126
  %v2062 = vpop.permute.xlu0 %2061
  %2063 = vrot.lane.b32.xlu0 %v1988, 126
  %v2064 = vpop.permute.xlu0 %2063
  %2065 = vrot.lane.b32.xlu0 %v2002, 126
  %v2066 = vpop.permute.xlu0 %2065
  %2067 = vrot.lane.b32.xlu0 0.0, 126
  %v2068 = vpop.permute.xlu0 %2067
  %2069 = vrot.lane.b32.xlu0 %v1808, 126
  %v2070 = vpop.permute.xlu0 %2069
  %2071 = vrot.lane.b32.xlu0 %v1822, 126
  %v2072 = vpop.permute.xlu0 %2071
  %2073 = vrot.lane.b32.xlu0 %v1836, 126
  %v2074 = vpop.permute.xlu0 %2073
  %2075 = vrot.lane.b32.xlu0 %v1850, 126
  %v2076 = vpop.permute.xlu0 %2075
  %2077 = vrot.lane.b32.xlu0 %v1864, 126
  %v2078 = vpop.permute.xlu0 %2077
  %2079 = vrot.lane.b32.xlu0 %v1878, 126
  %v2080 = vpop.permute.xlu0 %2079
  %2081 = vrot.lane.b32.xlu0 %v1892, 126
  %v2082 = vpop.permute.xlu0 %2081
  %2083 = vrot.lane.b32.xlu0 %v1906, 126
  %v2084 = vpop.permute.xlu0 %2083
  %2085 = vrot.lane.b32.xlu0 %v1920, 126
  %v2086 = vpop.permute.xlu0 %2085
  %2087 = vrot.lane.b32.xlu0 %v1934, 126
  %v2088 = vpop.permute.xlu0 %2087
  %2089 = vrot.lane.b32.xlu0 %v1948, 126
  %v2090 = vpop.permute.xlu0 %2089
  %2091 = vrot.lane.b32.xlu0 %v1962, 126
  %v2092 = vpop.permute.xlu0 %2091
  %2093 = vrot.lane.b32.xlu0 %v1976, 126
  %v2094 = vpop.permute.xlu0 %2093
  %2095 = vrot.lane.b32.xlu0 %v1990, 126
  %v2096 = vpop.permute.xlu0 %2095
  %2097 = vrot.lane.b32.xlu0 %v2004, 126
  %v2098 = vpop.permute.xlu0 %2097
  %vm2099 = vcmask 1031168
  %v2100 = vsel %vm2099, %v2038, %v2040
  %v2101 = vsel %vm2099, %v2040, %v2042
  %v2102 = vsel %vm2099, %v2042, %v2044
  %v2103 = vsel %vm2099, %v2044, %v2046
  %v2104 = vsel %vm2099, %v2046, %v2048
  %v2105 = vsel %vm2099, %v2048, %v2050
  %v2106 = vsel %vm2099, %v2050, %v2052
  %v2107 = vsel %vm2099, %v2052, %v2054
  %v2108 = vsel %vm2099, %v2054, %v2056
  %v2109 = vsel %vm2099, %v2056, %v2058
  %v2110 = vsel %vm2099, %v2058, %v2060
  %v2111 = vsel %vm2099, %v2060, %v2062
  %v2112 = vsel %vm2099, %v2062, %v2064
  %v2113 = vsel %vm2099, %v2064, %v2066
  %v2114 = vsel %vm2099, %v2066, %v2068
  %v2115 = vsel %vm2099, %v2070, %v2072
  %v2116 = vsel %vm2099, %v2072, %v2074
  %v2117 = vsel %vm2099, %v2074, %v2076
  %v2118 = vsel %vm2099, %v2076, %v2078
  %v2119 = vsel %vm2099, %v2078, %v2080
  %v2120 = vsel %vm2099, %v2080, %v2082
  %v2121 = vsel %vm2099, %v2082, %v2084
  %v2122 = vsel %vm2099, %v2084, %v2086
  %v2123 = vsel %vm2099, %v2086, %v2088
  %v2124 = vsel %vm2099, %v2088, %v2090
  %v2125 = vsel %vm2099, %v2090, %v2092
  %v2126 = vsel %vm2099, %v2092, %v2094
  %v2127 = vsel %vm2099, %v2094, %v2096
  %v2128 = vsel %vm2099, %v2096, %v2098
  %v2129 = vsel %vm2099, %v2098, %v2068
  %v2160 = vmax.f32 %v1806, %v2100
  %v2161 = vmax.f32 %v1820, %v2101
  %v2162 = vmax.f32 %v1834, %v2102
  %v2163 = vmax.f32 %v1848, %v2103
  %v2164 = vmax.f32 %v1862, %v2104
  %v2165 = vmax.f32 %v1876, %v2105
  %v2166 = vmax.f32 %v1890, %v2106
  %v2167 = vmax.f32 %v1904, %v2107
  %v2168 = vmax.f32 %v1918, %v2108
  %v2169 = vmax.f32 %v1932, %v2109
  %v2170 = vmax.f32 %v1946, %v2110
  %v2171 = vmax.f32 %v1960, %v2111
  %v2172 = vmax.f32 %v1974, %v2112
  %v2173 = vmax.f32 %v1988, %v2113
  %v2174 = vmax.f32 %v2002, %v2114
  %v2175 = vmax.f32 %v1808, %v2115
  %v2176 = vmax.f32 %v1822, %v2116
  %v2177 = vmax.f32 %v1836, %v2117
  %v2178 = vmax.f32 %v1850, %v2118
  %v2179 = vmax.f32 %v1864, %v2119
  %v2180 = vmax.f32 %v1878, %v2120
  %v2181 = vmax.f32 %v1892, %v2121
  %v2182 = vmax.f32 %v1906, %v2122
  %v2183 = vmax.f32 %v1920, %v2123
  %v2184 = vmax.f32 %v1934, %v2124
  %v2185 = vmax.f32 %v1948, %v2125
  %v2186 = vmax.f32 %v1962, %v2126
  %v2187 = vmax.f32 %v1976, %v2127
  %v2188 = vmax.f32 %v1990, %v2128
  %v2189 = vmax.f32 %v2004, %v2129
  %2190 = vrot.lane.b32.xlu0 %v1806, 68
  %v2191 = vpop.permute.xlu0 %2190
  %2192 = vrot.lane.b32.xlu0 %v1820, 68
  %v2193 = vpop.permute.xlu0 %2192
  %2194 = vrot.lane.b32.xlu0 %v1834, 68
  %v2195 = vpop.permute.xlu0 %2194
  %2196 = vrot.lane.b32.xlu0 %v1848, 68
  %v2197 = vpop.permute.xlu0 %2196
  %2198 = vrot.lane.b32.xlu0 %v1862, 68
  %v2199 = vpop.permute.xlu0 %2198
  %2200 = vrot.lane.b32.xlu0 %v1876, 68
  %v2201 = vpop.permute.xlu0 %2200
  %2202 = vrot.lane.b32.xlu0 %v1890, 68
  %v2203 = vpop.permute.xlu0 %2202
  %2204 = vrot.lane.b32.xlu0 %v1904, 68
  %v2205 = vpop.permute.xlu0 %2204
  %2206 = vrot.lane.b32.xlu0 %v1918, 68
  %v2207 = vpop.permute.xlu0 %2206
  %2208 = vrot.lane.b32.xlu0 %v1932, 68
  %v2209 = vpop.permute.xlu0 %2208
  %2210 = vrot.lane.b32.xlu0 %v1946, 68
  %v2211 = vpop.permute.xlu0 %2210
  %2212 = vrot.lane.b32.xlu0 %v1960, 68
  %v2213 = vpop.permute.xlu0 %2212
  %2214 = vrot.lane.b32.xlu0 %v1974, 68
  %v2215 = vpop.permute.xlu0 %2214
  %2216 = vrot.lane.b32.xlu0 %v1988, 68
  %v2217 = vpop.permute.xlu0 %2216
  %2218 = vrot.lane.b32.xlu0 %v2002, 68
  %v2219 = vpop.permute.xlu0 %2218
  %2220 = vrot.lane.b32.xlu0 0.0, 68
  %v2221 = vpop.permute.xlu0 %2220
  %2222 = vrot.lane.b32.xlu0 %v1808, 68
  %v2223 = vpop.permute.xlu0 %2222
  %2224 = vrot.lane.b32.xlu0 %v1822, 68
  %v2225 = vpop.permute.xlu0 %2224
  %2226 = vrot.lane.b32.xlu0 %v1836, 68
  %v2227 = vpop.permute.xlu0 %2226
  %2228 = vrot.lane.b32.xlu0 %v1850, 68
  %v2229 = vpop.permute.xlu0 %2228
  %2230 = vrot.lane.b32.xlu0 %v1864, 68
  %v2231 = vpop.permute.xlu0 %2230
  %2232 = vrot.lane.b32.xlu0 %v1878, 68
  %v2233 = vpop.permute.xlu0 %2232
  %2234 = vrot.lane.b32.xlu0 %v1892, 68
  %v2235 = vpop.permute.xlu0 %2234
  %2236 = vrot.lane.b32.xlu0 %v1906, 68
  %v2237 = vpop.permute.xlu0 %2236
  %2238 = vrot.lane.b32.xlu0 %v1920, 68
  %v2239 = vpop.permute.xlu0 %2238
  %2240 = vrot.lane.b32.xlu0 %v1934, 68
  %v2241 = vpop.permute.xlu0 %2240
  %2242 = vrot.lane.b32.xlu0 %v1948, 68
  %v2243 = vpop.permute.xlu0 %2242
  %2244 = vrot.lane.b32.xlu0 %v1962, 68
  %v2245 = vpop.permute.xlu0 %2244
  %2246 = vrot.lane.b32.xlu0 %v1976, 68
  %v2247 = vpop.permute.xlu0 %2246
  %2248 = vrot.lane.b32.xlu0 %v1990, 68
  %v2249 = vpop.permute.xlu0 %2248
  %2250 = vrot.lane.b32.xlu0 %v2004, 68
  %v2251 = vpop.permute.xlu0 %2250
  %vm2252 = vcmask 556032
  %v2253 = vsel %vm2252, %v2191, %v2193
  %v2254 = vsel %vm2252, %v2193, %v2195
  %v2255 = vsel %vm2252, %v2195, %v2197
  %v2256 = vsel %vm2252, %v2197, %v2199
  %v2257 = vsel %vm2252, %v2199, %v2201
  %v2258 = vsel %vm2252, %v2201, %v2203
  %v2259 = vsel %vm2252, %v2203, %v2205
  %v2260 = vsel %vm2252, %v2205, %v2207
  %v2261 = vsel %vm2252, %v2207, %v2209
  %v2262 = vsel %vm2252, %v2209, %v2211
  %v2263 = vsel %vm2252, %v2211, %v2213
  %v2264 = vsel %vm2252, %v2213, %v2215
  %v2265 = vsel %vm2252, %v2215, %v2217
  %v2266 = vsel %vm2252, %v2217, %v2219
  %v2267 = vsel %vm2252, %v2219, %v2221
  %v2268 = vsel %vm2252, %v2223, %v2225
  %v2269 = vsel %vm2252, %v2225, %v2227
  %v2270 = vsel %vm2252, %v2227, %v2229
  %v2271 = vsel %vm2252, %v2229, %v2231
  %v2272 = vsel %vm2252, %v2231, %v2233
  %v2273 = vsel %vm2252, %v2233, %v2235
  %v2274 = vsel %vm2252, %v2235, %v2237
  %v2275 = vsel %vm2252, %v2237, %v2239
  %v2276 = vsel %vm2252, %v2239, %v2241
  %v2277 = vsel %vm2252, %v2241, %v2243
  %v2278 = vsel %vm2252, %v2243, %v2245
  %v2279 = vsel %vm2252, %v2245, %v2247
  %v2280 = vsel %vm2252, %v2247, %v2249
  %v2281 = vsel %vm2252, %v2249, %v2251
  %v2282 = vsel %vm2252, %v2251, %v2221
  %v2313 = vmax.f32 %v2160, %v2253
  %v2314 = vmax.f32 %v2161, %v2254
  %v2315 = vmax.f32 %v2162, %v2255
  %v2316 = vmax.f32 %v2163, %v2256
  %v2317 = vmax.f32 %v2164, %v2257
  %v2318 = vmax.f32 %v2165, %v2258
  %v2319 = vmax.f32 %v2166, %v2259
  %v2320 = vmax.f32 %v2167, %v2260
  %v2321 = vmax.f32 %v2168, %v2261
  %v2322 = vmax.f32 %v2169, %v2262
  %v2323 = vmax.f32 %v2170, %v2263
  %v2324 = vmax.f32 %v2171, %v2264
  %v2325 = vmax.f32 %v2172, %v2265
  %v2326 = vmax.f32 %v2173, %v2266
  %v2327 = vmax.f32 %v2174, %v2267
  %v2328 = vmax.f32 %v2175, %v2268
  %v2329 = vmax.f32 %v2176, %v2269
  %v2330 = vmax.f32 %v2177, %v2270
  %v2331 = vmax.f32 %v2178, %v2271
  %v2332 = vmax.f32 %v2179, %v2272
  %v2333 = vmax.f32 %v2180, %v2273
  %v2334 = vmax.f32 %v2181, %v2274
  %v2335 = vmax.f32 %v2182, %v2275
  %v2336 = vmax.f32 %v2183, %v2276
  %v2337 = vmax.f32 %v2184, %v2277
  %v2338 = vmax.f32 %v2185, %v2278
  %v2339 = vmax.f32 %v2186, %v2279
  %v2340 = vmax.f32 %v2187, %v2280
  %v2341 = vmax.f32 %v2188, %v2281
  %v2342 = vmax.f32 %v2189, %v2282
  %2343 = vrot.lane.b32.xlu0 %v1806, 66
  %v2344 = vpop.permute.xlu0 %2343
  %2345 = vrot.lane.b32.xlu0 %v1820, 66
  %v2346 = vpop.permute.xlu0 %2345
  %2347 = vrot.lane.b32.xlu0 %v1834, 66
  %v2348 = vpop.permute.xlu0 %2347
  %2349 = vrot.lane.b32.xlu0 %v1848, 66
  %v2350 = vpop.permute.xlu0 %2349
  %2351 = vrot.lane.b32.xlu0 %v1862, 66
  %v2352 = vpop.permute.xlu0 %2351
  %2353 = vrot.lane.b32.xlu0 %v1876, 66
  %v2354 = vpop.permute.xlu0 %2353
  %2355 = vrot.lane.b32.xlu0 %v1890, 66
  %v2356 = vpop.permute.xlu0 %2355
  %2357 = vrot.lane.b32.xlu0 %v1904, 66
  %v2358 = vpop.permute.xlu0 %2357
  %2359 = vrot.lane.b32.xlu0 %v1918, 66
  %v2360 = vpop.permute.xlu0 %2359
  %2361 = vrot.lane.b32.xlu0 %v1932, 66
  %v2362 = vpop.permute.xlu0 %2361
  %2363 = vrot.lane.b32.xlu0 %v1946, 66
  %v2364 = vpop.permute.xlu0 %2363
  %2365 = vrot.lane.b32.xlu0 %v1960, 66
  %v2366 = vpop.permute.xlu0 %2365
  %2367 = vrot.lane.b32.xlu0 %v1974, 66
  %v2368 = vpop.permute.xlu0 %2367
  %2369 = vrot.lane.b32.xlu0 %v1988, 66
  %v2370 = vpop.permute.xlu0 %2369
  %2371 = vrot.lane.b32.xlu0 %v2002, 66
  %v2372 = vpop.permute.xlu0 %2371
  %2373 = vrot.lane.b32.xlu0 0.0, 66
  %v2374 = vpop.permute.xlu0 %2373
  %2375 = vrot.lane.b32.xlu0 %v1808, 66
  %v2376 = vpop.permute.xlu0 %2375
  %2377 = vrot.lane.b32.xlu0 %v1822, 66
  %v2378 = vpop.permute.xlu0 %2377
  %2379 = vrot.lane.b32.xlu0 %v1836, 66
  %v2380 = vpop.permute.xlu0 %2379
  %2381 = vrot.lane.b32.xlu0 %v1850, 66
  %v2382 = vpop.permute.xlu0 %2381
  %2383 = vrot.lane.b32.xlu0 %v1864, 66
  %v2384 = vpop.permute.xlu0 %2383
  %2385 = vrot.lane.b32.xlu0 %v1878, 66
  %v2386 = vpop.permute.xlu0 %2385
  %2387 = vrot.lane.b32.xlu0 %v1892, 66
  %v2388 = vpop.permute.xlu0 %2387
  %2389 = vrot.lane.b32.xlu0 %v1906, 66
  %v2390 = vpop.permute.xlu0 %2389
  %2391 = vrot.lane.b32.xlu0 %v1920, 66
  %v2392 = vpop.permute.xlu0 %2391
  %2393 = vrot.lane.b32.xlu0 %v1934, 66
  %v2394 = vpop.permute.xlu0 %2393
  %2395 = vrot.lane.b32.xlu0 %v1948, 66
  %v2396 = vpop.permute.xlu0 %2395
  %2397 = vrot.lane.b32.xlu0 %v1962, 66
  %v2398 = vpop.permute.xlu0 %2397
  %2399 = vrot.lane.b32.xlu0 %v1976, 66
  %v2400 = vpop.permute.xlu0 %2399
  %2401 = vrot.lane.b32.xlu0 %v1990, 66
  %v2402 = vpop.permute.xlu0 %2401
  %2403 = vrot.lane.b32.xlu0 %v2004, 66
  %v2404 = vpop.permute.xlu0 %2403
  %vm2405 = vcmask 539648
  %v2406 = vsel %vm2405, %v2344, %v2346
  %v2407 = vsel %vm2405, %v2346, %v2348
  %v2408 = vsel %vm2405, %v2348, %v2350
  %v2409 = vsel %vm2405, %v2350, %v2352
  %v2410 = vsel %vm2405, %v2352, %v2354
  %v2411 = vsel %vm2405, %v2354, %v2356
  %v2412 = vsel %vm2405, %v2356, %v2358
  %v2413 = vsel %vm2405, %v2358, %v2360
  %v2414 = vsel %vm2405, %v2360, %v2362
  %v2415 = vsel %vm2405, %v2362, %v2364
  %v2416 = vsel %vm2405, %v2364, %v2366
  %v2417 = vsel %vm2405, %v2366, %v2368
  %v2418 = vsel %vm2405, %v2368, %v2370
  %v2419 = vsel %vm2405, %v2370, %v2372
  %v2420 = vsel %vm2405, %v2372, %v2374
  %v2421 = vsel %vm2405, %v2376, %v2378
  %v2422 = vsel %vm2405, %v2378, %v2380
  %v2423 = vsel %vm2405, %v2380, %v2382
  %v2424 = vsel %vm2405, %v2382, %v2384
  %v2425 = vsel %vm2405, %v2384, %v2386
  %v2426 = vsel %vm2405, %v2386, %v2388
  %v2427 = vsel %vm2405, %v2388, %v2390
  %v2428 = vsel %vm2405, %v2390, %v2392
  %v2429 = vsel %vm2405, %v2392, %v2394
  %v2430 = vsel %vm2405, %v2394, %v2396
  %v2431 = vsel %vm2405, %v2396, %v2398
  %v2432 = vsel %vm2405, %v2398, %v2400
  %v2433 = vsel %vm2405, %v2400, %v2402
  %v2434 = vsel %vm2405, %v2402, %v2404
  %v2435 = vsel %vm2405, %v2404, %v2374
  %v2466 = vmax.f32 %v2313, %v2406
  %v2467 = vmax.f32 %v2314, %v2407
  %v2468 = vmax.f32 %v2315, %v2408
  %v2469 = vmax.f32 %v2316, %v2409
  %v2470 = vmax.f32 %v2317, %v2410
  %v2471 = vmax.f32 %v2318, %v2411
  %v2472 = vmax.f32 %v2319, %v2412
  %v2473 = vmax.f32 %v2320, %v2413
  %v2474 = vmax.f32 %v2321, %v2414
  %v2475 = vmax.f32 %v2322, %v2415
  %v2476 = vmax.f32 %v2323, %v2416
  %v2477 = vmax.f32 %v2324, %v2417
  %v2478 = vmax.f32 %v2325, %v2418
  %v2479 = vmax.f32 %v2326, %v2419
  %v2480 = vmax.f32 %v2327, %v2420
  %v2481 = vmax.f32 %v2328, %v2421
  %v2482 = vmax.f32 %v2329, %v2422
  %v2483 = vmax.f32 %v2330, %v2423
  %v2484 = vmax.f32 %v2331, %v2424
  %v2485 = vmax.f32 %v2332, %v2425
  %v2486 = vmax.f32 %v2333, %v2426
  %v2487 = vmax.f32 %v2334, %v2427
  %v2488 = vmax.f32 %v2335, %v2428
  %v2489 = vmax.f32 %v2336, %v2429
  %v2490 = vmax.f32 %v2337, %v2430
  %v2491 = vmax.f32 %v2338, %v2431
  %v2492 = vmax.f32 %v2339, %v2432
  %v2493 = vmax.f32 %v2340, %v2433
  %v2494 = vmax.f32 %v2341, %v2434
  %v2495 = vmax.f32 %v2342, %v2435
  %v2496 = vld [vmem:[%s3] sm:$0xff]
  %v2497 = vld [vmem:[%s3 + $0x8] sm:$0xff]
  %2499 = vset.pattern.permute.xlu0 0
  %2500 = vperm.xlu0 %2499, %v2496
  %v2501 = vpop.permute.xlu0 %2500
  %2504 = vset.pattern.permute.xlu0 0
  %2505 = vperm.xlu0 %2504, %v2497
  %v2506 = vpop.permute.xlu0 %2505
  %v2508 = vadd.f32 %v2466, %v2501
  %v2509 = vadd.f32 %v2467, %v2501
  %v2510 = vadd.f32 %v2468, %v2501
  %v2511 = vadd.f32 %v2469, %v2501
  %v2512 = vadd.f32 %v2470, %v2501
  %v2513 = vadd.f32 %v2471, %v2501
  %v2514 = vadd.f32 %v2472, %v2501
  %v2515 = vadd.f32 %v2473, %v2501
  %v2516 = vadd.f32 %v2474, %v2501
  %v2517 = vadd.f32 %v2475, %v2501
  %v2518 = vadd.f32 %v2476, %v2501
  %v2519 = vadd.f32 %v2477, %v2501
  %v2520 = vadd.f32 %v2478, %v2501
  %v2521 = vadd.f32 %v2479, %v2501
  %v2522 = vadd.f32 %v2480, %v2501
  %v2523 = vadd.f32 %v2481, %v2506
  %v2524 = vadd.f32 %v2482, %v2506
  %v2525 = vadd.f32 %v2483, %v2506
  %v2526 = vadd.f32 %v2484, %v2506
  %v2527 = vadd.f32 %v2485, %v2506
  %v2528 = vadd.f32 %v2486, %v2506
  %v2529 = vadd.f32 %v2487, %v2506
  %v2530 = vadd.f32 %v2488, %v2506
  %v2531 = vadd.f32 %v2489, %v2506
  %v2532 = vadd.f32 %v2490, %v2506
  %v2533 = vadd.f32 %v2491, %v2506
  %v2534 = vadd.f32 %v2492, %v2506
  %v2535 = vadd.f32 %v2493, %v2506
  %v2536 = vadd.f32 %v2494, %v2506
  %v2537 = vadd.f32 %v2495, %v2506
  %v2538 = vmax.f32 %v2508, 0.0
  %v2539 = vmax.f32 %v2509, 0.0
  %v2540 = vmax.f32 %v2510, 0.0
  %v2541 = vmax.f32 %v2511, 0.0
  %v2542 = vmax.f32 %v2512, 0.0
  %v2543 = vmax.f32 %v2513, 0.0
  %v2544 = vmax.f32 %v2514, 0.0
  %v2545 = vmax.f32 %v2515, 0.0
  %v2546 = vmax.f32 %v2516, 0.0
  %v2547 = vmax.f32 %v2517, 0.0
  %v2548 = vmax.f32 %v2518, 0.0
  %v2549 = vmax.f32 %v2519, 0.0
  %v2550 = vmax.f32 %v2520, 0.0
  %v2551 = vmax.f32 %v2521, 0.0
  %v2552 = vmax.f32 %v2522, 0.0
  %v2553 = vmax.f32 %v2523, 0.0
  %v2554 = vmax.f32 %v2524, 0.0
  %v2555 = vmax.f32 %v2525, 0.0
  %v2556 = vmax.f32 %v2526, 0.0
  %v2557 = vmax.f32 %v2527, 0.0
  %v2558 = vmax.f32 %v2528, 0.0
  %v2559 = vmax.f32 %v2529, 0.0
  %v2560 = vmax.f32 %v2530, 0.0
  %v2561 = vmax.f32 %v2531, 0.0
  %v2562 = vmax.f32 %v2532, 0.0
  %v2563 = vmax.f32 %v2533, 0.0
  %v2564 = vmax.f32 %v2534, 0.0
  %v2565 = vmax.f32 %v2535, 0.0
  %v2566 = vmax.f32 %v2536, 0.0
  %v2567 = vmax.f32 %v2537, 0.0
  %v2568 = vld [vmem:[%s1] sm:$0xff]
  %v2569 = vld [vmem:[%s1 + $0x8] sm:$0xff]
  %vm2570 = vcmp.gt.f32.partialorder %v2568, 0.5
  %vm2571 = vcmp.gt.f32.partialorder %v2569, 0.5
  %v2572 = vsel %vm2570, 1, 0
  %v2573 = vsel %vm2571, 1, 0
  %v2574 = vperm.slane %v2572, 0
  %v2575 = vperm.slane %v2572, 1
  %v2576 = vperm.slane %v2572, 2
  %v2577 = vperm.slane %v2572, 3
  %v2578 = vperm.slane %v2572, 4
  %v2579 = vperm.slane %v2572, 5
  %v2580 = vperm.slane %v2572, 6
  %v2581 = vperm.slane %v2572, 7
  %v2582 = vperm.slane %v2573, 0
  %v2583 = vperm.slane %v2573, 1
  %v2584 = vperm.slane %v2573, 2
  %v2585 = vperm.slane %v2573, 3
  %v2586 = vperm.slane %v2573, 4
  %v2587 = vperm.slane %v2573, 5
  %v2588 = vperm.slane %v2573, 6
  %vm2589 = vcmp.eq.s32.totalorder %v2574, 1
  %vm2590 = vcmp.eq.s32.totalorder %v2575, 1
  %vm2591 = vcmp.eq.s32.totalorder %v2576, 1
  %vm2592 = vcmp.eq.s32.totalorder %v2577, 1
  %vm2593 = vcmp.eq.s32.totalorder %v2578, 1
  %vm2594 = vcmp.eq.s32.totalorder %v2579, 1
  %vm2595 = vcmp.eq.s32.totalorder %v2580, 1
  %vm2596 = vcmp.eq.s32.totalorder %v2581, 1
  %vm2597 = vcmp.eq.s32.totalorder %v2582, 1
  %vm2598 = vcmp.eq.s32.totalorder %v2583, 1
  %vm2599 = vcmp.eq.s32.totalorder %v2584, 1
  %vm2600 = vcmp.eq.s32.totalorder %v2585, 1
  %vm2601 = vcmp.eq.s32.totalorder %v2586, 1
  %vm2602 = vcmp.eq.s32.totalorder %v2587, 1
  %vm2603 = vcmp.eq.s32.totalorder %v2588, 1
  %v2604 = vsel %vm2589, %v2538, 0.0
  %v2605 = vsel %vm2590, %v2539, 0.0
  %v2606 = vsel %vm2591, %v2540, 0.0
  %v2607 = vsel %vm2592, %v2541, 0.0
  %v2608 = vsel %vm2593, %v2542, 0.0
  %v2609 = vsel %vm2594, %v2543, 0.0
  %v2610 = vsel %vm2595, %v2544, 0.0
  %v2611 = vsel %vm2596, %v2545, 0.0
  %v2612 = vsel %vm2597, %v2546, 0.0
  %v2613 = vsel %vm2598, %v2547, 0.0
  %v2614 = vsel %vm2599, %v2548, 0.0
  %v2615 = vsel %vm2600, %v2549, 0.0
  %v2616 = vsel %vm2601, %v2550, 0.0
  %v2617 = vsel %vm2602, %v2551, 0.0
  %v2618 = vsel %vm2603, %v2552, 0.0
  %v2619 = vsel %vm2589, %v2553, 0.0
  %v2620 = vsel %vm2590, %v2554, 0.0
  %v2621 = vsel %vm2591, %v2555, 0.0
  %v2622 = vsel %vm2592, %v2556, 0.0
  %v2623 = vsel %vm2593, %v2557, 0.0
  %v2624 = vsel %vm2594, %v2558, 0.0
  %v2625 = vsel %vm2595, %v2559, 0.0
  %v2626 = vsel %vm2596, %v2560, 0.0
  %v2627 = vsel %vm2597, %v2561, 0.0
  %v2628 = vsel %vm2598, %v2562, 0.0
  %v2629 = vsel %vm2599, %v2563, 0.0
  %v2630 = vsel %vm2600, %v2564, 0.0
  %v2631 = vsel %vm2601, %v2565, 0.0
  %v2632 = vsel %vm2602, %v2566, 0.0
  %v2633 = vsel %vm2603, %v2567, 0.0
  %v2634 = vpack.c.bf16 %v2605, %v2604
  %v2635 = vpack.c.bf16 %v2607, %v2606
  %v2636 = vpack.c.bf16 %v2609, %v2608
  %v2637 = vpack.c.bf16 %v2611, %v2610
  %v2638 = vpack.c.bf16 %v2613, %v2612
  %v2639 = vpack.c.bf16 %v2615, %v2614
  %v2640 = vpack.c.bf16 %v2617, %v2616
  %v2641 = vpack.c.bf16 %v2618, %v2618
  %v2642 = vpack.c.bf16 %v2620, %v2619
  %v2643 = vpack.c.bf16 %v2622, %v2621
  %v2644 = vpack.c.bf16 %v2624, %v2623
  %v2645 = vpack.c.bf16 %v2626, %v2625
  %v2646 = vpack.c.bf16 %v2628, %v2627
  %v2647 = vpack.c.bf16 %v2630, %v2629
  %v2648 = vpack.c.bf16 %v2632, %v2631
  %v2649 = vpack.c.bf16 %v2633, %v2633
  %v2666 = vunpack.c.l.b16 %v2634
  %v2667 = vunpack.c.h.b16 %v2634
  %v2668 = vunpack.c.l.b16 %v2635
  %v2669 = vunpack.c.h.b16 %v2635
  %v2670 = vunpack.c.l.b16 %v2636
  %v2671 = vunpack.c.h.b16 %v2636
  %v2672 = vunpack.c.l.b16 %v2637
  %v2673 = vunpack.c.h.b16 %v2637
  %v2674 = vunpack.c.l.b16 %v2638
  %v2675 = vunpack.c.h.b16 %v2638
  %v2676 = vunpack.c.l.b16 %v2639
  %v2677 = vunpack.c.h.b16 %v2639
  %v2678 = vunpack.c.l.b16 %v2640
  %v2679 = vunpack.c.h.b16 %v2640
  %v2680 = vunpack.c.l.b16 %v2641
  %v2681 = vunpack.c.l.b16 %v2642
  %v2682 = vunpack.c.h.b16 %v2642
  %v2683 = vunpack.c.l.b16 %v2643
  %v2684 = vunpack.c.h.b16 %v2643
  %v2685 = vunpack.c.l.b16 %v2644
  %v2686 = vunpack.c.h.b16 %v2644
  %v2687 = vunpack.c.l.b16 %v2645
  %v2688 = vunpack.c.h.b16 %v2645
  %v2689 = vunpack.c.l.b16 %v2646
  %v2690 = vunpack.c.h.b16 %v2646
  %v2691 = vunpack.c.l.b16 %v2647
  %v2692 = vunpack.c.h.b16 %v2647
  %v2693 = vunpack.c.l.b16 %v2648
  %v2694 = vunpack.c.h.b16 %v2648
  %v2695 = vunpack.c.l.b16 %v2649
  %v2696 = vpack.c.b16 %v2681, %v2666
  %v2697 = vpack.c.b16 %v2682, %v2667
  %v2698 = vpack.c.b16 %v2683, %v2668
  %v2699 = vpack.c.b16 %v2684, %v2669
  %v2700 = vpack.c.b16 %v2685, %v2670
  %v2701 = vpack.c.b16 %v2686, %v2671
  %v2702 = vpack.c.b16 %v2687, %v2672
  %v2703 = vpack.c.b16 %v2688, %v2673
  %v2704 = vpack.c.b16 %v2689, %v2674
  %v2705 = vpack.c.b16 %v2690, %v2675
  %v2706 = vpack.c.b16 %v2691, %v2676
  %v2707 = vpack.c.b16 %v2692, %v2677
  %v2708 = vpack.c.b16 %v2693, %v2678
  %v2709 = vpack.c.b16 %v2694, %v2679
  %v2710 = vpack.c.b16 %v2695, %v2680
  %2712 = vrot.lane.b32.xlu0 0, 124
  %v2713 = vpop.permute.xlu0 %2712
  %2714 = vrot.lane.b32.xlu0 %v2696, 124
  %v2715 = vpop.permute.xlu0 %2714
  %2716 = vrot.lane.b32.xlu0 %v2697, 124
  %v2717 = vpop.permute.xlu0 %2716
  %2718 = vrot.lane.b32.xlu0 %v2698, 124
  %v2719 = vpop.permute.xlu0 %2718
  %2720 = vrot.lane.b32.xlu0 %v2699, 124
  %v2721 = vpop.permute.xlu0 %2720
  %2722 = vrot.lane.b32.xlu0 %v2700, 124
  %v2723 = vpop.permute.xlu0 %2722
  %2724 = vrot.lane.b32.xlu0 %v2701, 124
  %v2725 = vpop.permute.xlu0 %2724
  %2726 = vrot.lane.b32.xlu0 %v2702, 124
  %v2727 = vpop.permute.xlu0 %2726
  %2728 = vrot.lane.b32.xlu0 %v2703, 124
  %v2729 = vpop.permute.xlu0 %2728
  %2730 = vrot.lane.b32.xlu0 %v2704, 124
  %v2731 = vpop.permute.xlu0 %2730
  %2732 = vrot.lane.b32.xlu0 %v2705, 124
  %v2733 = vpop.permute.xlu0 %2732
  %2734 = vrot.lane.b32.xlu0 %v2706, 124
  %v2735 = vpop.permute.xlu0 %2734
  %2736 = vrot.lane.b32.xlu0 %v2707, 124
  %v2737 = vpop.permute.xlu0 %2736
  %2738 = vrot.lane.b32.xlu0 %v2708, 124
  %v2739 = vpop.permute.xlu0 %2738
  %2740 = vrot.lane.b32.xlu0 %v2709, 124
  %v2741 = vpop.permute.xlu0 %2740
  %2742 = vrot.lane.b32.xlu0 %v2710, 124
  %v2743 = vpop.permute.xlu0 %2742
  %v2744 = vsel %vm363, %v2713, %v2715
  %v2745 = vsel %vm363, %v2715, %v2717
  %v2746 = vsel %vm363, %v2717, %v2719
  %v2747 = vsel %vm363, %v2719, %v2721
  %v2748 = vsel %vm363, %v2721, %v2723
  %v2749 = vsel %vm363, %v2723, %v2725
  %v2750 = vsel %vm363, %v2725, %v2727
  %v2751 = vsel %vm363, %v2727, %v2729
  %v2752 = vsel %vm363, %v2729, %v2731
  %v2753 = vsel %vm363, %v2731, %v2733
  %v2754 = vsel %vm363, %v2733, %v2735
  %v2755 = vsel %vm363, %v2735, %v2737
  %v2756 = vsel %vm363, %v2737, %v2739
  %v2757 = vsel %vm363, %v2739, %v2741
  %v2758 = vsel %vm363, %v2741, %v2743
  %2759 = vrot.lane.b32.xlu0 0, 120
  %v2760 = vpop.permute.xlu0 %2759
  %2761 = vrot.lane.b32.xlu0 %v2696, 120
  %v2762 = vpop.permute.xlu0 %2761
  %2763 = vrot.lane.b32.xlu0 %v2697, 120
  %v2764 = vpop.permute.xlu0 %2763
  %2765 = vrot.lane.b32.xlu0 %v2698, 120
  %v2766 = vpop.permute.xlu0 %2765
  %2767 = vrot.lane.b32.xlu0 %v2699, 120
  %v2768 = vpop.permute.xlu0 %2767
  %2769 = vrot.lane.b32.xlu0 %v2700, 120
  %v2770 = vpop.permute.xlu0 %2769
  %2771 = vrot.lane.b32.xlu0 %v2701, 120
  %v2772 = vpop.permute.xlu0 %2771
  %2773 = vrot.lane.b32.xlu0 %v2702, 120
  %v2774 = vpop.permute.xlu0 %2773
  %2775 = vrot.lane.b32.xlu0 %v2703, 120
  %v2776 = vpop.permute.xlu0 %2775
  %2777 = vrot.lane.b32.xlu0 %v2704, 120
  %v2778 = vpop.permute.xlu0 %2777
  %2779 = vrot.lane.b32.xlu0 %v2705, 120
  %v2780 = vpop.permute.xlu0 %2779
  %2781 = vrot.lane.b32.xlu0 %v2706, 120
  %v2782 = vpop.permute.xlu0 %2781
  %2783 = vrot.lane.b32.xlu0 %v2707, 120
  %v2784 = vpop.permute.xlu0 %2783
  %2785 = vrot.lane.b32.xlu0 %v2708, 120
  %v2786 = vpop.permute.xlu0 %2785
  %2787 = vrot.lane.b32.xlu0 %v2709, 120
  %v2788 = vpop.permute.xlu0 %2787
  %2789 = vrot.lane.b32.xlu0 %v2710, 120
  %v2790 = vpop.permute.xlu0 %2789
  %vm2791 = vcmask 982016
  %v2792 = vsel %vm2791, %v2760, %v2762
  %v2793 = vsel %vm2791, %v2762, %v2764
  %v2794 = vsel %vm2791, %v2764, %v2766
  %v2795 = vsel %vm2791, %v2766, %v2768
  %v2796 = vsel %vm2791, %v2768, %v2770
  %v2797 = vsel %vm2791, %v2770, %v2772
  %v2798 = vsel %vm2791, %v2772, %v2774
  %v2799 = vsel %vm2791, %v2774, %v2776
  %v2800 = vsel %vm2791, %v2776, %v2778
  %v2801 = vsel %vm2791, %v2778, %v2780
  %v2802 = vsel %vm2791, %v2780, %v2782
  %v2803 = vsel %vm2791, %v2782, %v2784
  %v2804 = vsel %vm2791, %v2784, %v2786
  %v2805 = vsel %vm2791, %v2786, %v2788
  %v2806 = vsel %vm2791, %v2788, %v2790
  %2807 = vrot.lane.b32.xlu0 0, 8
  %v2808 = vpop.permute.xlu0 %2807
  %2809 = vrot.lane.b32.xlu0 %v2696, 8
  %v2810 = vpop.permute.xlu0 %2809
  %2811 = vrot.lane.b32.xlu0 %v2697, 8
  %v2812 = vpop.permute.xlu0 %2811
  %2813 = vrot.lane.b32.xlu0 %v2698, 8
  %v2814 = vpop.permute.xlu0 %2813
  %2815 = vrot.lane.b32.xlu0 %v2699, 8
  %v2816 = vpop.permute.xlu0 %2815
  %2817 = vrot.lane.b32.xlu0 %v2700, 8
  %v2818 = vpop.permute.xlu0 %2817
  %2819 = vrot.lane.b32.xlu0 %v2701, 8
  %v2820 = vpop.permute.xlu0 %2819
  %2821 = vrot.lane.b32.xlu0 %v2702, 8
  %v2822 = vpop.permute.xlu0 %2821
  %2823 = vrot.lane.b32.xlu0 %v2703, 8
  %v2824 = vpop.permute.xlu0 %2823
  %2825 = vrot.lane.b32.xlu0 %v2704, 8
  %v2826 = vpop.permute.xlu0 %2825
  %2827 = vrot.lane.b32.xlu0 %v2705, 8
  %v2828 = vpop.permute.xlu0 %2827
  %2829 = vrot.lane.b32.xlu0 %v2706, 8
  %v2830 = vpop.permute.xlu0 %2829
  %2831 = vrot.lane.b32.xlu0 %v2707, 8
  %v2832 = vpop.permute.xlu0 %2831
  %2833 = vrot.lane.b32.xlu0 %v2708, 8
  %v2834 = vpop.permute.xlu0 %2833
  %2835 = vrot.lane.b32.xlu0 %v2709, 8
  %v2836 = vpop.permute.xlu0 %2835
  %2837 = vrot.lane.b32.xlu0 %v2710, 8
  %v2838 = vpop.permute.xlu0 %2837
  %v2839 = vsel %vm975, %v2808, %v2810
  %v2840 = vsel %vm975, %v2810, %v2812
  %v2841 = vsel %vm975, %v2812, %v2814
  %v2842 = vsel %vm975, %v2814, %v2816
  %v2843 = vsel %vm975, %v2816, %v2818
  %v2844 = vsel %vm975, %v2818, %v2820
  %v2845 = vsel %vm975, %v2820, %v2822
  %v2846 = vsel %vm975, %v2822, %v2824
  %v2847 = vsel %vm975, %v2824, %v2826
  %v2848 = vsel %vm975, %v2826, %v2828
  %v2849 = vsel %vm975, %v2828, %v2830
  %v2850 = vsel %vm975, %v2830, %v2832
  %v2851 = vsel %vm975, %v2832, %v2834
  %v2852 = vsel %vm975, %v2834, %v2836
  %v2853 = vsel %vm975, %v2836, %v2838
  %2854 = vrot.lane.b32.xlu0 %v2696, 4
  %v2855 = vpop.permute.xlu0 %2854
  %2856 = vrot.lane.b32.xlu0 %v2697, 4
  %v2857 = vpop.permute.xlu0 %2856
  %2858 = vrot.lane.b32.xlu0 %v2698, 4
  %v2859 = vpop.permute.xlu0 %2858
  %2860 = vrot.lane.b32.xlu0 %v2699, 4
  %v2861 = vpop.permute.xlu0 %2860
  %2862 = vrot.lane.b32.xlu0 %v2700, 4
  %v2863 = vpop.permute.xlu0 %2862
  %2864 = vrot.lane.b32.xlu0 %v2701, 4
  %v2865 = vpop.permute.xlu0 %2864
  %2866 = vrot.lane.b32.xlu0 %v2702, 4
  %v2867 = vpop.permute.xlu0 %2866
  %2868 = vrot.lane.b32.xlu0 %v2703, 4
  %v2869 = vpop.permute.xlu0 %2868
  %2870 = vrot.lane.b32.xlu0 %v2704, 4
  %v2871 = vpop.permute.xlu0 %2870
  %2872 = vrot.lane.b32.xlu0 %v2705, 4
  %v2873 = vpop.permute.xlu0 %2872
  %2874 = vrot.lane.b32.xlu0 %v2706, 4
  %v2875 = vpop.permute.xlu0 %2874
  %2876 = vrot.lane.b32.xlu0 %v2707, 4
  %v2877 = vpop.permute.xlu0 %2876
  %2878 = vrot.lane.b32.xlu0 %v2708, 4
  %v2879 = vpop.permute.xlu0 %2878
  %2880 = vrot.lane.b32.xlu0 %v2709, 4
  %v2881 = vpop.permute.xlu0 %2880
  %2882 = vrot.lane.b32.xlu0 %v2710, 4
  %v2883 = vpop.permute.xlu0 %2882
  %v2884 = vsel %vm1258, %v2855, %v2857
  %v2885 = vsel %vm1258, %v2857, %v2859
  %v2886 = vsel %vm1258, %v2859, %v2861
  %v2887 = vsel %vm1258, %v2861, %v2863
  %v2888 = vsel %vm1258, %v2863, %v2865
  %v2889 = vsel %vm1258, %v2865, %v2867
  %v2890 = vsel %vm1258, %v2867, %v2869
  %v2891 = vsel %vm1258, %v2869, %v2871
  %v2892 = vsel %vm1258, %v2871, %v2873
  %v2893 = vsel %vm1258, %v2873, %v2875
  %v2894 = vsel %vm1258, %v2875, %v2877
  %v2895 = vsel %vm1258, %v2877, %v2879
  %v2896 = vsel %vm1258, %v2879, %v2881
  %v2897 = vsel %vm1258, %v2881, %v2883
  %2898 = vrot.lane.b32.xlu0 %v2696, 16
  %v2899 = vpop.permute.xlu0 %2898
  %2900 = vrot.lane.b32.xlu0 %v2697, 16
  %v2901 = vpop.permute.xlu0 %2900
  %2902 = vrot.lane.b32.xlu0 %v2698, 16
  %v2903 = vpop.permute.xlu0 %2902
  %2904 = vrot.lane.b32.xlu0 %v2699, 16
  %v2905 = vpop.permute.xlu0 %2904
  %2906 = vrot.lane.b32.xlu0 %v2700, 16
  %v2907 = vpop.permute.xlu0 %2906
  %2908 = vrot.lane.b32.xlu0 %v2701, 16
  %v2909 = vpop.permute.xlu0 %2908
  %2910 = vrot.lane.b32.xlu0 %v2702, 16
  %v2911 = vpop.permute.xlu0 %2910
  %2912 = vrot.lane.b32.xlu0 %v2703, 16
  %v2913 = vpop.permute.xlu0 %2912
  %2914 = vrot.lane.b32.xlu0 %v2704, 16
  %v2915 = vpop.permute.xlu0 %2914
  %2916 = vrot.lane.b32.xlu0 %v2705, 16
  %v2917 = vpop.permute.xlu0 %2916
  %2918 = vrot.lane.b32.xlu0 %v2706, 16
  %v2919 = vpop.permute.xlu0 %2918
  %2920 = vrot.lane.b32.xlu0 %v2707, 16
  %v2921 = vpop.permute.xlu0 %2920
  %2922 = vrot.lane.b32.xlu0 %v2708, 16
  %v2923 = vpop.permute.xlu0 %2922
  %2924 = vrot.lane.b32.xlu0 %v2709, 16
  %v2925 = vpop.permute.xlu0 %2924
  %2926 = vrot.lane.b32.xlu0 %v2710, 16
  %v2927 = vpop.permute.xlu0 %2926
  %2928 = vrot.lane.b32.xlu0 0, 16
  %v2929 = vpop.permute.xlu0 %2928
  %vm2930 = vcmask 130048
  %v2931 = vsel %vm2930, %v2899, %v2901
  %v2932 = vsel %vm2930, %v2901, %v2903
  %v2933 = vsel %vm2930, %v2903, %v2905
  %v2934 = vsel %vm2930, %v2905, %v2907
  %v2935 = vsel %vm2930, %v2907, %v2909
  %v2936 = vsel %vm2930, %v2909, %v2911
  %v2937 = vsel %vm2930, %v2911, %v2913
  %v2938 = vsel %vm2930, %v2913, %v2915
  %v2939 = vsel %vm2930, %v2915, %v2917
  %v2940 = vsel %vm2930, %v2917, %v2919
  %v2941 = vsel %vm2930, %v2919, %v2921
  %v2942 = vsel %vm2930, %v2921, %v2923
  %v2943 = vsel %vm2930, %v2923, %v2925
  %v2944 = vsel %vm2930, %v2925, %v2927
  %v2945 = vsel %vm2930, %v2927, %v2929
  %2946 = vrot.lane.b32.xlu0 %v2696, 12
  %v2947 = vpop.permute.xlu0 %2946
  %2948 = vrot.lane.b32.xlu0 %v2697, 12
  %v2949 = vpop.permute.xlu0 %2948
  %2950 = vrot.lane.b32.xlu0 %v2698, 12
  %v2951 = vpop.permute.xlu0 %2950
  %2952 = vrot.lane.b32.xlu0 %v2699, 12
  %v2953 = vpop.permute.xlu0 %2952
  %2954 = vrot.lane.b32.xlu0 %v2700, 12
  %v2955 = vpop.permute.xlu0 %2954
  %2956 = vrot.lane.b32.xlu0 %v2701, 12
  %v2957 = vpop.permute.xlu0 %2956
  %2958 = vrot.lane.b32.xlu0 %v2702, 12
  %v2959 = vpop.permute.xlu0 %2958
  %2960 = vrot.lane.b32.xlu0 %v2703, 12
  %v2961 = vpop.permute.xlu0 %2960
  %2962 = vrot.lane.b32.xlu0 %v2704, 12
  %v2963 = vpop.permute.xlu0 %2962
  %2964 = vrot.lane.b32.xlu0 %v2705, 12
  %v2965 = vpop.permute.xlu0 %2964
  %2966 = vrot.lane.b32.xlu0 %v2706, 12
  %v2967 = vpop.permute.xlu0 %2966
  %2968 = vrot.lane.b32.xlu0 %v2707, 12
  %v2969 = vpop.permute.xlu0 %2968
  %2970 = vrot.lane.b32.xlu0 %v2708, 12
  %v2971 = vpop.permute.xlu0 %2970
  %2972 = vrot.lane.b32.xlu0 %v2709, 12
  %v2973 = vpop.permute.xlu0 %2972
  %2974 = vrot.lane.b32.xlu0 %v2710, 12
  %v2975 = vpop.permute.xlu0 %2974
  %2976 = vrot.lane.b32.xlu0 0, 12
  %v2977 = vpop.permute.xlu0 %2976
  %vm2978 = vcmask 97280
  %v2979 = vsel %vm2978, %v2947, %v2949
  %v2980 = vsel %vm2978, %v2949, %v2951
  %v2981 = vsel %vm2978, %v2951, %v2953
  %v2982 = vsel %vm2978, %v2953, %v2955
  %v2983 = vsel %vm2978, %v2955, %v2957
  %v2984 = vsel %vm2978, %v2957, %v2959
  %v2985 = vsel %vm2978, %v2959, %v2961
  %v2986 = vsel %vm2978, %v2961, %v2963
  %v2987 = vsel %vm2978, %v2963, %v2965
  %v2988 = vsel %vm2978, %v2965, %v2967
  %v2989 = vsel %vm2978, %v2967, %v2969
  %v2990 = vsel %vm2978, %v2969, %v2971
  %v2991 = vsel %vm2978, %v2971, %v2973
  %v2992 = vsel %vm2978, %v2973, %v2975
  %v2993 = vsel %vm2978, %v2975, %v2977
  %v2994 = vsel %vm975, %v2838, %v2808
  %v2995 = vld [vmem:[%s4] sm:$0xff]
  %v2996 = vld [vmem:[%s4 + $0x8] sm:$0xff]
  %v2997 = vld [vmem:[%s4 + $0x10] sm:$0xff]
  %v2998 = vld [vmem:[%s4 + $0x18] sm:$0xff]
  %v3003 = vunpack.c.l.b16 %v2995
  %v3004 = vunpack.c.h.b16 %v2995
  %v3005 = vunpack.c.l.b16 %v2996
  %v3006 = vunpack.c.h.b16 %v2996
  %v3007 = vunpack.c.l.b16 %v2997
  %v3008 = vunpack.c.h.b16 %v2997
  %v3009 = vunpack.c.l.b16 %v2998
  %v3010 = vunpack.c.h.b16 %v2998
  %v3011 = vpack.c.b16 %v3005, %v3003
  %v3012 = vpack.c.b16 %v3006, %v3004
  %v3013 = vpack.c.b16 %v3009, %v3007
  %v3014 = vpack.c.b16 %v3010, %v3008
  %3017 = vrot.lane.b32.xlu0 %v2744, 124
  %v3018 = vpop.permute.xlu0 %3017
  %3019 = vrot.lane.b32.xlu0 %v2745, 124
  %v3020 = vpop.permute.xlu0 %3019
  %3021 = vrot.lane.b32.xlu0 %v2746, 124
  %v3022 = vpop.permute.xlu0 %3021
  %3023 = vrot.lane.b32.xlu0 %v2747, 124
  %v3024 = vpop.permute.xlu0 %3023
  %3025 = vrot.lane.b32.xlu0 %v2748, 124
  %v3026 = vpop.permute.xlu0 %3025
  %3027 = vrot.lane.b32.xlu0 %v2749, 124
  %v3028 = vpop.permute.xlu0 %3027
  %3029 = vrot.lane.b32.xlu0 %v2750, 124
  %v3030 = vpop.permute.xlu0 %3029
  %3031 = vrot.lane.b32.xlu0 %v2751, 124
  %v3032 = vpop.permute.xlu0 %3031
  %3033 = vrot.lane.b32.xlu0 %v2752, 124
  %v3034 = vpop.permute.xlu0 %3033
  %3035 = vrot.lane.b32.xlu0 %v2753, 124
  %v3036 = vpop.permute.xlu0 %3035
  %3037 = vrot.lane.b32.xlu0 %v2754, 124
  %v3038 = vpop.permute.xlu0 %3037
  %3039 = vrot.lane.b32.xlu0 %v2755, 124
  %v3040 = vpop.permute.xlu0 %3039
  %3041 = vrot.lane.b32.xlu0 %v2756, 124
  %v3042 = vpop.permute.xlu0 %3041
  %3043 = vrot.lane.b32.xlu0 %v2757, 124
  %v3044 = vpop.permute.xlu0 %3043
  %3045 = vrot.lane.b32.xlu0 %v2758, 124
  %v3046 = vpop.permute.xlu0 %3045
  %3047 = vrot.lane.b32.xlu0 %v2743, 124
  %v3048 = vpop.permute.xlu0 %3047
  %3049 = vrot.lane.b32.xlu0 %v2792, 124
  %v3050 = vpop.permute.xlu0 %3049
  %3051 = vrot.lane.b32.xlu0 %v2793, 124
  %v3052 = vpop.permute.xlu0 %3051
  %3053 = vrot.lane.b32.xlu0 %v2794, 124
  %v3054 = vpop.permute.xlu0 %3053
  %3055 = vrot.lane.b32.xlu0 %v2795, 124
  %v3056 = vpop.permute.xlu0 %3055
  %3057 = vrot.lane.b32.xlu0 %v2796, 124
  %v3058 = vpop.permute.xlu0 %3057
  %3059 = vrot.lane.b32.xlu0 %v2797, 124
  %v3060 = vpop.permute.xlu0 %3059
  %3061 = vrot.lane.b32.xlu0 %v2798, 124
  %v3062 = vpop.permute.xlu0 %3061
  %3063 = vrot.lane.b32.xlu0 %v2799, 124
  %v3064 = vpop.permute.xlu0 %3063
  %3065 = vrot.lane.b32.xlu0 %v2800, 124
  %v3066 = vpop.permute.xlu0 %3065
  %3067 = vrot.lane.b32.xlu0 %v2801, 124
  %v3068 = vpop.permute.xlu0 %3067
  %3069 = vrot.lane.b32.xlu0 %v2802, 124
  %v3070 = vpop.permute.xlu0 %3069
  %3071 = vrot.lane.b32.xlu0 %v2803, 124
  %v3072 = vpop.permute.xlu0 %3071
  %3073 = vrot.lane.b32.xlu0 %v2804, 124
  %v3074 = vpop.permute.xlu0 %3073
  %3075 = vrot.lane.b32.xlu0 %v2805, 124
  %v3076 = vpop.permute.xlu0 %3075
  %3077 = vrot.lane.b32.xlu0 %v2806, 124
  %v3078 = vpop.permute.xlu0 %3077
  %3079 = vrot.lane.b32.xlu0 %v2790, 124
  %v3080 = vpop.permute.xlu0 %3079
  %3081 = vrot.lane.b32.xlu0 %v2839, 124
  %v3082 = vpop.permute.xlu0 %3081
  %3083 = vrot.lane.b32.xlu0 %v2840, 124
  %v3084 = vpop.permute.xlu0 %3083
  %3085 = vrot.lane.b32.xlu0 %v2841, 124
  %v3086 = vpop.permute.xlu0 %3085
  %3087 = vrot.lane.b32.xlu0 %v2842, 124
  %v3088 = vpop.permute.xlu0 %3087
  %3089 = vrot.lane.b32.xlu0 %v2843, 124
  %v3090 = vpop.permute.xlu0 %3089
  %3091 = vrot.lane.b32.xlu0 %v2844, 124
  %v3092 = vpop.permute.xlu0 %3091
  %3093 = vrot.lane.b32.xlu0 %v2845, 124
  %v3094 = vpop.permute.xlu0 %3093
  %3095 = vrot.lane.b32.xlu0 %v2846, 124
  %v3096 = vpop.permute.xlu0 %3095
  %3097 = vrot.lane.b32.xlu0 %v2847, 124
  %v3098 = vpop.permute.xlu0 %3097
  %3099 = vrot.lane.b32.xlu0 %v2848, 124
  %v3100 = vpop.permute.xlu0 %3099
  %3101 = vrot.lane.b32.xlu0 %v2849, 124
  %v3102 = vpop.permute.xlu0 %3101
  %3103 = vrot.lane.b32.xlu0 %v2850, 124
  %v3104 = vpop.permute.xlu0 %3103
  %3105 = vrot.lane.b32.xlu0 %v2851, 124
  %v3106 = vpop.permute.xlu0 %3105
  %3107 = vrot.lane.b32.xlu0 %v2852, 124
  %v3108 = vpop.permute.xlu0 %3107
  %3109 = vrot.lane.b32.xlu0 %v2853, 124
  %v3110 = vpop.permute.xlu0 %3109
  %3111 = vrot.lane.b32.xlu0 %v2838, 124
  %v3112 = vpop.permute.xlu0 %3111
  %3113 = vrot.lane.b32.xlu0 %v2855, 124
  %v3114 = vpop.permute.xlu0 %3113
  %3115 = vrot.lane.b32.xlu0 %v2884, 124
  %v3116 = vpop.permute.xlu0 %3115
  %3117 = vrot.lane.b32.xlu0 %v2885, 124
  %v3118 = vpop.permute.xlu0 %3117
  %3119 = vrot.lane.b32.xlu0 %v2886, 124
  %v3120 = vpop.permute.xlu0 %3119
  %3121 = vrot.lane.b32.xlu0 %v2887, 124
  %v3122 = vpop.permute.xlu0 %3121
  %3123 = vrot.lane.b32.xlu0 %v2888, 124
  %v3124 = vpop.permute.xlu0 %3123
  %3125 = vrot.lane.b32.xlu0 %v2889, 124
  %v3126 = vpop.permute.xlu0 %3125
  %3127 = vrot.lane.b32.xlu0 %v2890, 124
  %v3128 = vpop.permute.xlu0 %3127
  %3129 = vrot.lane.b32.xlu0 %v2891, 124
  %v3130 = vpop.permute.xlu0 %3129
  %3131 = vrot.lane.b32.xlu0 %v2892, 124
  %v3132 = vpop.permute.xlu0 %3131
  %3133 = vrot.lane.b32.xlu0 %v2893, 124
  %v3134 = vpop.permute.xlu0 %3133
  %3135 = vrot.lane.b32.xlu0 %v2894, 124
  %v3136 = vpop.permute.xlu0 %3135
  %3137 = vrot.lane.b32.xlu0 %v2895, 124
  %v3138 = vpop.permute.xlu0 %3137
  %3139 = vrot.lane.b32.xlu0 %v2896, 124
  %v3140 = vpop.permute.xlu0 %3139
  %3141 = vrot.lane.b32.xlu0 %v2897, 124
  %v3142 = vpop.permute.xlu0 %3141
  %3143 = vrot.lane.b32.xlu0 %v2883, 124
  %v3144 = vpop.permute.xlu0 %3143
  %3145 = vrot.lane.b32.xlu0 %v2931, 124
  %v3146 = vpop.permute.xlu0 %3145
  %3147 = vrot.lane.b32.xlu0 %v2932, 124
  %v3148 = vpop.permute.xlu0 %3147
  %3149 = vrot.lane.b32.xlu0 %v2933, 124
  %v3150 = vpop.permute.xlu0 %3149
  %3151 = vrot.lane.b32.xlu0 %v2934, 124
  %v3152 = vpop.permute.xlu0 %3151
  %3153 = vrot.lane.b32.xlu0 %v2935, 124
  %v3154 = vpop.permute.xlu0 %3153
  %3155 = vrot.lane.b32.xlu0 %v2936, 124
  %v3156 = vpop.permute.xlu0 %3155
  %3157 = vrot.lane.b32.xlu0 %v2937, 124
  %v3158 = vpop.permute.xlu0 %3157
  %3159 = vrot.lane.b32.xlu0 %v2938, 124
  %v3160 = vpop.permute.xlu0 %3159
  %3161 = vrot.lane.b32.xlu0 %v2939, 124
  %v3162 = vpop.permute.xlu0 %3161
  %3163 = vrot.lane.b32.xlu0 %v2940, 124
  %v3164 = vpop.permute.xlu0 %3163
  %3165 = vrot.lane.b32.xlu0 %v2941, 124
  %v3166 = vpop.permute.xlu0 %3165
  %3167 = vrot.lane.b32.xlu0 %v2942, 124
  %v3168 = vpop.permute.xlu0 %3167
  %3169 = vrot.lane.b32.xlu0 %v2943, 124
  %v3170 = vpop.permute.xlu0 %3169
  %3171 = vrot.lane.b32.xlu0 %v2944, 124
  %v3172 = vpop.permute.xlu0 %3171
  %3173 = vrot.lane.b32.xlu0 %v2945, 124
  %v3174 = vpop.permute.xlu0 %3173
  %3175 = vrot.lane.b32.xlu0 %v2929, 124
  %v3176 = vpop.permute.xlu0 %3175
  %3177 = vrot.lane.b32.xlu0 %v2979, 124
  %v3178 = vpop.permute.xlu0 %3177
  %3179 = vrot.lane.b32.xlu0 %v2980, 124
  %v3180 = vpop.permute.xlu0 %3179
  %3181 = vrot.lane.b32.xlu0 %v2981, 124
  %v3182 = vpop.permute.xlu0 %3181
  %3183 = vrot.lane.b32.xlu0 %v2982, 124
  %v3184 = vpop.permute.xlu0 %3183
  %3185 = vrot.lane.b32.xlu0 %v2983, 124
  %v3186 = vpop.permute.xlu0 %3185
  %3187 = vrot.lane.b32.xlu0 %v2984, 124
  %v3188 = vpop.permute.xlu0 %3187
  %3189 = vrot.lane.b32.xlu0 %v2985, 124
  %v3190 = vpop.permute.xlu0 %3189
  %3191 = vrot.lane.b32.xlu0 %v2986, 124
  %v3192 = vpop.permute.xlu0 %3191
  %3193 = vrot.lane.b32.xlu0 %v2987, 124
  %v3194 = vpop.permute.xlu0 %3193
  %3195 = vrot.lane.b32.xlu0 %v2988, 124
  %v3196 = vpop.permute.xlu0 %3195
  %3197 = vrot.lane.b32.xlu0 %v2989, 124
  %v3198 = vpop.permute.xlu0 %3197
  %3199 = vrot.lane.b32.xlu0 %v2990, 124
  %v3200 = vpop.permute.xlu0 %3199
  %3201 = vrot.lane.b32.xlu0 %v2991, 124
  %v3202 = vpop.permute.xlu0 %3201
  %3203 = vrot.lane.b32.xlu0 %v2992, 124
  %v3204 = vpop.permute.xlu0 %3203
  %3205 = vrot.lane.b32.xlu0 %v2993, 124
  %v3206 = vpop.permute.xlu0 %3205
  %3207 = vrot.lane.b32.xlu0 %v2977, 124
  %v3208 = vpop.permute.xlu0 %3207
  %3209 = vrot.lane.b32.xlu0 %v2994, 124
  %v3210 = vpop.permute.xlu0 %3209
  %3211 = vrot.lane.b32.xlu0 %v2808, 124
  %v3212 = vpop.permute.xlu0 %3211
  %v3213 = vsel %vm363, %v3018, %v3020
  %v3214 = vsel %vm363, %v3020, %v3022
  %v3215 = vsel %vm363, %v3022, %v3024
  %v3216 = vsel %vm363, %v3024, %v3026
  %v3217 = vsel %vm363, %v3026, %v3028
  %v3218 = vsel %vm363, %v3028, %v3030
  %v3219 = vsel %vm363, %v3030, %v3032
  %v3220 = vsel %vm363, %v3032, %v3034
  %v3221 = vsel %vm363, %v3034, %v3036
  %v3222 = vsel %vm363, %v3036, %v3038
  %v3223 = vsel %vm363, %v3038, %v3040
  %v3224 = vsel %vm363, %v3040, %v3042
  %v3225 = vsel %vm363, %v3042, %v3044
  %v3226 = vsel %vm363, %v3044, %v3046
  %v3227 = vsel %vm363, %v3046, %v3048
  %v3228 = vsel %vm363, %v3050, %v3052
  %v3229 = vsel %vm363, %v3052, %v3054
  %v3230 = vsel %vm363, %v3054, %v3056
  %v3231 = vsel %vm363, %v3056, %v3058
  %v3232 = vsel %vm363, %v3058, %v3060
  %v3233 = vsel %vm363, %v3060, %v3062
  %v3234 = vsel %vm363, %v3062, %v3064
  %v3235 = vsel %vm363, %v3064, %v3066
  %v3236 = vsel %vm363, %v3066, %v3068
  %v3237 = vsel %vm363, %v3068, %v3070
  %v3238 = vsel %vm363, %v3070, %v3072
  %v3239 = vsel %vm363, %v3072, %v3074
  %v3240 = vsel %vm363, %v3074, %v3076
  %v3241 = vsel %vm363, %v3076, %v3078
  %v3242 = vsel %vm363, %v3078, %v3080
  %v3243 = vsel %vm363, %v3082, %v3084
  %v3244 = vsel %vm363, %v3084, %v3086
  %v3245 = vsel %vm363, %v3086, %v3088
  %v3246 = vsel %vm363, %v3088, %v3090
  %v3247 = vsel %vm363, %v3090, %v3092
  %v3248 = vsel %vm363, %v3092, %v3094
  %v3249 = vsel %vm363, %v3094, %v3096
  %v3250 = vsel %vm363, %v3096, %v3098
  %v3251 = vsel %vm363, %v3098, %v3100
  %v3252 = vsel %vm363, %v3100, %v3102
  %v3253 = vsel %vm363, %v3102, %v3104
  %v3254 = vsel %vm363, %v3104, %v3106
  %v3255 = vsel %vm363, %v3106, %v3108
  %v3256 = vsel %vm363, %v3108, %v3110
  %v3257 = vsel %vm363, %v3110, %v3112
  %v3258 = vsel %vm363, %v3114, %v3116
  %v3259 = vsel %vm363, %v3116, %v3118
  %v3260 = vsel %vm363, %v3118, %v3120
  %v3261 = vsel %vm363, %v3120, %v3122
  %v3262 = vsel %vm363, %v3122, %v3124
  %v3263 = vsel %vm363, %v3124, %v3126
  %v3264 = vsel %vm363, %v3126, %v3128
  %v3265 = vsel %vm363, %v3128, %v3130
  %v3266 = vsel %vm363, %v3130, %v3132
  %v3267 = vsel %vm363, %v3132, %v3134
  %v3268 = vsel %vm363, %v3134, %v3136
  %v3269 = vsel %vm363, %v3136, %v3138
  %v3270 = vsel %vm363, %v3138, %v3140
  %v3271 = vsel %vm363, %v3140, %v3142
  %v3272 = vsel %vm363, %v3142, %v3144
  %v3273 = vsel %vm363, %v2743, %v2713
  %v3274 = vsel %vm363, %v3146, %v3148
  %v3275 = vsel %vm363, %v3148, %v3150
  %v3276 = vsel %vm363, %v3150, %v3152
  %v3277 = vsel %vm363, %v3152, %v3154
  %v3278 = vsel %vm363, %v3154, %v3156
  %v3279 = vsel %vm363, %v3156, %v3158
  %v3280 = vsel %vm363, %v3158, %v3160
  %v3281 = vsel %vm363, %v3160, %v3162
  %v3282 = vsel %vm363, %v3162, %v3164
  %v3283 = vsel %vm363, %v3164, %v3166
  %v3284 = vsel %vm363, %v3166, %v3168
  %v3285 = vsel %vm363, %v3168, %v3170
  %v3286 = vsel %vm363, %v3170, %v3172
  %v3287 = vsel %vm363, %v3172, %v3174
  %v3288 = vsel %vm363, %v3174, %v3176
  %v3289 = vsel %vm363, %v3178, %v3180
  %v3290 = vsel %vm363, %v3180, %v3182
  %v3291 = vsel %vm363, %v3182, %v3184
  %v3292 = vsel %vm363, %v3184, %v3186
  %v3293 = vsel %vm363, %v3186, %v3188
  %v3294 = vsel %vm363, %v3188, %v3190
  %v3295 = vsel %vm363, %v3190, %v3192
  %v3296 = vsel %vm363, %v3192, %v3194
  %v3297 = vsel %vm363, %v3194, %v3196
  %v3298 = vsel %vm363, %v3196, %v3198
  %v3299 = vsel %vm363, %v3198, %v3200
  %v3300 = vsel %vm363, %v3200, %v3202
  %v3301 = vsel %vm363, %v3202, %v3204
  %v3302 = vsel %vm363, %v3204, %v3206
  %v3303 = vsel %vm363, %v3206, %v3208
  %v3304 = vsel %vm363, %v3110, %v3210
  %v3305 = vsel %vm363, %v3210, %v3212
  %vm3414 = vcmask 130048
  %v3416 = vsel %vm3414, %v3012, 0
  %v3419 = vsel %vm3414, %v3014, 0
  %3421 = vmatpush.bf16.msra.mxu0 %v3289
  %3422 = vmatpush.bf16.msra.mxu0 %v3274
  %3423 = vmatpush.bf16.msra.mxu0 %v2745
  %3424 = vmatpush.bf16.msra.mxu0 %v3258
  %3425 = vmatpush.bf16.msra.mxu0 %v3243
  %3426 = vmatpush.bf16.msra.mxu0 %v3228
  %3427 = vmatpush.bf16.msra.mxu0 %v3213
  %3428 = vmatpush.bf16.msra.mxu0 %v2744
  %3429 = vmatmul.bf16.gmra.mxu0 %v3011
  %v3430 = vpop.f32.mrf.mxu0
  %v3431 = vadd.f32 0.0, %v3430
  %v3432 = vpop.f32.mrf.mxu0
  %v3433 = vadd.f32 0.0, %v3432
  %3434 = vmatmul.bf16.gmra.mxu0 %v3013
  %v3435 = vpop.f32.mrf.mxu0
  %v3436 = vadd.f32 0.0, %v3435
  %v3437 = vpop.f32.mrf.mxu0
  %v3438 = vadd.f32 0.0, %v3437
  %3439 = vdwg.mxu0
  %3440 = vmatpush.bf16.msra.mxu0 0
  %3441 = vmatpush.bf16.msra.mxu0 0
  %3442 = vmatpush.bf16.msra.mxu0 0
  %3443 = vmatpush.bf16.msra.mxu0 0
  %3444 = vmatpush.bf16.msra.mxu0 0
  %3445 = vmatpush.bf16.msra.mxu0 0
  %3446 = vmatpush.bf16.msra.mxu0 0
  %3447 = vmatpush.bf16.msra.mxu0 %v3244
  %3448 = vmatmul.bf16.gmra.mxu0 %v3416
  %v3449 = vpop.f32.mrf.mxu0
  %v3450 = vadd.f32 %v3431, %v3449
  %v3451 = vpop.f32.mrf.mxu0
  %v3452 = vadd.f32 %v3433, %v3451
  %3453 = vmatmul.bf16.gmra.mxu0 %v3419
  %v3454 = vpop.f32.mrf.mxu0
  %v3455 = vadd.f32 %v3436, %v3454
  %v3456 = vpop.f32.mrf.mxu0
  %v3457 = vadd.f32 %v3438, %v3456
  %3458 = vdwg.mxu0
  %3459 = vmatpush.bf16.msra.mxu0 %v3290
  %3460 = vmatpush.bf16.msra.mxu0 %v3275
  %3461 = vmatpush.bf16.msra.mxu0 %v2746
  %3462 = vmatpush.bf16.msra.mxu0 %v3259
  %3463 = vmatpush.bf16.msra.mxu0 %v3244
  %3464 = vmatpush.bf16.msra.mxu0 %v3229
  %3465 = vmatpush.bf16.msra.mxu0 %v3214
  %3466 = vmatpush.bf16.msra.mxu0 %v2745
  %3467 = vmatmul.bf16.gmra.mxu0 %v3011
  %v3468 = vpop.f32.mrf.mxu0
  %v3469 = vadd.f32 0.0, %v3468
  %v3470 = vpop.f32.mrf.mxu0
  %v3471 = vadd.f32 0.0, %v3470
  %3472 = vmatmul.bf16.gmra.mxu0 %v3013
  %v3473 = vpop.f32.mrf.mxu0
  %v3474 = vadd.f32 0.0, %v3473
  %v3475 = vpop.f32.mrf.mxu0
  %v3476 = vadd.f32 0.0, %v3475
  %3477 = vdwg.mxu0
  %3478 = vmatpush.bf16.msra.mxu0 0
  %3479 = vmatpush.bf16.msra.mxu0 0
  %3480 = vmatpush.bf16.msra.mxu0 0
  %3481 = vmatpush.bf16.msra.mxu0 0
  %3482 = vmatpush.bf16.msra.mxu0 0
  %3483 = vmatpush.bf16.msra.mxu0 0
  %3484 = vmatpush.bf16.msra.mxu0 0
  %3485 = vmatpush.bf16.msra.mxu0 %v3245
  %3486 = vmatmul.bf16.gmra.mxu0 %v3416
  %v3487 = vpop.f32.mrf.mxu0
  %v3488 = vadd.f32 %v3469, %v3487
  %v3489 = vpop.f32.mrf.mxu0
  %v3490 = vadd.f32 %v3471, %v3489
  %3491 = vmatmul.bf16.gmra.mxu0 %v3419
  %v3492 = vpop.f32.mrf.mxu0
  %v3493 = vadd.f32 %v3474, %v3492
  %v3494 = vpop.f32.mrf.mxu0
  %v3495 = vadd.f32 %v3476, %v3494
  %3496 = vdwg.mxu0
  %3497 = vmatpush.bf16.msra.mxu0 %v3291
  %3498 = vmatpush.bf16.msra.mxu0 %v3276
  %3499 = vmatpush.bf16.msra.mxu0 %v2747
  %3500 = vmatpush.bf16.msra.mxu0 %v3260
  %3501 = vmatpush.bf16.msra.mxu0 %v3245
  %3502 = vmatpush.bf16.msra.mxu0 %v3230
  %3503 = vmatpush.bf16.msra.mxu0 %v3215
  %3504 = vmatpush.bf16.msra.mxu0 %v2746
  %3505 = vmatmul.bf16.gmra.mxu0 %v3011
  %v3506 = vpop.f32.mrf.mxu0
  %v3507 = vadd.f32 0.0, %v3506
  %v3508 = vpop.f32.mrf.mxu0
  %v3509 = vadd.f32 0.0, %v3508
  %3510 = vmatmul.bf16.gmra.mxu0 %v3013
  %v3511 = vpop.f32.mrf.mxu0
  %v3512 = vadd.f32 0.0, %v3511
  %v3513 = vpop.f32.mrf.mxu0
  %v3514 = vadd.f32 0.0, %v3513
  %3515 = vdwg.mxu0
  %3516 = vmatpush.bf16.msra.mxu0 0
  %3517 = vmatpush.bf16.msra.mxu0 0
  %3518 = vmatpush.bf16.msra.mxu0 0
  %3519 = vmatpush.bf16.msra.mxu0 0
  %3520 = vmatpush.bf16.msra.mxu0 0
  %3521 = vmatpush.bf16.msra.mxu0 0
  %3522 = vmatpush.bf16.msra.mxu0 0
  %3523 = vmatpush.bf16.msra.mxu0 %v3246
  %3524 = vmatmul.bf16.gmra.mxu0 %v3416
  %v3525 = vpop.f32.mrf.mxu0
  %v3526 = vadd.f32 %v3507, %v3525
  %v3527 = vpop.f32.mrf.mxu0
  %v3528 = vadd.f32 %v3509, %v3527
  %3529 = vmatmul.bf16.gmra.mxu0 %v3419
  %v3530 = vpop.f32.mrf.mxu0
  %v3531 = vadd.f32 %v3512, %v3530
  %v3532 = vpop.f32.mrf.mxu0
  %v3533 = vadd.f32 %v3514, %v3532
  %3534 = vdwg.mxu0
  %3535 = vmatpush.bf16.msra.mxu0 %v3292
  %3536 = vmatpush.bf16.msra.mxu0 %v3277
  %3537 = vmatpush.bf16.msra.mxu0 %v2748
  %3538 = vmatpush.bf16.msra.mxu0 %v3261
  %3539 = vmatpush.bf16.msra.mxu0 %v3246
  %3540 = vmatpush.bf16.msra.mxu0 %v3231
  %3541 = vmatpush.bf16.msra.mxu0 %v3216
  %3542 = vmatpush.bf16.msra.mxu0 %v2747
  %3543 = vmatmul.bf16.gmra.mxu0 %v3011
  %v3544 = vpop.f32.mrf.mxu0
  %v3545 = vadd.f32 0.0, %v3544
  %v3546 = vpop.f32.mrf.mxu0
  %v3547 = vadd.f32 0.0, %v3546
  %3548 = vmatmul.bf16.gmra.mxu0 %v3013
  %v3549 = vpop.f32.mrf.mxu0
  %v3550 = vadd.f32 0.0, %v3549
  %v3551 = vpop.f32.mrf.mxu0
  %v3552 = vadd.f32 0.0, %v3551
  %3553 = vdwg.mxu0
  %3554 = vmatpush.bf16.msra.mxu0 0
  %3555 = vmatpush.bf16.msra.mxu0 0
  %3556 = vmatpush.bf16.msra.mxu0 0
  %3557 = vmatpush.bf16.msra.mxu0 0
  %3558 = vmatpush.bf16.msra.mxu0 0
  %3559 = vmatpush.bf16.msra.mxu0 0
  %3560 = vmatpush.bf16.msra.mxu0 0
  %3561 = vmatpush.bf16.msra.mxu0 %v3247
  %3562 = vmatmul.bf16.gmra.mxu0 %v3416
  %v3563 = vpop.f32.mrf.mxu0
  %v3564 = vadd.f32 %v3545, %v3563
  %v3565 = vpop.f32.mrf.mxu0
  %v3566 = vadd.f32 %v3547, %v3565
  %3567 = vmatmul.bf16.gmra.mxu0 %v3419
  %v3568 = vpop.f32.mrf.mxu0
  %v3569 = vadd.f32 %v3550, %v3568
  %v3570 = vpop.f32.mrf.mxu0
  %v3571 = vadd.f32 %v3552, %v3570
  %3572 = vdwg.mxu0
  %3573 = vmatpush.bf16.msra.mxu0 %v3293
  %3574 = vmatpush.bf16.msra.mxu0 %v3278
  %3575 = vmatpush.bf16.msra.mxu0 %v2749
  %3576 = vmatpush.bf16.msra.mxu0 %v3262
  %3577 = vmatpush.bf16.msra.mxu0 %v3247
  %3578 = vmatpush.bf16.msra.mxu0 %v3232
  %3579 = vmatpush.bf16.msra.mxu0 %v3217
  %3580 = vmatpush.bf16.msra.mxu0 %v2748
  %3581 = vmatmul.bf16.gmra.mxu0 %v3011
  %v3582 = vpop.f32.mrf.mxu0
  %v3583 = vadd.f32 0.0, %v3582
  %v3584 = vpop.f32.mrf.mxu0
  %v3585 = vadd.f32 0.0, %v3584
  %3586 = vmatmul.bf16.gmra.mxu0 %v3013
  %v3587 = vpop.f32.mrf.mxu0
  %v3588 = vadd.f32 0.0, %v3587
  %v3589 = vpop.f32.mrf.mxu0
  %v3590 = vadd.f32 0.0, %v3589
  %3591 = vdwg.mxu0
  %3592 = vmatpush.bf16.msra.mxu0 0
  %3593 = vmatpush.bf16.msra.mxu0 0
  %3594 = vmatpush.bf16.msra.mxu0 0
  %3595 = vmatpush.bf16.msra.mxu0 0
  %3596 = vmatpush.bf16.msra.mxu0 0
  %3597 = vmatpush.bf16.msra.mxu0 0
  %3598 = vmatpush.bf16.msra.mxu0 0
  %3599 = vmatpush.bf16.msra.mxu0 %v3248
  %3600 = vmatmul.bf16.gmra.mxu0 %v3416
  %v3601 = vpop.f32.mrf.mxu0
  %v3602 = vadd.f32 %v3583, %v3601
  %v3603 = vpop.f32.mrf.mxu0
  %v3604 = vadd.f32 %v3585, %v3603
  %3605 = vmatmul.bf16.gmra.mxu0 %v3419
  %v3606 = vpop.f32.mrf.mxu0
  %v3607 = vadd.f32 %v3588, %v3606
  %v3608 = vpop.f32.mrf.mxu0
  %v3609 = vadd.f32 %v3590, %v3608
  %3610 = vdwg.mxu0
  %3611 = vmatpush.bf16.msra.mxu0 %v3294
  %3612 = vmatpush.bf16.msra.mxu0 %v3279
  %3613 = vmatpush.bf16.msra.mxu0 %v2750
  %3614 = vmatpush.bf16.msra.mxu0 %v3263
  %3615 = vmatpush.bf16.msra.mxu0 %v3248
  %3616 = vmatpush.bf16.msra.mxu0 %v3233
  %3617 = vmatpush.bf16.msra.mxu0 %v3218
  %3618 = vmatpush.bf16.msra.mxu0 %v2749
  %3619 = vmatmul.bf16.gmra.mxu0 %v3011
  %v3620 = vpop.f32.mrf.mxu0
  %v3621 = vadd.f32 0.0, %v3620
  %v3622 = vpop.f32.mrf.mxu0
  %v3623 = vadd.f32 0.0, %v3622
  %3624 = vmatmul.bf16.gmra.mxu0 %v3013
  %v3625 = vpop.f32.mrf.mxu0
  %v3626 = vadd.f32 0.0, %v3625
  %v3627 = vpop.f32.mrf.mxu0
  %v3628 = vadd.f32 0.0, %v3627
  %3629 = vdwg.mxu0
  %3630 = vmatpush.bf16.msra.mxu0 0
  %3631 = vmatpush.bf16.msra.mxu0 0
  %3632 = vmatpush.bf16.msra.mxu0 0
  %3633 = vmatpush.bf16.msra.mxu0 0
  %3634 = vmatpush.bf16.msra.mxu0 0
  %3635 = vmatpush.bf16.msra.mxu0 0
  %3636 = vmatpush.bf16.msra.mxu0 0
  %3637 = vmatpush.bf16.msra.mxu0 %v3249
  %3638 = vmatmul.bf16.gmra.mxu0 %v3416
  %v3639 = vpop.f32.mrf.mxu0
  %v3640 = vadd.f32 %v3621, %v3639
  %v3641 = vpop.f32.mrf.mxu0
  %v3642 = vadd.f32 %v3623, %v3641
  %3643 = vmatmul.bf16.gmra.mxu0 %v3419
  %v3644 = vpop.f32.mrf.mxu0
  %v3645 = vadd.f32 %v3626, %v3644
  %v3646 = vpop.f32.mrf.mxu0
  %v3647 = vadd.f32 %v3628, %v3646
  %3648 = vdwg.mxu0
  %3649 = vmatpush.bf16.msra.mxu0 %v3295
  %3650 = vmatpush.bf16.msra.mxu0 %v3280
  %3651 = vmatpush.bf16.msra.mxu0 %v2751
  %3652 = vmatpush.bf16.msra.mxu0 %v3264
  %3653 = vmatpush.bf16.msra.mxu0 %v3249
  %3654 = vmatpush.bf16.msra.mxu0 %v3234
  %3655 = vmatpush.bf16.msra.mxu0 %v3219
  %3656 = vmatpush.bf16.msra.mxu0 %v2750
  %3657 = vmatmul.bf16.gmra.mxu0 %v3011
  %v3658 = vpop.f32.mrf.mxu0
  %v3659 = vadd.f32 0.0, %v3658
  %v3660 = vpop.f32.mrf.mxu0
  %v3661 = vadd.f32 0.0, %v3660
  %3662 = vmatmul.bf16.gmra.mxu0 %v3013
  %v3663 = vpop.f32.mrf.mxu0
  %v3664 = vadd.f32 0.0, %v3663
  %v3665 = vpop.f32.mrf.mxu0
  %v3666 = vadd.f32 0.0, %v3665
  %3667 = vdwg.mxu0
  %3668 = vmatpush.bf16.msra.mxu0 0
  %3669 = vmatpush.bf16.msra.mxu0 0
  %3670 = vmatpush.bf16.msra.mxu0 0
  %3671 = vmatpush.bf16.msra.mxu0 0
  %3672 = vmatpush.bf16.msra.mxu0 0
  %3673 = vmatpush.bf16.msra.mxu0 0
  %3674 = vmatpush.bf16.msra.mxu0 0
  %3675 = vmatpush.bf16.msra.mxu0 %v3250
  %3676 = vmatmul.bf16.gmra.mxu0 %v3416
  %v3677 = vpop.f32.mrf.mxu0
  %v3678 = vadd.f32 %v3659, %v3677
  %v3679 = vpop.f32.mrf.mxu0
  %v3680 = vadd.f32 %v3661, %v3679
  %3681 = vmatmul.bf16.gmra.mxu0 %v3419
  %v3682 = vpop.f32.mrf.mxu0
  %v3683 = vadd.f32 %v3664, %v3682
  %v3684 = vpop.f32.mrf.mxu0
  %v3685 = vadd.f32 %v3666, %v3684
  %3686 = vdwg.mxu0
  %3687 = vmatpush.bf16.msra.mxu0 %v3296
  %3688 = vmatpush.bf16.msra.mxu0 %v3281
  %3689 = vmatpush.bf16.msra.mxu0 %v2752
  %3690 = vmatpush.bf16.msra.mxu0 %v3265
  %3691 = vmatpush.bf16.msra.mxu0 %v3250
  %3692 = vmatpush.bf16.msra.mxu0 %v3235
  %3693 = vmatpush.bf16.msra.mxu0 %v3220
  %3694 = vmatpush.bf16.msra.mxu0 %v2751
  %3695 = vmatmul.bf16.gmra.mxu0 %v3011
  %v3696 = vpop.f32.mrf.mxu0
  %v3697 = vadd.f32 0.0, %v3696
  %v3698 = vpop.f32.mrf.mxu0
  %v3699 = vadd.f32 0.0, %v3698
  %3700 = vmatmul.bf16.gmra.mxu0 %v3013
  %v3701 = vpop.f32.mrf.mxu0
  %v3702 = vadd.f32 0.0, %v3701
  %v3703 = vpop.f32.mrf.mxu0
  %v3704 = vadd.f32 0.0, %v3703
  %3705 = vdwg.mxu0
  %3706 = vmatpush.bf16.msra.mxu0 0
  %3707 = vmatpush.bf16.msra.mxu0 0
  %3708 = vmatpush.bf16.msra.mxu0 0
  %3709 = vmatpush.bf16.msra.mxu0 0
  %3710 = vmatpush.bf16.msra.mxu0 0
  %3711 = vmatpush.bf16.msra.mxu0 0
  %3712 = vmatpush.bf16.msra.mxu0 0
  %3713 = vmatpush.bf16.msra.mxu0 %v3251
  %3714 = vmatmul.bf16.gmra.mxu0 %v3416
  %v3715 = vpop.f32.mrf.mxu0
  %v3716 = vadd.f32 %v3697, %v3715
  %v3717 = vpop.f32.mrf.mxu0
  %v3718 = vadd.f32 %v3699, %v3717
  %3719 = vmatmul.bf16.gmra.mxu0 %v3419
  %v3720 = vpop.f32.mrf.mxu0
  %v3721 = vadd.f32 %v3702, %v3720
  %v3722 = vpop.f32.mrf.mxu0
  %v3723 = vadd.f32 %v3704, %v3722
  %3724 = vdwg.mxu0
  %3725 = vmatpush.bf16.msra.mxu0 %v3297
  %3726 = vmatpush.bf16.msra.mxu0 %v3282
  %3727 = vmatpush.bf16.msra.mxu0 %v2753
  %3728 = vmatpush.bf16.msra.mxu0 %v3266
  %3729 = vmatpush.bf16.msra.mxu0 %v3251
  %3730 = vmatpush.bf16.msra.mxu0 %v3236
  %3731 = vmatpush.bf16.msra.mxu0 %v3221
  %3732 = vmatpush.bf16.msra.mxu0 %v2752
  %3733 = vmatmul.bf16.gmra.mxu0 %v3011
  %v3734 = vpop.f32.mrf.mxu0
  %v3735 = vadd.f32 0.0, %v3734
  %v3736 = vpop.f32.mrf.mxu0
  %v3737 = vadd.f32 0.0, %v3736
  %3738 = vmatmul.bf16.gmra.mxu0 %v3013
  %v3739 = vpop.f32.mrf.mxu0
  %v3740 = vadd.f32 0.0, %v3739
  %v3741 = vpop.f32.mrf.mxu0
  %v3742 = vadd.f32 0.0, %v3741
  %3743 = vdwg.mxu0
  %3744 = vmatpush.bf16.msra.mxu0 0
  %3745 = vmatpush.bf16.msra.mxu0 0
  %3746 = vmatpush.bf16.msra.mxu0 0
  %3747 = vmatpush.bf16.msra.mxu0 0
  %3748 = vmatpush.bf16.msra.mxu0 0
  %3749 = vmatpush.bf16.msra.mxu0 0
  %3750 = vmatpush.bf16.msra.mxu0 0
  %3751 = vmatpush.bf16.msra.mxu0 %v3252
  %3752 = vmatmul.bf16.gmra.mxu0 %v3416
  %v3753 = vpop.f32.mrf.mxu0
  %v3754 = vadd.f32 %v3735, %v3753
  %v3755 = vpop.f32.mrf.mxu0
  %v3756 = vadd.f32 %v3737, %v3755
  %3757 = vmatmul.bf16.gmra.mxu0 %v3419
  %v3758 = vpop.f32.mrf.mxu0
  %v3759 = vadd.f32 %v3740, %v3758
  %v3760 = vpop.f32.mrf.mxu0
  %v3761 = vadd.f32 %v3742, %v3760
  %3762 = vdwg.mxu0
  %3763 = vmatpush.bf16.msra.mxu0 %v3298
  %3764 = vmatpush.bf16.msra.mxu0 %v3283
  %3765 = vmatpush.bf16.msra.mxu0 %v2754
  %3766 = vmatpush.bf16.msra.mxu0 %v3267
  %3767 = vmatpush.bf16.msra.mxu0 %v3252
  %3768 = vmatpush.bf16.msra.mxu0 %v3237
  %3769 = vmatpush.bf16.msra.mxu0 %v3222
  %3770 = vmatpush.bf16.msra.mxu0 %v2753
  %3771 = vmatmul.bf16.gmra.mxu0 %v3011
  %v3772 = vpop.f32.mrf.mxu0
  %v3773 = vadd.f32 0.0, %v3772
  %v3774 = vpop.f32.mrf.mxu0
  %v3775 = vadd.f32 0.0, %v3774
  %3776 = vmatmul.bf16.gmra.mxu0 %v3013
  %v3777 = vpop.f32.mrf.mxu0
  %v3778 = vadd.f32 0.0, %v3777
  %v3779 = vpop.f32.mrf.mxu0
  %v3780 = vadd.f32 0.0, %v3779
  %3781 = vdwg.mxu0
  %3782 = vmatpush.bf16.msra.mxu0 0
  %3783 = vmatpush.bf16.msra.mxu0 0
  %3784 = vmatpush.bf16.msra.mxu0 0
  %3785 = vmatpush.bf16.msra.mxu0 0
  %3786 = vmatpush.bf16.msra.mxu0 0
  %3787 = vmatpush.bf16.msra.mxu0 0
  %3788 = vmatpush.bf16.msra.mxu0 0
  %3789 = vmatpush.bf16.msra.mxu0 %v3253
  %3790 = vmatmul.bf16.gmra.mxu0 %v3416
  %v3791 = vpop.f32.mrf.mxu0
  %v3792 = vadd.f32 %v3773, %v3791
  %v3793 = vpop.f32.mrf.mxu0
  %v3794 = vadd.f32 %v3775, %v3793
  %3795 = vmatmul.bf16.gmra.mxu0 %v3419
  %v3796 = vpop.f32.mrf.mxu0
  %v3797 = vadd.f32 %v3778, %v3796
  %v3798 = vpop.f32.mrf.mxu0
  %v3799 = vadd.f32 %v3780, %v3798
  %3800 = vdwg.mxu0
  %3801 = vmatpush.bf16.msra.mxu0 %v3299
  %3802 = vmatpush.bf16.msra.mxu0 %v3284
  %3803 = vmatpush.bf16.msra.mxu0 %v2755
  %3804 = vmatpush.bf16.msra.mxu0 %v3268
  %3805 = vmatpush.bf16.msra.mxu0 %v3253
  %3806 = vmatpush.bf16.msra.mxu0 %v3238
  %3807 = vmatpush.bf16.msra.mxu0 %v3223
  %3808 = vmatpush.bf16.msra.mxu0 %v2754
  %3809 = vmatmul.bf16.gmra.mxu0 %v3011
  %v3810 = vpop.f32.mrf.mxu0
  %v3811 = vadd.f32 0.0, %v3810
  %v3812 = vpop.f32.mrf.mxu0
  %v3813 = vadd.f32 0.0, %v3812
  %3814 = vmatmul.bf16.gmra.mxu0 %v3013
  %v3815 = vpop.f32.mrf.mxu0
  %v3816 = vadd.f32 0.0, %v3815
  %v3817 = vpop.f32.mrf.mxu0
  %v3818 = vadd.f32 0.0, %v3817
  %3819 = vdwg.mxu0
  %3820 = vmatpush.bf16.msra.mxu0 0
  %3821 = vmatpush.bf16.msra.mxu0 0
  %3822 = vmatpush.bf16.msra.mxu0 0
  %3823 = vmatpush.bf16.msra.mxu0 0
  %3824 = vmatpush.bf16.msra.mxu0 0
  %3825 = vmatpush.bf16.msra.mxu0 0
  %3826 = vmatpush.bf16.msra.mxu0 0
  %3827 = vmatpush.bf16.msra.mxu0 %v3254
  %3828 = vmatmul.bf16.gmra.mxu0 %v3416
  %v3829 = vpop.f32.mrf.mxu0
  %v3830 = vadd.f32 %v3811, %v3829
  %v3831 = vpop.f32.mrf.mxu0
  %v3832 = vadd.f32 %v3813, %v3831
  %3833 = vmatmul.bf16.gmra.mxu0 %v3419
  %v3834 = vpop.f32.mrf.mxu0
  %v3835 = vadd.f32 %v3816, %v3834
  %v3836 = vpop.f32.mrf.mxu0
  %v3837 = vadd.f32 %v3818, %v3836
  %3838 = vdwg.mxu0
  %3839 = vmatpush.bf16.msra.mxu0 %v3300
  %3840 = vmatpush.bf16.msra.mxu0 %v3285
  %3841 = vmatpush.bf16.msra.mxu0 %v2756
  %3842 = vmatpush.bf16.msra.mxu0 %v3269
  %3843 = vmatpush.bf16.msra.mxu0 %v3254
  %3844 = vmatpush.bf16.msra.mxu0 %v3239
  %3845 = vmatpush.bf16.msra.mxu0 %v3224
  %3846 = vmatpush.bf16.msra.mxu0 %v2755
  %3847 = vmatmul.bf16.gmra.mxu0 %v3011
  %v3848 = vpop.f32.mrf.mxu0
  %v3849 = vadd.f32 0.0, %v3848
  %v3850 = vpop.f32.mrf.mxu0
  %v3851 = vadd.f32 0.0, %v3850
  %3852 = vmatmul.bf16.gmra.mxu0 %v3013
  %v3853 = vpop.f32.mrf.mxu0
  %v3854 = vadd.f32 0.0, %v3853
  %v3855 = vpop.f32.mrf.mxu0
  %v3856 = vadd.f32 0.0, %v3855
  %3857 = vdwg.mxu0
  %3858 = vmatpush.bf16.msra.mxu0 0
  %3859 = vmatpush.bf16.msra.mxu0 0
  %3860 = vmatpush.bf16.msra.mxu0 0
  %3861 = vmatpush.bf16.msra.mxu0 0
  %3862 = vmatpush.bf16.msra.mxu0 0
  %3863 = vmatpush.bf16.msra.mxu0 0
  %3864 = vmatpush.bf16.msra.mxu0 0
  %3865 = vmatpush.bf16.msra.mxu0 %v3255
  %3866 = vmatmul.bf16.gmra.mxu0 %v3416
  %v3867 = vpop.f32.mrf.mxu0
  %v3868 = vadd.f32 %v3849, %v3867
  %v3869 = vpop.f32.mrf.mxu0
  %v3870 = vadd.f32 %v3851, %v3869
  %3871 = vmatmul.bf16.gmra.mxu0 %v3419
  %v3872 = vpop.f32.mrf.mxu0
  %v3873 = vadd.f32 %v3854, %v3872
  %v3874 = vpop.f32.mrf.mxu0
  %v3875 = vadd.f32 %v3856, %v3874
  %3876 = vdwg.mxu0
  %3877 = vmatpush.bf16.msra.mxu0 %v3301
  %3878 = vmatpush.bf16.msra.mxu0 %v3286
  %3879 = vmatpush.bf16.msra.mxu0 %v2757
  %3880 = vmatpush.bf16.msra.mxu0 %v3270
  %3881 = vmatpush.bf16.msra.mxu0 %v3255
  %3882 = vmatpush.bf16.msra.mxu0 %v3240
  %3883 = vmatpush.bf16.msra.mxu0 %v3225
  %3884 = vmatpush.bf16.msra.mxu0 %v2756
  %3885 = vmatmul.bf16.gmra.mxu0 %v3011
  %v3886 = vpop.f32.mrf.mxu0
  %v3887 = vadd.f32 0.0, %v3886
  %v3888 = vpop.f32.mrf.mxu0
  %v3889 = vadd.f32 0.0, %v3888
  %3890 = vmatmul.bf16.gmra.mxu0 %v3013
  %v3891 = vpop.f32.mrf.mxu0
  %v3892 = vadd.f32 0.0, %v3891
  %v3893 = vpop.f32.mrf.mxu0
  %v3894 = vadd.f32 0.0, %v3893
  %3895 = vdwg.mxu0
  %3896 = vmatpush.bf16.msra.mxu0 0
  %3897 = vmatpush.bf16.msra.mxu0 0
  %3898 = vmatpush.bf16.msra.mxu0 0
  %3899 = vmatpush.bf16.msra.mxu0 0
  %3900 = vmatpush.bf16.msra.mxu0 0
  %3901 = vmatpush.bf16.msra.mxu0 0
  %3902 = vmatpush.bf16.msra.mxu0 0
  %3903 = vmatpush.bf16.msra.mxu0 %v3256
  %3904 = vmatmul.bf16.gmra.mxu0 %v3416
  %v3905 = vpop.f32.mrf.mxu0
  %v3906 = vadd.f32 %v3887, %v3905
  %v3907 = vpop.f32.mrf.mxu0
  %v3908 = vadd.f32 %v3889, %v3907
  %3909 = vmatmul.bf16.gmra.mxu0 %v3419
  %v3910 = vpop.f32.mrf.mxu0
  %v3911 = vadd.f32 %v3892, %v3910
  %v3912 = vpop.f32.mrf.mxu0
  %v3913 = vadd.f32 %v3894, %v3912
  %3914 = vdwg.mxu0
  %3915 = vmatpush.bf16.msra.mxu0 %v3302
  %3916 = vmatpush.bf16.msra.mxu0 %v3287
  %3917 = vmatpush.bf16.msra.mxu0 %v2758
  %3918 = vmatpush.bf16.msra.mxu0 %v3271
  %3919 = vmatpush.bf16.msra.mxu0 %v3256
  %3920 = vmatpush.bf16.msra.mxu0 %v3241
  %3921 = vmatpush.bf16.msra.mxu0 %v3226
  %3922 = vmatpush.bf16.msra.mxu0 %v2757
  %3923 = vmatmul.bf16.gmra.mxu0 %v3011
  %v3924 = vpop.f32.mrf.mxu0
  %v3925 = vadd.f32 0.0, %v3924
  %v3926 = vpop.f32.mrf.mxu0
  %v3927 = vadd.f32 0.0, %v3926
  %3928 = vmatmul.bf16.gmra.mxu0 %v3013
  %v3929 = vpop.f32.mrf.mxu0
  %v3930 = vadd.f32 0.0, %v3929
  %v3931 = vpop.f32.mrf.mxu0
  %v3932 = vadd.f32 0.0, %v3931
  %3933 = vdwg.mxu0
  %3934 = vmatpush.bf16.msra.mxu0 0
  %3935 = vmatpush.bf16.msra.mxu0 0
  %3936 = vmatpush.bf16.msra.mxu0 0
  %3937 = vmatpush.bf16.msra.mxu0 0
  %3938 = vmatpush.bf16.msra.mxu0 0
  %3939 = vmatpush.bf16.msra.mxu0 0
  %3940 = vmatpush.bf16.msra.mxu0 0
  %3941 = vmatpush.bf16.msra.mxu0 %v3304
  %3942 = vmatmul.bf16.gmra.mxu0 %v3416
  %v3943 = vpop.f32.mrf.mxu0
  %v3944 = vadd.f32 %v3925, %v3943
  %v3945 = vpop.f32.mrf.mxu0
  %v3946 = vadd.f32 %v3927, %v3945
  %3947 = vmatmul.bf16.gmra.mxu0 %v3419
  %v3948 = vpop.f32.mrf.mxu0
  %v3949 = vadd.f32 %v3930, %v3948
  %v3950 = vpop.f32.mrf.mxu0
  %v3951 = vadd.f32 %v3932, %v3950
  %3952 = vdwg.mxu0
  %3953 = vmatpush.bf16.msra.mxu0 %v3303
  %3954 = vmatpush.bf16.msra.mxu0 %v3288
  %3955 = vmatpush.bf16.msra.mxu0 %v3273
  %3956 = vmatpush.bf16.msra.mxu0 %v3272
  %3957 = vmatpush.bf16.msra.mxu0 %v3257
  %3958 = vmatpush.bf16.msra.mxu0 %v3242
  %3959 = vmatpush.bf16.msra.mxu0 %v3227
  %3960 = vmatpush.bf16.msra.mxu0 %v2758
  %3961 = vmatmul.bf16.gmra.mxu0 %v3011
  %v3962 = vpop.f32.mrf.mxu0
  %v3963 = vadd.f32 0.0, %v3962
  %v3964 = vpop.f32.mrf.mxu0
  %v3965 = vadd.f32 0.0, %v3964
  %3966 = vmatmul.bf16.gmra.mxu0 %v3013
  %v3967 = vpop.f32.mrf.mxu0
  %v3968 = vadd.f32 0.0, %v3967
  %v3969 = vpop.f32.mrf.mxu0
  %v3970 = vadd.f32 0.0, %v3969
  %3971 = vdwg.mxu0
  %3972 = vmatpush.bf16.msra.mxu0 0
  %3973 = vmatpush.bf16.msra.mxu0 0
  %3974 = vmatpush.bf16.msra.mxu0 0
  %3975 = vmatpush.bf16.msra.mxu0 0
  %3976 = vmatpush.bf16.msra.mxu0 0
  %3977 = vmatpush.bf16.msra.mxu0 0
  %3978 = vmatpush.bf16.msra.mxu0 0
  %3979 = vmatpush.bf16.msra.mxu0 %v3305
  %3980 = vmatmul.bf16.gmra.mxu0 %v3416
  %v3981 = vpop.f32.mrf.mxu0
  %v3982 = vadd.f32 %v3963, %v3981
  %v3983 = vpop.f32.mrf.mxu0
  %v3984 = vadd.f32 %v3965, %v3983
  %3985 = vmatmul.bf16.gmra.mxu0 %v3419
  %v3986 = vpop.f32.mrf.mxu0
  %v3987 = vadd.f32 %v3968, %v3986
  %v3988 = vpop.f32.mrf.mxu0
  %v3989 = vadd.f32 %v3970, %v3988
  %3990 = vdwg.mxu0
  %4051 = vrot.lane.b32.xlu0 %v3450, 124
  %v4052 = vpop.permute.xlu0 %4051
  %4053 = vrot.lane.b32.xlu0 %v3488, 124
  %v4054 = vpop.permute.xlu0 %4053
  %4055 = vrot.lane.b32.xlu0 %v3526, 124
  %v4056 = vpop.permute.xlu0 %4055
  %4057 = vrot.lane.b32.xlu0 %v3564, 124
  %v4058 = vpop.permute.xlu0 %4057
  %4059 = vrot.lane.b32.xlu0 %v3602, 124
  %v4060 = vpop.permute.xlu0 %4059
  %4061 = vrot.lane.b32.xlu0 %v3640, 124
  %v4062 = vpop.permute.xlu0 %4061
  %4063 = vrot.lane.b32.xlu0 %v3678, 124
  %v4064 = vpop.permute.xlu0 %4063
  %4065 = vrot.lane.b32.xlu0 %v3716, 124
  %v4066 = vpop.permute.xlu0 %4065
  %4067 = vrot.lane.b32.xlu0 %v3754, 124
  %v4068 = vpop.permute.xlu0 %4067
  %4069 = vrot.lane.b32.xlu0 %v3792, 124
  %v4070 = vpop.permute.xlu0 %4069
  %4071 = vrot.lane.b32.xlu0 %v3830, 124
  %v4072 = vpop.permute.xlu0 %4071
  %4073 = vrot.lane.b32.xlu0 %v3868, 124
  %v4074 = vpop.permute.xlu0 %4073
  %4075 = vrot.lane.b32.xlu0 %v3906, 124
  %v4076 = vpop.permute.xlu0 %4075
  %4077 = vrot.lane.b32.xlu0 %v3944, 124
  %v4078 = vpop.permute.xlu0 %4077
  %4079 = vrot.lane.b32.xlu0 %v3982, 124
  %v4080 = vpop.permute.xlu0 %4079
  %4081 = vrot.lane.b32.xlu0 %v3452, 124
  %v4082 = vpop.permute.xlu0 %4081
  %4083 = vrot.lane.b32.xlu0 %v3490, 124
  %v4084 = vpop.permute.xlu0 %4083
  %4085 = vrot.lane.b32.xlu0 %v3528, 124
  %v4086 = vpop.permute.xlu0 %4085
  %4087 = vrot.lane.b32.xlu0 %v3566, 124
  %v4088 = vpop.permute.xlu0 %4087
  %4089 = vrot.lane.b32.xlu0 %v3604, 124
  %v4090 = vpop.permute.xlu0 %4089
  %4091 = vrot.lane.b32.xlu0 %v3642, 124
  %v4092 = vpop.permute.xlu0 %4091
  %4093 = vrot.lane.b32.xlu0 %v3680, 124
  %v4094 = vpop.permute.xlu0 %4093
  %4095 = vrot.lane.b32.xlu0 %v3718, 124
  %v4096 = vpop.permute.xlu0 %4095
  %4097 = vrot.lane.b32.xlu0 %v3756, 124
  %v4098 = vpop.permute.xlu0 %4097
  %4099 = vrot.lane.b32.xlu0 %v3794, 124
  %v4100 = vpop.permute.xlu0 %4099
  %4101 = vrot.lane.b32.xlu0 %v3832, 124
  %v4102 = vpop.permute.xlu0 %4101
  %4103 = vrot.lane.b32.xlu0 %v3870, 124
  %v4104 = vpop.permute.xlu0 %4103
  %4105 = vrot.lane.b32.xlu0 %v3908, 124
  %v4106 = vpop.permute.xlu0 %4105
  %4107 = vrot.lane.b32.xlu0 %v3946, 124
  %v4108 = vpop.permute.xlu0 %4107
  %4109 = vrot.lane.b32.xlu0 %v3984, 124
  %v4110 = vpop.permute.xlu0 %4109
  %4111 = vrot.lane.b32.xlu0 %v3455, 124
  %v4112 = vpop.permute.xlu0 %4111
  %4113 = vrot.lane.b32.xlu0 %v3493, 124
  %v4114 = vpop.permute.xlu0 %4113
  %4115 = vrot.lane.b32.xlu0 %v3531, 124
  %v4116 = vpop.permute.xlu0 %4115
  %4117 = vrot.lane.b32.xlu0 %v3569, 124
  %v4118 = vpop.permute.xlu0 %4117
  %4119 = vrot.lane.b32.xlu0 %v3607, 124
  %v4120 = vpop.permute.xlu0 %4119
  %4121 = vrot.lane.b32.xlu0 %v3645, 124
  %v4122 = vpop.permute.xlu0 %4121
  %4123 = vrot.lane.b32.xlu0 %v3683, 124
  %v4124 = vpop.permute.xlu0 %4123
  %4125 = vrot.lane.b32.xlu0 %v3721, 124
  %v4126 = vpop.permute.xlu0 %4125
  %4127 = vrot.lane.b32.xlu0 %v3759, 124
  %v4128 = vpop.permute.xlu0 %4127
  %4129 = vrot.lane.b32.xlu0 %v3797, 124
  %v4130 = vpop.permute.xlu0 %4129
  %4131 = vrot.lane.b32.xlu0 %v3835, 124
  %v4132 = vpop.permute.xlu0 %4131
  %4133 = vrot.lane.b32.xlu0 %v3873, 124
  %v4134 = vpop.permute.xlu0 %4133
  %4135 = vrot.lane.b32.xlu0 %v3911, 124
  %v4136 = vpop.permute.xlu0 %4135
  %4137 = vrot.lane.b32.xlu0 %v3949, 124
  %v4138 = vpop.permute.xlu0 %4137
  %4139 = vrot.lane.b32.xlu0 %v3987, 124
  %v4140 = vpop.permute.xlu0 %4139
  %4141 = vrot.lane.b32.xlu0 %v3457, 124
  %v4142 = vpop.permute.xlu0 %4141
  %4143 = vrot.lane.b32.xlu0 %v3495, 124
  %v4144 = vpop.permute.xlu0 %4143
  %4145 = vrot.lane.b32.xlu0 %v3533, 124
  %v4146 = vpop.permute.xlu0 %4145
  %4147 = vrot.lane.b32.xlu0 %v3571, 124
  %v4148 = vpop.permute.xlu0 %4147
  %4149 = vrot.lane.b32.xlu0 %v3609, 124
  %v4150 = vpop.permute.xlu0 %4149
  %4151 = vrot.lane.b32.xlu0 %v3647, 124
  %v4152 = vpop.permute.xlu0 %4151
  %4153 = vrot.lane.b32.xlu0 %v3685, 124
  %v4154 = vpop.permute.xlu0 %4153
  %4155 = vrot.lane.b32.xlu0 %v3723, 124
  %v4156 = vpop.permute.xlu0 %4155
  %4157 = vrot.lane.b32.xlu0 %v3761, 124
  %v4158 = vpop.permute.xlu0 %4157
  %4159 = vrot.lane.b32.xlu0 %v3799, 124
  %v4160 = vpop.permute.xlu0 %4159
  %4161 = vrot.lane.b32.xlu0 %v3837, 124
  %v4162 = vpop.permute.xlu0 %4161
  %4163 = vrot.lane.b32.xlu0 %v3875, 124
  %v4164 = vpop.permute.xlu0 %4163
  %4165 = vrot.lane.b32.xlu0 %v3913, 124
  %v4166 = vpop.permute.xlu0 %4165
  %4167 = vrot.lane.b32.xlu0 %v3951, 124
  %v4168 = vpop.permute.xlu0 %4167
  %4169 = vrot.lane.b32.xlu0 %v3989, 124
  %v4170 = vpop.permute.xlu0 %4169
  %vm4171 = vcmask 1014784
  %v4172 = vsel %vm4171, %v4052, %v4054
  %v4173 = vsel %vm4171, %v4054, %v4056
  %v4174 = vsel %vm4171, %v4056, %v4058
  %v4175 = vsel %vm4171, %v4058, %v4060
  %v4176 = vsel %vm4171, %v4060, %v4062
  %v4177 = vsel %vm4171, %v4062, %v4064
  %v4178 = vsel %vm4171, %v4064, %v4066
  %v4179 = vsel %vm4171, %v4066, %v4068
  %v4180 = vsel %vm4171, %v4068, %v4070
  %v4181 = vsel %vm4171, %v4070, %v4072
  %v4182 = vsel %vm4171, %v4072, %v4074
  %v4183 = vsel %vm4171, %v4074, %v4076
  %v4184 = vsel %vm4171, %v4076, %v4078
  %v4185 = vsel %vm4171, %v4078, %v4080
  %v4186 = vsel %vm4171, %v4082, %v4084
  %v4187 = vsel %vm4171, %v4084, %v4086
  %v4188 = vsel %vm4171, %v4086, %v4088
  %v4189 = vsel %vm4171, %v4088, %v4090
  %v4190 = vsel %vm4171, %v4090, %v4092
  %v4191 = vsel %vm4171, %v4092, %v4094
  %v4192 = vsel %vm4171, %v4094, %v4096
  %v4193 = vsel %vm4171, %v4096, %v4098
  %v4194 = vsel %vm4171, %v4098, %v4100
  %v4195 = vsel %vm4171, %v4100, %v4102
  %v4196 = vsel %vm4171, %v4102, %v4104
  %v4197 = vsel %vm4171, %v4104, %v4106
  %v4198 = vsel %vm4171, %v4106, %v4108
  %v4199 = vsel %vm4171, %v4108, %v4110
  %v4200 = vsel %vm4171, %v4112, %v4114
  %v4201 = vsel %vm4171, %v4114, %v4116
  %v4202 = vsel %vm4171, %v4116, %v4118
  %v4203 = vsel %vm4171, %v4118, %v4120
  %v4204 = vsel %vm4171, %v4120, %v4122
  %v4205 = vsel %vm4171, %v4122, %v4124
  %v4206 = vsel %vm4171, %v4124, %v4126
  %v4207 = vsel %vm4171, %v4126, %v4128
  %v4208 = vsel %vm4171, %v4128, %v4130
  %v4209 = vsel %vm4171, %v4130, %v4132
  %v4210 = vsel %vm4171, %v4132, %v4134
  %v4211 = vsel %vm4171, %v4134, %v4136
  %v4212 = vsel %vm4171, %v4136, %v4138
  %v4213 = vsel %vm4171, %v4138, %v4140
  %v4214 = vsel %vm4171, %v4142, %v4144
  %v4215 = vsel %vm4171, %v4144, %v4146
  %v4216 = vsel %vm4171, %v4146, %v4148
  %v4217 = vsel %vm4171, %v4148, %v4150
  %v4218 = vsel %vm4171, %v4150, %v4152
  %v4219 = vsel %vm4171, %v4152, %v4154
  %v4220 = vsel %vm4171, %v4154, %v4156
  %v4221 = vsel %vm4171, %v4156, %v4158
  %v4222 = vsel %vm4171, %v4158, %v4160
  %v4223 = vsel %vm4171, %v4160, %v4162
  %v4224 = vsel %vm4171, %v4162, %v4164
  %v4225 = vsel %vm4171, %v4164, %v4166
  %v4226 = vsel %vm4171, %v4166, %v4168
  %v4227 = vsel %vm4171, %v4168, %v4170
  %v4284 = vmax.f32 %v3450, %v4172
  %v4285 = vmax.f32 %v3488, %v4173
  %v4286 = vmax.f32 %v3526, %v4174
  %v4287 = vmax.f32 %v3564, %v4175
  %v4288 = vmax.f32 %v3602, %v4176
  %v4289 = vmax.f32 %v3640, %v4177
  %v4290 = vmax.f32 %v3678, %v4178
  %v4291 = vmax.f32 %v3716, %v4179
  %v4292 = vmax.f32 %v3754, %v4180
  %v4293 = vmax.f32 %v3792, %v4181
  %v4294 = vmax.f32 %v3830, %v4182
  %v4295 = vmax.f32 %v3868, %v4183
  %v4296 = vmax.f32 %v3906, %v4184
  %v4297 = vmax.f32 %v3944, %v4185
  %v4298 = vmax.f32 %v3452, %v4186
  %v4299 = vmax.f32 %v3490, %v4187
  %v4300 = vmax.f32 %v3528, %v4188
  %v4301 = vmax.f32 %v3566, %v4189
  %v4302 = vmax.f32 %v3604, %v4190
  %v4303 = vmax.f32 %v3642, %v4191
  %v4304 = vmax.f32 %v3680, %v4192
  %v4305 = vmax.f32 %v3718, %v4193
  %v4306 = vmax.f32 %v3756, %v4194
  %v4307 = vmax.f32 %v3794, %v4195
  %v4308 = vmax.f32 %v3832, %v4196
  %v4309 = vmax.f32 %v3870, %v4197
  %v4310 = vmax.f32 %v3908, %v4198
  %v4311 = vmax.f32 %v3946, %v4199
  %v4312 = vmax.f32 %v3455, %v4200
  %v4313 = vmax.f32 %v3493, %v4201
  %v4314 = vmax.f32 %v3531, %v4202
  %v4315 = vmax.f32 %v3569, %v4203
  %v4316 = vmax.f32 %v3607, %v4204
  %v4317 = vmax.f32 %v3645, %v4205
  %v4318 = vmax.f32 %v3683, %v4206
  %v4319 = vmax.f32 %v3721, %v4207
  %v4320 = vmax.f32 %v3759, %v4208
  %v4321 = vmax.f32 %v3797, %v4209
  %v4322 = vmax.f32 %v3835, %v4210
  %v4323 = vmax.f32 %v3873, %v4211
  %v4324 = vmax.f32 %v3911, %v4212
  %v4325 = vmax.f32 %v3949, %v4213
  %v4326 = vmax.f32 %v3457, %v4214
  %v4327 = vmax.f32 %v3495, %v4215
  %v4328 = vmax.f32 %v3533, %v4216
  %v4329 = vmax.f32 %v3571, %v4217
  %v4330 = vmax.f32 %v3609, %v4218
  %v4331 = vmax.f32 %v3647, %v4219
  %v4332 = vmax.f32 %v3685, %v4220
  %v4333 = vmax.f32 %v3723, %v4221
  %v4334 = vmax.f32 %v3761, %v4222
  %v4335 = vmax.f32 %v3799, %v4223
  %v4336 = vmax.f32 %v3837, %v4224
  %v4337 = vmax.f32 %v3875, %v4225
  %v4338 = vmax.f32 %v3913, %v4226
  %v4339 = vmax.f32 %v3951, %v4227
  %4340 = vrot.lane.b32.xlu0 %v3450, 8
  %v4341 = vpop.permute.xlu0 %4340
  %4342 = vrot.lane.b32.xlu0 %v3488, 8
  %v4343 = vpop.permute.xlu0 %4342
  %4344 = vrot.lane.b32.xlu0 %v3526, 8
  %v4345 = vpop.permute.xlu0 %4344
  %4346 = vrot.lane.b32.xlu0 %v3564, 8
  %v4347 = vpop.permute.xlu0 %4346
  %4348 = vrot.lane.b32.xlu0 %v3602, 8
  %v4349 = vpop.permute.xlu0 %4348
  %4350 = vrot.lane.b32.xlu0 %v3640, 8
  %v4351 = vpop.permute.xlu0 %4350
  %4352 = vrot.lane.b32.xlu0 %v3678, 8
  %v4353 = vpop.permute.xlu0 %4352
  %4354 = vrot.lane.b32.xlu0 %v3716, 8
  %v4355 = vpop.permute.xlu0 %4354
  %4356 = vrot.lane.b32.xlu0 %v3754, 8
  %v4357 = vpop.permute.xlu0 %4356
  %4358 = vrot.lane.b32.xlu0 %v3792, 8
  %v4359 = vpop.permute.xlu0 %4358
  %4360 = vrot.lane.b32.xlu0 %v3830, 8
  %v4361 = vpop.permute.xlu0 %4360
  %4362 = vrot.lane.b32.xlu0 %v3868, 8
  %v4363 = vpop.permute.xlu0 %4362
  %4364 = vrot.lane.b32.xlu0 %v3906, 8
  %v4365 = vpop.permute.xlu0 %4364
  %4366 = vrot.lane.b32.xlu0 %v3944, 8
  %v4367 = vpop.permute.xlu0 %4366
  %4368 = vrot.lane.b32.xlu0 %v3982, 8
  %v4369 = vpop.permute.xlu0 %4368
  %4370 = vrot.lane.b32.xlu0 %v3452, 8
  %v4371 = vpop.permute.xlu0 %4370
  %4372 = vrot.lane.b32.xlu0 %v3490, 8
  %v4373 = vpop.permute.xlu0 %4372
  %4374 = vrot.lane.b32.xlu0 %v3528, 8
  %v4375 = vpop.permute.xlu0 %4374
  %4376 = vrot.lane.b32.xlu0 %v3566, 8
  %v4377 = vpop.permute.xlu0 %4376
  %4378 = vrot.lane.b32.xlu0 %v3604, 8
  %v4379 = vpop.permute.xlu0 %4378
  %4380 = vrot.lane.b32.xlu0 %v3642, 8
  %v4381 = vpop.permute.xlu0 %4380
  %4382 = vrot.lane.b32.xlu0 %v3680, 8
  %v4383 = vpop.permute.xlu0 %4382
  %4384 = vrot.lane.b32.xlu0 %v3718, 8
  %v4385 = vpop.permute.xlu0 %4384
  %4386 = vrot.lane.b32.xlu0 %v3756, 8
  %v4387 = vpop.permute.xlu0 %4386
  %4388 = vrot.lane.b32.xlu0 %v3794, 8
  %v4389 = vpop.permute.xlu0 %4388
  %4390 = vrot.lane.b32.xlu0 %v3832, 8
  %v4391 = vpop.permute.xlu0 %4390
  %4392 = vrot.lane.b32.xlu0 %v3870, 8
  %v4393 = vpop.permute.xlu0 %4392
  %4394 = vrot.lane.b32.xlu0 %v3908, 8
  %v4395 = vpop.permute.xlu0 %4394
  %4396 = vrot.lane.b32.xlu0 %v3946, 8
  %v4397 = vpop.permute.xlu0 %4396
  %4398 = vrot.lane.b32.xlu0 %v3984, 8
  %v4399 = vpop.permute.xlu0 %4398
  %4400 = vrot.lane.b32.xlu0 %v3455, 8
  %v4401 = vpop.permute.xlu0 %4400
  %4402 = vrot.lane.b32.xlu0 %v3493, 8
  %v4403 = vpop.permute.xlu0 %4402
  %4404 = vrot.lane.b32.xlu0 %v3531, 8
  %v4405 = vpop.permute.xlu0 %4404
  %4406 = vrot.lane.b32.xlu0 %v3569, 8
  %v4407 = vpop.permute.xlu0 %4406
  %4408 = vrot.lane.b32.xlu0 %v3607, 8
  %v4409 = vpop.permute.xlu0 %4408
  %4410 = vrot.lane.b32.xlu0 %v3645, 8
  %v4411 = vpop.permute.xlu0 %4410
  %4412 = vrot.lane.b32.xlu0 %v3683, 8
  %v4413 = vpop.permute.xlu0 %4412
  %4414 = vrot.lane.b32.xlu0 %v3721, 8
  %v4415 = vpop.permute.xlu0 %4414
  %4416 = vrot.lane.b32.xlu0 %v3759, 8
  %v4417 = vpop.permute.xlu0 %4416
  %4418 = vrot.lane.b32.xlu0 %v3797, 8
  %v4419 = vpop.permute.xlu0 %4418
  %4420 = vrot.lane.b32.xlu0 %v3835, 8
  %v4421 = vpop.permute.xlu0 %4420
  %4422 = vrot.lane.b32.xlu0 %v3873, 8
  %v4423 = vpop.permute.xlu0 %4422
  %4424 = vrot.lane.b32.xlu0 %v3911, 8
  %v4425 = vpop.permute.xlu0 %4424
  %4426 = vrot.lane.b32.xlu0 %v3949, 8
  %v4427 = vpop.permute.xlu0 %4426
  %4428 = vrot.lane.b32.xlu0 %v3987, 8
  %v4429 = vpop.permute.xlu0 %4428
  %4430 = vrot.lane.b32.xlu0 %v3457, 8
  %v4431 = vpop.permute.xlu0 %4430
  %4432 = vrot.lane.b32.xlu0 %v3495, 8
  %v4433 = vpop.permute.xlu0 %4432
  %4434 = vrot.lane.b32.xlu0 %v3533, 8
  %v4435 = vpop.permute.xlu0 %4434
  %4436 = vrot.lane.b32.xlu0 %v3571, 8
  %v4437 = vpop.permute.xlu0 %4436
  %4438 = vrot.lane.b32.xlu0 %v3609, 8
  %v4439 = vpop.permute.xlu0 %4438
  %4440 = vrot.lane.b32.xlu0 %v3647, 8
  %v4441 = vpop.permute.xlu0 %4440
  %4442 = vrot.lane.b32.xlu0 %v3685, 8
  %v4443 = vpop.permute.xlu0 %4442
  %4444 = vrot.lane.b32.xlu0 %v3723, 8
  %v4445 = vpop.permute.xlu0 %4444
  %4446 = vrot.lane.b32.xlu0 %v3761, 8
  %v4447 = vpop.permute.xlu0 %4446
  %4448 = vrot.lane.b32.xlu0 %v3799, 8
  %v4449 = vpop.permute.xlu0 %4448
  %4450 = vrot.lane.b32.xlu0 %v3837, 8
  %v4451 = vpop.permute.xlu0 %4450
  %4452 = vrot.lane.b32.xlu0 %v3875, 8
  %v4453 = vpop.permute.xlu0 %4452
  %4454 = vrot.lane.b32.xlu0 %v3913, 8
  %v4455 = vpop.permute.xlu0 %4454
  %4456 = vrot.lane.b32.xlu0 %v3951, 8
  %v4457 = vpop.permute.xlu0 %4456
  %4458 = vrot.lane.b32.xlu0 %v3989, 8
  %v4459 = vpop.permute.xlu0 %4458
  %vm4460 = vcmask 64512
  %v4461 = vsel %vm4460, %v4341, %v4343
  %v4462 = vsel %vm4460, %v4343, %v4345
  %v4463 = vsel %vm4460, %v4345, %v4347
  %v4464 = vsel %vm4460, %v4347, %v4349
  %v4465 = vsel %vm4460, %v4349, %v4351
  %v4466 = vsel %vm4460, %v4351, %v4353
  %v4467 = vsel %vm4460, %v4353, %v4355
  %v4468 = vsel %vm4460, %v4355, %v4357
  %v4469 = vsel %vm4460, %v4357, %v4359
  %v4470 = vsel %vm4460, %v4359, %v4361
  %v4471 = vsel %vm4460, %v4361, %v4363
  %v4472 = vsel %vm4460, %v4363, %v4365
  %v4473 = vsel %vm4460, %v4365, %v4367
  %v4474 = vsel %vm4460, %v4367, %v4369
  %v4475 = vsel %vm4460, %v4371, %v4373
  %v4476 = vsel %vm4460, %v4373, %v4375
  %v4477 = vsel %vm4460, %v4375, %v4377
  %v4478 = vsel %vm4460, %v4377, %v4379
  %v4479 = vsel %vm4460, %v4379, %v4381
  %v4480 = vsel %vm4460, %v4381, %v4383
  %v4481 = vsel %vm4460, %v4383, %v4385
  %v4482 = vsel %vm4460, %v4385, %v4387
  %v4483 = vsel %vm4460, %v4387, %v4389
  %v4484 = vsel %vm4460, %v4389, %v4391
  %v4485 = vsel %vm4460, %v4391, %v4393
  %v4486 = vsel %vm4460, %v4393, %v4395
  %v4487 = vsel %vm4460, %v4395, %v4397
  %v4488 = vsel %vm4460, %v4397, %v4399
  %v4489 = vsel %vm4460, %v4401, %v4403
  %v4490 = vsel %vm4460, %v4403, %v4405
  %v4491 = vsel %vm4460, %v4405, %v4407
  %v4492 = vsel %vm4460, %v4407, %v4409
  %v4493 = vsel %vm4460, %v4409, %v4411
  %v4494 = vsel %vm4460, %v4411, %v4413
  %v4495 = vsel %vm4460, %v4413, %v4415
  %v4496 = vsel %vm4460, %v4415, %v4417
  %v4497 = vsel %vm4460, %v4417, %v4419
  %v4498 = vsel %vm4460, %v4419, %v4421
  %v4499 = vsel %vm4460, %v4421, %v4423
  %v4500 = vsel %vm4460, %v4423, %v4425
  %v4501 = vsel %vm4460, %v4425, %v4427
  %v4502 = vsel %vm4460, %v4427, %v4429
  %v4503 = vsel %vm4460, %v4431, %v4433
  %v4504 = vsel %vm4460, %v4433, %v4435
  %v4505 = vsel %vm4460, %v4435, %v4437
  %v4506 = vsel %vm4460, %v4437, %v4439
  %v4507 = vsel %vm4460, %v4439, %v4441
  %v4508 = vsel %vm4460, %v4441, %v4443
  %v4509 = vsel %vm4460, %v4443, %v4445
  %v4510 = vsel %vm4460, %v4445, %v4447
  %v4511 = vsel %vm4460, %v4447, %v4449
  %v4512 = vsel %vm4460, %v4449, %v4451
  %v4513 = vsel %vm4460, %v4451, %v4453
  %v4514 = vsel %vm4460, %v4453, %v4455
  %v4515 = vsel %vm4460, %v4455, %v4457
  %v4516 = vsel %vm4460, %v4457, %v4459
  %v4573 = vmax.f32 %v4284, %v4461
  %v4574 = vmax.f32 %v4285, %v4462
  %v4575 = vmax.f32 %v4286, %v4463
  %v4576 = vmax.f32 %v4287, %v4464
  %v4577 = vmax.f32 %v4288, %v4465
  %v4578 = vmax.f32 %v4289, %v4466
  %v4579 = vmax.f32 %v4290, %v4467
  %v4580 = vmax.f32 %v4291, %v4468
  %v4581 = vmax.f32 %v4292, %v4469
  %v4582 = vmax.f32 %v4293, %v4470
  %v4583 = vmax.f32 %v4294, %v4471
  %v4584 = vmax.f32 %v4295, %v4472
  %v4585 = vmax.f32 %v4296, %v4473
  %v4586 = vmax.f32 %v4297, %v4474
  %v4587 = vmax.f32 %v4298, %v4475
  %v4588 = vmax.f32 %v4299, %v4476
  %v4589 = vmax.f32 %v4300, %v4477
  %v4590 = vmax.f32 %v4301, %v4478
  %v4591 = vmax.f32 %v4302, %v4479
  %v4592 = vmax.f32 %v4303, %v4480
  %v4593 = vmax.f32 %v4304, %v4481
  %v4594 = vmax.f32 %v4305, %v4482
  %v4595 = vmax.f32 %v4306, %v4483
  %v4596 = vmax.f32 %v4307, %v4484
  %v4597 = vmax.f32 %v4308, %v4485
  %v4598 = vmax.f32 %v4309, %v4486
  %v4599 = vmax.f32 %v4310, %v4487
  %v4600 = vmax.f32 %v4311, %v4488
  %v4601 = vmax.f32 %v4312, %v4489
  %v4602 = vmax.f32 %v4313, %v4490
  %v4603 = vmax.f32 %v4314, %v4491
  %v4604 = vmax.f32 %v4315, %v4492
  %v4605 = vmax.f32 %v4316, %v4493
  %v4606 = vmax.f32 %v4317, %v4494
  %v4607 = vmax.f32 %v4318, %v4495
  %v4608 = vmax.f32 %v4319, %v4496
  %v4609 = vmax.f32 %v4320, %v4497
  %v4610 = vmax.f32 %v4321, %v4498
  %v4611 = vmax.f32 %v4322, %v4499
  %v4612 = vmax.f32 %v4323, %v4500
  %v4613 = vmax.f32 %v4324, %v4501
  %v4614 = vmax.f32 %v4325, %v4502
  %v4615 = vmax.f32 %v4326, %v4503
  %v4616 = vmax.f32 %v4327, %v4504
  %v4617 = vmax.f32 %v4328, %v4505
  %v4618 = vmax.f32 %v4329, %v4506
  %v4619 = vmax.f32 %v4330, %v4507
  %v4620 = vmax.f32 %v4331, %v4508
  %v4621 = vmax.f32 %v4332, %v4509
  %v4622 = vmax.f32 %v4333, %v4510
  %v4623 = vmax.f32 %v4334, %v4511
  %v4624 = vmax.f32 %v4335, %v4512
  %v4625 = vmax.f32 %v4336, %v4513
  %v4626 = vmax.f32 %v4337, %v4514
  %v4627 = vmax.f32 %v4338, %v4515
  %v4628 = vmax.f32 %v4339, %v4516
  %4629 = vrot.lane.b32.xlu0 %v3450, 4
  %v4630 = vpop.permute.xlu0 %4629
  %4631 = vrot.lane.b32.xlu0 %v3488, 4
  %v4632 = vpop.permute.xlu0 %4631
  %4633 = vrot.lane.b32.xlu0 %v3526, 4
  %v4634 = vpop.permute.xlu0 %4633
  %4635 = vrot.lane.b32.xlu0 %v3564, 4
  %v4636 = vpop.permute.xlu0 %4635
  %4637 = vrot.lane.b32.xlu0 %v3602, 4
  %v4638 = vpop.permute.xlu0 %4637
  %4639 = vrot.lane.b32.xlu0 %v3640, 4
  %v4640 = vpop.permute.xlu0 %4639
  %4641 = vrot.lane.b32.xlu0 %v3678, 4
  %v4642 = vpop.permute.xlu0 %4641
  %4643 = vrot.lane.b32.xlu0 %v3716, 4
  %v4644 = vpop.permute.xlu0 %4643
  %4645 = vrot.lane.b32.xlu0 %v3754, 4
  %v4646 = vpop.permute.xlu0 %4645
  %4647 = vrot.lane.b32.xlu0 %v3792, 4
  %v4648 = vpop.permute.xlu0 %4647
  %4649 = vrot.lane.b32.xlu0 %v3830, 4
  %v4650 = vpop.permute.xlu0 %4649
  %4651 = vrot.lane.b32.xlu0 %v3868, 4
  %v4652 = vpop.permute.xlu0 %4651
  %4653 = vrot.lane.b32.xlu0 %v3906, 4
  %v4654 = vpop.permute.xlu0 %4653
  %4655 = vrot.lane.b32.xlu0 %v3944, 4
  %v4656 = vpop.permute.xlu0 %4655
  %4657 = vrot.lane.b32.xlu0 %v3982, 4
  %v4658 = vpop.permute.xlu0 %4657
  %4659 = vrot.lane.b32.xlu0 %v3452, 4
  %v4660 = vpop.permute.xlu0 %4659
  %4661 = vrot.lane.b32.xlu0 %v3490, 4
  %v4662 = vpop.permute.xlu0 %4661
  %4663 = vrot.lane.b32.xlu0 %v3528, 4
  %v4664 = vpop.permute.xlu0 %4663
  %4665 = vrot.lane.b32.xlu0 %v3566, 4
  %v4666 = vpop.permute.xlu0 %4665
  %4667 = vrot.lane.b32.xlu0 %v3604, 4
  %v4668 = vpop.permute.xlu0 %4667
  %4669 = vrot.lane.b32.xlu0 %v3642, 4
  %v4670 = vpop.permute.xlu0 %4669
  %4671 = vrot.lane.b32.xlu0 %v3680, 4
  %v4672 = vpop.permute.xlu0 %4671
  %4673 = vrot.lane.b32.xlu0 %v3718, 4
  %v4674 = vpop.permute.xlu0 %4673
  %4675 = vrot.lane.b32.xlu0 %v3756, 4
  %v4676 = vpop.permute.xlu0 %4675
  %4677 = vrot.lane.b32.xlu0 %v3794, 4
  %v4678 = vpop.permute.xlu0 %4677
  %4679 = vrot.lane.b32.xlu0 %v3832, 4
  %v4680 = vpop.permute.xlu0 %4679
  %4681 = vrot.lane.b32.xlu0 %v3870, 4
  %v4682 = vpop.permute.xlu0 %4681
  %4683 = vrot.lane.b32.xlu0 %v3908, 4
  %v4684 = vpop.permute.xlu0 %4683
  %4685 = vrot.lane.b32.xlu0 %v3946, 4
  %v4686 = vpop.permute.xlu0 %4685
  %4687 = vrot.lane.b32.xlu0 %v3984, 4
  %v4688 = vpop.permute.xlu0 %4687
  %4689 = vrot.lane.b32.xlu0 %v3455, 4
  %v4690 = vpop.permute.xlu0 %4689
  %4691 = vrot.lane.b32.xlu0 %v3493, 4
  %v4692 = vpop.permute.xlu0 %4691
  %4693 = vrot.lane.b32.xlu0 %v3531, 4
  %v4694 = vpop.permute.xlu0 %4693
  %4695 = vrot.lane.b32.xlu0 %v3569, 4
  %v4696 = vpop.permute.xlu0 %4695
  %4697 = vrot.lane.b32.xlu0 %v3607, 4
  %v4698 = vpop.permute.xlu0 %4697
  %4699 = vrot.lane.b32.xlu0 %v3645, 4
  %v4700 = vpop.permute.xlu0 %4699
  %4701 = vrot.lane.b32.xlu0 %v3683, 4
  %v4702 = vpop.permute.xlu0 %4701
  %4703 = vrot.lane.b32.xlu0 %v3721, 4
  %v4704 = vpop.permute.xlu0 %4703
  %4705 = vrot.lane.b32.xlu0 %v3759, 4
  %v4706 = vpop.permute.xlu0 %4705
  %4707 = vrot.lane.b32.xlu0 %v3797, 4
  %v4708 = vpop.permute.xlu0 %4707
  %4709 = vrot.lane.b32.xlu0 %v3835, 4
  %v4710 = vpop.permute.xlu0 %4709
  %4711 = vrot.lane.b32.xlu0 %v3873, 4
  %v4712 = vpop.permute.xlu0 %4711
  %4713 = vrot.lane.b32.xlu0 %v3911, 4
  %v4714 = vpop.permute.xlu0 %4713
  %4715 = vrot.lane.b32.xlu0 %v3949, 4
  %v4716 = vpop.permute.xlu0 %4715
  %4717 = vrot.lane.b32.xlu0 %v3987, 4
  %v4718 = vpop.permute.xlu0 %4717
  %4719 = vrot.lane.b32.xlu0 %v3457, 4
  %v4720 = vpop.permute.xlu0 %4719
  %4721 = vrot.lane.b32.xlu0 %v3495, 4
  %v4722 = vpop.permute.xlu0 %4721
  %4723 = vrot.lane.b32.xlu0 %v3533, 4
  %v4724 = vpop.permute.xlu0 %4723
  %4725 = vrot.lane.b32.xlu0 %v3571, 4
  %v4726 = vpop.permute.xlu0 %4725
  %4727 = vrot.lane.b32.xlu0 %v3609, 4
  %v4728 = vpop.permute.xlu0 %4727
  %4729 = vrot.lane.b32.xlu0 %v3647, 4
  %v4730 = vpop.permute.xlu0 %4729
  %4731 = vrot.lane.b32.xlu0 %v3685, 4
  %v4732 = vpop.permute.xlu0 %4731
  %4733 = vrot.lane.b32.xlu0 %v3723, 4
  %v4734 = vpop.permute.xlu0 %4733
  %4735 = vrot.lane.b32.xlu0 %v3761, 4
  %v4736 = vpop.permute.xlu0 %4735
  %4737 = vrot.lane.b32.xlu0 %v3799, 4
  %v4738 = vpop.permute.xlu0 %4737
  %4739 = vrot.lane.b32.xlu0 %v3837, 4
  %v4740 = vpop.permute.xlu0 %4739
  %4741 = vrot.lane.b32.xlu0 %v3875, 4
  %v4742 = vpop.permute.xlu0 %4741
  %4743 = vrot.lane.b32.xlu0 %v3913, 4
  %v4744 = vpop.permute.xlu0 %4743
  %4745 = vrot.lane.b32.xlu0 %v3951, 4
  %v4746 = vpop.permute.xlu0 %4745
  %4747 = vrot.lane.b32.xlu0 %v3989, 4
  %v4748 = vpop.permute.xlu0 %4747
  %vm4749 = vcmask 31744
  %v4750 = vsel %vm4749, %v4630, %v4632
  %v4751 = vsel %vm4749, %v4632, %v4634
  %v4752 = vsel %vm4749, %v4634, %v4636
  %v4753 = vsel %vm4749, %v4636, %v4638
  %v4754 = vsel %vm4749, %v4638, %v4640
  %v4755 = vsel %vm4749, %v4640, %v4642
  %v4756 = vsel %vm4749, %v4642, %v4644
  %v4757 = vsel %vm4749, %v4644, %v4646
  %v4758 = vsel %vm4749, %v4646, %v4648
  %v4759 = vsel %vm4749, %v4648, %v4650
  %v4760 = vsel %vm4749, %v4650, %v4652
  %v4761 = vsel %vm4749, %v4652, %v4654
  %v4762 = vsel %vm4749, %v4654, %v4656
  %v4763 = vsel %vm4749, %v4656, %v4658
  %v4764 = vsel %vm4749, %v4660, %v4662
  %v4765 = vsel %vm4749, %v4662, %v4664
  %v4766 = vsel %vm4749, %v4664, %v4666
  %v4767 = vsel %vm4749, %v4666, %v4668
  %v4768 = vsel %vm4749, %v4668, %v4670
  %v4769 = vsel %vm4749, %v4670, %v4672
  %v4770 = vsel %vm4749, %v4672, %v4674
  %v4771 = vsel %vm4749, %v4674, %v4676
  %v4772 = vsel %vm4749, %v4676, %v4678
  %v4773 = vsel %vm4749, %v4678, %v4680
  %v4774 = vsel %vm4749, %v4680, %v4682
  %v4775 = vsel %vm4749, %v4682, %v4684
  %v4776 = vsel %vm4749, %v4684, %v4686
  %v4777 = vsel %vm4749, %v4686, %v4688
  %v4778 = vsel %vm4749, %v4690, %v4692
  %v4779 = vsel %vm4749, %v4692, %v4694
  %v4780 = vsel %vm4749, %v4694, %v4696
  %v4781 = vsel %vm4749, %v4696, %v4698
  %v4782 = vsel %vm4749, %v4698, %v4700
  %v4783 = vsel %vm4749, %v4700, %v4702
  %v4784 = vsel %vm4749, %v4702, %v4704
  %v4785 = vsel %vm4749, %v4704, %v4706
  %v4786 = vsel %vm4749, %v4706, %v4708
  %v4787 = vsel %vm4749, %v4708, %v4710
  %v4788 = vsel %vm4749, %v4710, %v4712
  %v4789 = vsel %vm4749, %v4712, %v4714
  %v4790 = vsel %vm4749, %v4714, %v4716
  %v4791 = vsel %vm4749, %v4716, %v4718
  %v4792 = vsel %vm4749, %v4720, %v4722
  %v4793 = vsel %vm4749, %v4722, %v4724
  %v4794 = vsel %vm4749, %v4724, %v4726
  %v4795 = vsel %vm4749, %v4726, %v4728
  %v4796 = vsel %vm4749, %v4728, %v4730
  %v4797 = vsel %vm4749, %v4730, %v4732
  %v4798 = vsel %vm4749, %v4732, %v4734
  %v4799 = vsel %vm4749, %v4734, %v4736
  %v4800 = vsel %vm4749, %v4736, %v4738
  %v4801 = vsel %vm4749, %v4738, %v4740
  %v4802 = vsel %vm4749, %v4740, %v4742
  %v4803 = vsel %vm4749, %v4742, %v4744
  %v4804 = vsel %vm4749, %v4744, %v4746
  %v4805 = vsel %vm4749, %v4746, %v4748
  %v4862 = vmax.f32 %v4573, %v4750
  %v4863 = vmax.f32 %v4574, %v4751
  %v4864 = vmax.f32 %v4575, %v4752
  %v4865 = vmax.f32 %v4576, %v4753
  %v4866 = vmax.f32 %v4577, %v4754
  %v4867 = vmax.f32 %v4578, %v4755
  %v4868 = vmax.f32 %v4579, %v4756
  %v4869 = vmax.f32 %v4580, %v4757
  %v4870 = vmax.f32 %v4581, %v4758
  %v4871 = vmax.f32 %v4582, %v4759
  %v4872 = vmax.f32 %v4583, %v4760
  %v4873 = vmax.f32 %v4584, %v4761
  %v4874 = vmax.f32 %v4585, %v4762
  %v4875 = vmax.f32 %v4586, %v4763
  %v4876 = vmax.f32 %v4587, %v4764
  %v4877 = vmax.f32 %v4588, %v4765
  %v4878 = vmax.f32 %v4589, %v4766
  %v4879 = vmax.f32 %v4590, %v4767
  %v4880 = vmax.f32 %v4591, %v4768
  %v4881 = vmax.f32 %v4592, %v4769
  %v4882 = vmax.f32 %v4593, %v4770
  %v4883 = vmax.f32 %v4594, %v4771
  %v4884 = vmax.f32 %v4595, %v4772
  %v4885 = vmax.f32 %v4596, %v4773
  %v4886 = vmax.f32 %v4597, %v4774
  %v4887 = vmax.f32 %v4598, %v4775
  %v4888 = vmax.f32 %v4599, %v4776
  %v4889 = vmax.f32 %v4600, %v4777
  %v4890 = vmax.f32 %v4601, %v4778
  %v4891 = vmax.f32 %v4602, %v4779
  %v4892 = vmax.f32 %v4603, %v4780
  %v4893 = vmax.f32 %v4604, %v4781
  %v4894 = vmax.f32 %v4605, %v4782
  %v4895 = vmax.f32 %v4606, %v4783
  %v4896 = vmax.f32 %v4607, %v4784
  %v4897 = vmax.f32 %v4608, %v4785
  %v4898 = vmax.f32 %v4609, %v4786
  %v4899 = vmax.f32 %v4610, %v4787
  %v4900 = vmax.f32 %v4611, %v4788
  %v4901 = vmax.f32 %v4612, %v4789
  %v4902 = vmax.f32 %v4613, %v4790
  %v4903 = vmax.f32 %v4614, %v4791
  %v4904 = vmax.f32 %v4615, %v4792
  %v4905 = vmax.f32 %v4616, %v4793
  %v4906 = vmax.f32 %v4617, %v4794
  %v4907 = vmax.f32 %v4618, %v4795
  %v4908 = vmax.f32 %v4619, %v4796
  %v4909 = vmax.f32 %v4620, %v4797
  %v4910 = vmax.f32 %v4621, %v4798
  %v4911 = vmax.f32 %v4622, %v4799
  %v4912 = vmax.f32 %v4623, %v4800
  %v4913 = vmax.f32 %v4624, %v4801
  %v4914 = vmax.f32 %v4625, %v4802
  %v4915 = vmax.f32 %v4626, %v4803
  %v4916 = vmax.f32 %v4627, %v4804
  %v4917 = vmax.f32 %v4628, %v4805
  %v4918 = vld [vmem:[%s5] sm:$0xff]
  %v4919 = vld [vmem:[%s5 + $0x8] sm:$0xff]
  %v4920 = vld [vmem:[%s5 + $0x10] sm:$0xff]
  %v4921 = vld [vmem:[%s5 + $0x18] sm:$0xff]
  %4923 = vset.pattern.permute.xlu0 0
  %4924 = vperm.xlu0 %4923, %v4918
  %v4925 = vpop.permute.xlu0 %4924
  %4928 = vset.pattern.permute.xlu0 0
  %4929 = vperm.xlu0 %4928, %v4919
  %v4930 = vpop.permute.xlu0 %4929
  %4933 = vset.pattern.permute.xlu0 0
  %4934 = vperm.xlu0 %4933, %v4920
  %v4935 = vpop.permute.xlu0 %4934
  %4938 = vset.pattern.permute.xlu0 0
  %4939 = vperm.xlu0 %4938, %v4921
  %v4940 = vpop.permute.xlu0 %4939
  %v4942 = vadd.f32 %v4862, %v4925
  %v4943 = vadd.f32 %v4863, %v4925
  %v4944 = vadd.f32 %v4864, %v4925
  %v4945 = vadd.f32 %v4865, %v4925
  %v4946 = vadd.f32 %v4866, %v4925
  %v4947 = vadd.f32 %v4867, %v4925
  %v4948 = vadd.f32 %v4868, %v4925
  %v4949 = vadd.f32 %v4869, %v4925
  %v4950 = vadd.f32 %v4870, %v4925
  %v4951 = vadd.f32 %v4871, %v4925
  %v4952 = vadd.f32 %v4872, %v4925
  %v4953 = vadd.f32 %v4873, %v4925
  %v4954 = vadd.f32 %v4874, %v4925
  %v4955 = vadd.f32 %v4875, %v4925
  %v4956 = vadd.f32 %v4876, %v4930
  %v4957 = vadd.f32 %v4877, %v4930
  %v4958 = vadd.f32 %v4878, %v4930
  %v4959 = vadd.f32 %v4879, %v4930
  %v4960 = vadd.f32 %v4880, %v4930
  %v4961 = vadd.f32 %v4881, %v4930
  %v4962 = vadd.f32 %v4882, %v4930
  %v4963 = vadd.f32 %v4883, %v4930
  %v4964 = vadd.f32 %v4884, %v4930
  %v4965 = vadd.f32 %v4885, %v4930
  %v4966 = vadd.f32 %v4886, %v4930
  %v4967 = vadd.f32 %v4887, %v4930
  %v4968 = vadd.f32 %v4888, %v4930
  %v4969 = vadd.f32 %v4889, %v4930
  %v4970 = vadd.f32 %v4890, %v4935
  %v4971 = vadd.f32 %v4891, %v4935
  %v4972 = vadd.f32 %v4892, %v4935
  %v4973 = vadd.f32 %v4893, %v4935
  %v4974 = vadd.f32 %v4894, %v4935
  %v4975 = vadd.f32 %v4895, %v4935
  %v4976 = vadd.f32 %v4896, %v4935
  %v4977 = vadd.f32 %v4897, %v4935
  %v4978 = vadd.f32 %v4898, %v4935
  %v4979 = vadd.f32 %v4899, %v4935
  %v4980 = vadd.f32 %v4900, %v4935
  %v4981 = vadd.f32 %v4901, %v4935
  %v4982 = vadd.f32 %v4902, %v4935
  %v4983 = vadd.f32 %v4903, %v4935
  %v4984 = vadd.f32 %v4904, %v4940
  %v4985 = vadd.f32 %v4905, %v4940
  %v4986 = vadd.f32 %v4906, %v4940
  %v4987 = vadd.f32 %v4907, %v4940
  %v4988 = vadd.f32 %v4908, %v4940
  %v4989 = vadd.f32 %v4909, %v4940
  %v4990 = vadd.f32 %v4910, %v4940
  %v4991 = vadd.f32 %v4911, %v4940
  %v4992 = vadd.f32 %v4912, %v4940
  %v4993 = vadd.f32 %v4913, %v4940
  %v4994 = vadd.f32 %v4914, %v4940
  %v4995 = vadd.f32 %v4915, %v4940
  %v4996 = vadd.f32 %v4916, %v4940
  %v4997 = vadd.f32 %v4917, %v4940
  %v4998 = vmax.f32 %v4942, 0.0
  %v4999 = vmax.f32 %v4943, 0.0
  %v5000 = vmax.f32 %v4944, 0.0
  %v5001 = vmax.f32 %v4945, 0.0
  %v5002 = vmax.f32 %v4946, 0.0
  %v5003 = vmax.f32 %v4947, 0.0
  %v5004 = vmax.f32 %v4948, 0.0
  %v5005 = vmax.f32 %v4949, 0.0
  %v5006 = vmax.f32 %v4950, 0.0
  %v5007 = vmax.f32 %v4951, 0.0
  %v5008 = vmax.f32 %v4952, 0.0
  %v5009 = vmax.f32 %v4953, 0.0
  %v5010 = vmax.f32 %v4954, 0.0
  %v5011 = vmax.f32 %v4955, 0.0
  %v5012 = vmax.f32 %v4956, 0.0
  %v5013 = vmax.f32 %v4957, 0.0
  %v5014 = vmax.f32 %v4958, 0.0
  %v5015 = vmax.f32 %v4959, 0.0
  %v5016 = vmax.f32 %v4960, 0.0
  %v5017 = vmax.f32 %v4961, 0.0
  %v5018 = vmax.f32 %v4962, 0.0
  %v5019 = vmax.f32 %v4963, 0.0
  %v5020 = vmax.f32 %v4964, 0.0
  %v5021 = vmax.f32 %v4965, 0.0
  %v5022 = vmax.f32 %v4966, 0.0
  %v5023 = vmax.f32 %v4967, 0.0
  %v5024 = vmax.f32 %v4968, 0.0
  %v5025 = vmax.f32 %v4969, 0.0
  %v5026 = vmax.f32 %v4970, 0.0
  %v5027 = vmax.f32 %v4971, 0.0
  %v5028 = vmax.f32 %v4972, 0.0
  %v5029 = vmax.f32 %v4973, 0.0
  %v5030 = vmax.f32 %v4974, 0.0
  %v5031 = vmax.f32 %v4975, 0.0
  %v5032 = vmax.f32 %v4976, 0.0
  %v5033 = vmax.f32 %v4977, 0.0
  %v5034 = vmax.f32 %v4978, 0.0
  %v5035 = vmax.f32 %v4979, 0.0
  %v5036 = vmax.f32 %v4980, 0.0
  %v5037 = vmax.f32 %v4981, 0.0
  %v5038 = vmax.f32 %v4982, 0.0
  %v5039 = vmax.f32 %v4983, 0.0
  %v5040 = vmax.f32 %v4984, 0.0
  %v5041 = vmax.f32 %v4985, 0.0
  %v5042 = vmax.f32 %v4986, 0.0
  %v5043 = vmax.f32 %v4987, 0.0
  %v5044 = vmax.f32 %v4988, 0.0
  %v5045 = vmax.f32 %v4989, 0.0
  %v5046 = vmax.f32 %v4990, 0.0
  %v5047 = vmax.f32 %v4991, 0.0
  %v5048 = vmax.f32 %v4992, 0.0
  %v5049 = vmax.f32 %v4993, 0.0
  %v5050 = vmax.f32 %v4994, 0.0
  %v5051 = vmax.f32 %v4995, 0.0
  %v5052 = vmax.f32 %v4996, 0.0
  %v5053 = vmax.f32 %v4997, 0.0
  %v5054 = vpack.c.bf16 %v4999, %v4998
  %v5055 = vpack.c.bf16 %v5001, %v5000
  %v5056 = vpack.c.bf16 %v5003, %v5002
  %v5057 = vpack.c.bf16 %v5005, %v5004
  %v5058 = vpack.c.bf16 %v5007, %v5006
  %v5059 = vpack.c.bf16 %v5009, %v5008
  %v5060 = vpack.c.bf16 %v5011, %v5010
  %v5061 = vpack.c.bf16 %v5013, %v5012
  %v5062 = vpack.c.bf16 %v5015, %v5014
  %v5063 = vpack.c.bf16 %v5017, %v5016
  %v5064 = vpack.c.bf16 %v5019, %v5018
  %v5065 = vpack.c.bf16 %v5021, %v5020
  %v5066 = vpack.c.bf16 %v5023, %v5022
  %v5067 = vpack.c.bf16 %v5025, %v5024
  %v5068 = vpack.c.bf16 %v5027, %v5026
  %v5069 = vpack.c.bf16 %v5029, %v5028
  %v5070 = vpack.c.bf16 %v5031, %v5030
  %v5071 = vpack.c.bf16 %v5033, %v5032
  %v5072 = vpack.c.bf16 %v5035, %v5034
  %v5073 = vpack.c.bf16 %v5037, %v5036
  %v5074 = vpack.c.bf16 %v5039, %v5038
  %v5075 = vpack.c.bf16 %v5041, %v5040
  %v5076 = vpack.c.bf16 %v5043, %v5042
  %v5077 = vpack.c.bf16 %v5045, %v5044
  %v5078 = vpack.c.bf16 %v5047, %v5046
  %v5079 = vpack.c.bf16 %v5049, %v5048
  %v5080 = vpack.c.bf16 %v5051, %v5050
  %v5081 = vpack.c.bf16 %v5053, %v5052
  %v5086 = vunpack.c.l.b16 %v5054
  %v5087 = vunpack.c.l.b16 %v5061
  %v5088 = vunpack.c.l.b16 %v5068
  %v5089 = vunpack.c.l.b16 %v5075
  %v5090 = vpack.c.b16 %v5087, %v5086
  %v5091 = vpack.c.b16 %v5089, %v5088
  %5092 = vrot.lane.b32.xlu0 %v5090, 120
  %v5093 = vpop.permute.xlu0 %5092
  %5094 = vrot.lane.b32.xlu0 %v5091, 120
  %v5095 = vpop.permute.xlu0 %5094
  %5096 = vrot.lane.b32.xlu0 %v5090, 112
  %v5097 = vpop.permute.xlu0 %5096
  %5098 = vrot.lane.b32.xlu0 %v5091, 112
  %v5099 = vpop.permute.xlu0 %5098
  %5100 = vrot.lane.b32.xlu0 %v5090, 104
  %v5101 = vpop.permute.xlu0 %5100
  %5102 = vrot.lane.b32.xlu0 %v5091, 104
  %v5103 = vpop.permute.xlu0 %5102
  %5104 = vrot.lane.b32.xlu0 %v5090, 96
  %v5105 = vpop.permute.xlu0 %5104
  %5106 = vrot.lane.b32.xlu0 %v5091, 96
  %v5107 = vpop.permute.xlu0 %5106
  %5108 = vrot.lane.b32.xlu0 %v5090, 88
  %v5109 = vpop.permute.xlu0 %5108
  %5110 = vrot.lane.b32.xlu0 %v5091, 88
  %v5111 = vpop.permute.xlu0 %5110
  %5112 = vrot.lane.b32.xlu0 %v5090, 80
  %v5113 = vpop.permute.xlu0 %5112
  %5114 = vrot.lane.b32.xlu0 %v5091, 80
  %v5115 = vpop.permute.xlu0 %5114
  %v5120 = vunpack.c.l.b16 %v5055
  %v5121 = vunpack.c.l.b16 %v5062
  %v5122 = vunpack.c.l.b16 %v5069
  %v5123 = vunpack.c.l.b16 %v5076
  %v5124 = vpack.c.b16 %v5121, %v5120
  %v5125 = vpack.c.b16 %v5123, %v5122
  %5126 = vrot.lane.b32.xlu0 %v5124, 16
  %v5127 = vpop.permute.xlu0 %5126
  %5128 = vrot.lane.b32.xlu0 %v5125, 16
  %v5129 = vpop.permute.xlu0 %5128
  %5130 = vrot.lane.b32.xlu0 %v5124, 8
  %v5131 = vpop.permute.xlu0 %5130
  %5132 = vrot.lane.b32.xlu0 %v5125, 8
  %v5133 = vpop.permute.xlu0 %5132
  %5134 = vrot.lane.b32.xlu0 %v5124, 120
  %v5135 = vpop.permute.xlu0 %5134
  %5136 = vrot.lane.b32.xlu0 %v5125, 120
  %v5137 = vpop.permute.xlu0 %5136
  %5138 = vrot.lane.b32.xlu0 %v5124, 112
  %v5139 = vpop.permute.xlu0 %5138
  %5140 = vrot.lane.b32.xlu0 %v5125, 112
  %v5141 = vpop.permute.xlu0 %5140
  %5142 = vrot.lane.b32.xlu0 %v5124, 104
  %v5143 = vpop.permute.xlu0 %5142
  %5144 = vrot.lane.b32.xlu0 %v5125, 104
  %v5145 = vpop.permute.xlu0 %5144
  %5146 = vrot.lane.b32.xlu0 %v5124, 96
  %v5147 = vpop.permute.xlu0 %5146
  %5148 = vrot.lane.b32.xlu0 %v5125, 96
  %v5149 = vpop.permute.xlu0 %5148
  %v5154 = vunpack.c.l.b16 %v5056
  %v5155 = vunpack.c.l.b16 %v5063
  %v5156 = vunpack.c.l.b16 %v5070
  %v5157 = vunpack.c.l.b16 %v5077
  %v5158 = vpack.c.b16 %v5155, %v5154
  %v5159 = vpack.c.b16 %v5157, %v5156
  %5160 = vrot.lane.b32.xlu0 %v5158, 32
  %v5161 = vpop.permute.xlu0 %5160
  %5162 = vrot.lane.b32.xlu0 %v5159, 32
  %v5163 = vpop.permute.xlu0 %5162
  %5164 = vrot.lane.b32.xlu0 %v5158, 24
  %v5165 = vpop.permute.xlu0 %5164
  %5166 = vrot.lane.b32.xlu0 %v5159, 24
  %v5167 = vpop.permute.xlu0 %5166
  %5168 = vrot.lane.b32.xlu0 %v5158, 120
  %v5169 = vpop.permute.xlu0 %5168
  %5170 = vrot.lane.b32.xlu0 %v5159, 120
  %v5171 = vpop.permute.xlu0 %5170
  %5172 = vrot.lane.b32.xlu0 %v5158, 112
  %v5173 = vpop.permute.xlu0 %5172
  %5174 = vrot.lane.b32.xlu0 %v5159, 112
  %v5175 = vpop.permute.xlu0 %5174
  %5176 = vrot.lane.b32.xlu0 %v5158, 104
  %v5177 = vpop.permute.xlu0 %5176
  %5178 = vrot.lane.b32.xlu0 %v5159, 104
  %v5179 = vpop.permute.xlu0 %5178
  %5180 = vrot.lane.b32.xlu0 %v5158, 96
  %v5181 = vpop.permute.xlu0 %5180
  %5182 = vrot.lane.b32.xlu0 %v5159, 96
  %v5183 = vpop.permute.xlu0 %5182
  %v5188 = vunpack.c.l.b16 %v5057
  %v5189 = vunpack.c.l.b16 %v5064
  %v5190 = vunpack.c.l.b16 %v5071
  %v5191 = vunpack.c.l.b16 %v5078
  %v5192 = vpack.c.b16 %v5189, %v5188
  %v5193 = vpack.c.b16 %v5191, %v5190
  %5194 = vrot.lane.b32.xlu0 %v5192, 32
  %v5195 = vpop.permute.xlu0 %5194
  %5196 = vrot.lane.b32.xlu0 %v5193, 32
  %v5197 = vpop.permute.xlu0 %5196
  %5198 = vrot.lane.b32.xlu0 %v5192, 24
  %v5199 = vpop.permute.xlu0 %5198
  %5200 = vrot.lane.b32.xlu0 %v5193, 24
  %v5201 = vpop.permute.xlu0 %5200
  %5202 = vrot.lane.b32.xlu0 %v5192, 16
  %v5203 = vpop.permute.xlu0 %5202
  %5204 = vrot.lane.b32.xlu0 %v5193, 16
  %v5205 = vpop.permute.xlu0 %5204
  %5206 = vrot.lane.b32.xlu0 %v5192, 8
  %v5207 = vpop.permute.xlu0 %5206
  %5208 = vrot.lane.b32.xlu0 %v5193, 8
  %v5209 = vpop.permute.xlu0 %5208
  %5210 = vrot.lane.b32.xlu0 %v5192, 120
  %v5211 = vpop.permute.xlu0 %5210
  %5212 = vrot.lane.b32.xlu0 %v5193, 120
  %v5213 = vpop.permute.xlu0 %5212
  %5214 = vrot.lane.b32.xlu0 %v5192, 112
  %v5215 = vpop.permute.xlu0 %5214
  %5216 = vrot.lane.b32.xlu0 %v5193, 112
  %v5217 = vpop.permute.xlu0 %5216
  %v5218 = vunpack.c.h.b16 %v5057
  %v5219 = vunpack.c.h.b16 %v5064
  %v5220 = vunpack.c.h.b16 %v5071
  %v5221 = vunpack.c.h.b16 %v5078
  %v5222 = vpack.c.b16 %v5219, %v5218
  %v5223 = vpack.c.b16 %v5221, %v5220
  %5224 = vrot.lane.b32.xlu0 %v5222, 48
  %v5225 = vpop.permute.xlu0 %5224
  %5226 = vrot.lane.b32.xlu0 %v5223, 48
  %v5227 = vpop.permute.xlu0 %5226
  %v5232 = vunpack.c.l.b16 %v5058
  %v5233 = vunpack.c.l.b16 %v5065
  %v5234 = vunpack.c.l.b16 %v5072
  %v5235 = vunpack.c.l.b16 %v5079
  %v5236 = vpack.c.b16 %v5233, %v5232
  %v5237 = vpack.c.b16 %v5235, %v5234
  %5238 = vrot.lane.b32.xlu0 %v5236, 40
  %v5239 = vpop.permute.xlu0 %5238
  %5240 = vrot.lane.b32.xlu0 %v5237, 40
  %v5241 = vpop.permute.xlu0 %5240
  %5242 = vrot.lane.b32.xlu0 %v5236, 32
  %v5243 = vpop.permute.xlu0 %5242
  %5244 = vrot.lane.b32.xlu0 %v5237, 32
  %v5245 = vpop.permute.xlu0 %5244
  %5246 = vrot.lane.b32.xlu0 %v5236, 24
  %v5247 = vpop.permute.xlu0 %5246
  %5248 = vrot.lane.b32.xlu0 %v5237, 24
  %v5249 = vpop.permute.xlu0 %5248
  %5250 = vrot.lane.b32.xlu0 %v5236, 120
  %v5251 = vpop.permute.xlu0 %5250
  %5252 = vrot.lane.b32.xlu0 %v5237, 120
  %v5253 = vpop.permute.xlu0 %5252
  %5254 = vrot.lane.b32.xlu0 %v5236, 112
  %v5255 = vpop.permute.xlu0 %5254
  %5256 = vrot.lane.b32.xlu0 %v5237, 112
  %v5257 = vpop.permute.xlu0 %5256
  %v5258 = vunpack.c.h.b16 %v5058
  %v5259 = vunpack.c.h.b16 %v5065
  %v5260 = vunpack.c.h.b16 %v5072
  %v5261 = vunpack.c.h.b16 %v5079
  %v5262 = vpack.c.b16 %v5259, %v5258
  %v5263 = vpack.c.b16 %v5261, %v5260
  %5264 = vrot.lane.b32.xlu0 %v5262, 48
  %v5265 = vpop.permute.xlu0 %5264
  %5266 = vrot.lane.b32.xlu0 %v5263, 48
  %v5267 = vpop.permute.xlu0 %5266
  %5268 = vrot.lane.b32.xlu0 %v5262, 40
  %v5269 = vpop.permute.xlu0 %5268
  %5270 = vrot.lane.b32.xlu0 %v5263, 40
  %v5271 = vpop.permute.xlu0 %5270
  %5272 = vrot.lane.b32.xlu0 %v5262, 32
  %v5273 = vpop.permute.xlu0 %5272
  %5274 = vrot.lane.b32.xlu0 %v5263, 32
  %v5275 = vpop.permute.xlu0 %5274
  %v5280 = vunpack.c.l.b16 %v5059
  %v5281 = vunpack.c.l.b16 %v5066
  %v5282 = vunpack.c.l.b16 %v5073
  %v5283 = vunpack.c.l.b16 %v5080
  %v5284 = vpack.c.b16 %v5281, %v5280
  %v5285 = vpack.c.b16 %v5283, %v5282
  %5286 = vrot.lane.b32.xlu0 %v5284, 24
  %v5287 = vpop.permute.xlu0 %5286
  %5288 = vrot.lane.b32.xlu0 %v5285, 24
  %v5289 = vpop.permute.xlu0 %5288
  %5290 = vrot.lane.b32.xlu0 %v5284, 16
  %v5291 = vpop.permute.xlu0 %5290
  %5292 = vrot.lane.b32.xlu0 %v5285, 16
  %v5293 = vpop.permute.xlu0 %5292
  %5294 = vrot.lane.b32.xlu0 %v5284, 8
  %v5295 = vpop.permute.xlu0 %5294
  %5296 = vrot.lane.b32.xlu0 %v5285, 8
  %v5297 = vpop.permute.xlu0 %5296
  %v5298 = vunpack.c.h.b16 %v5059
  %v5299 = vunpack.c.h.b16 %v5066
  %v5300 = vunpack.c.h.b16 %v5073
  %v5301 = vunpack.c.h.b16 %v5080
  %v5302 = vpack.c.b16 %v5299, %v5298
  %v5303 = vpack.c.b16 %v5301, %v5300
  %5304 = vrot.lane.b32.xlu0 %v5302, 64
  %v5305 = vpop.permute.xlu0 %5304
  %5306 = vrot.lane.b32.xlu0 %v5303, 64
  %v5307 = vpop.permute.xlu0 %5306
  %5308 = vrot.lane.b32.xlu0 %v5302, 56
  %v5309 = vpop.permute.xlu0 %5308
  %5310 = vrot.lane.b32.xlu0 %v5303, 56
  %v5311 = vpop.permute.xlu0 %5310
  %5312 = vrot.lane.b32.xlu0 %v5302, 48
  %v5313 = vpop.permute.xlu0 %5312
  %5314 = vrot.lane.b32.xlu0 %v5303, 48
  %v5315 = vpop.permute.xlu0 %5314
  %5316 = vrot.lane.b32.xlu0 %v5302, 40
  %v5317 = vpop.permute.xlu0 %5316
  %5318 = vrot.lane.b32.xlu0 %v5303, 40
  %v5319 = vpop.permute.xlu0 %5318
  %5320 = vrot.lane.b32.xlu0 %v5302, 32
  %v5321 = vpop.permute.xlu0 %5320
  %5322 = vrot.lane.b32.xlu0 %v5303, 32
  %v5323 = vpop.permute.xlu0 %5322
  %v5328 = vunpack.c.l.b16 %v5060
  %v5329 = vunpack.c.l.b16 %v5067
  %v5330 = vunpack.c.l.b16 %v5074
  %v5331 = vunpack.c.l.b16 %v5081
  %v5332 = vpack.c.b16 %v5329, %v5328
  %v5333 = vpack.c.b16 %v5331, %v5330
  %5334 = vrot.lane.b32.xlu0 %v5332, 24
  %v5335 = vpop.permute.xlu0 %5334
  %5336 = vrot.lane.b32.xlu0 %v5333, 24
  %v5337 = vpop.permute.xlu0 %5336
  %5338 = vrot.lane.b32.xlu0 %v5158, 16
  %v5339 = vpop.permute.xlu0 %5338
  %5340 = vrot.lane.b32.xlu0 %v5159, 16
  %v5341 = vpop.permute.xlu0 %5340
  %5342 = vrot.lane.b32.xlu0 %v5169, 16
  %v5343 = vpop.permute.xlu0 %5342
  %5344 = vrot.lane.b32.xlu0 %v5171, 16
  %v5345 = vpop.permute.xlu0 %5344
  %5346 = vrot.lane.b32.xlu0 %v5173, 16
  %v5347 = vpop.permute.xlu0 %5346
  %5348 = vrot.lane.b32.xlu0 %v5175, 16
  %v5349 = vpop.permute.xlu0 %5348
  %5350 = vrot.lane.b32.xlu0 %v5177, 16
  %v5351 = vpop.permute.xlu0 %5350
  %5352 = vrot.lane.b32.xlu0 %v5179, 16
  %v5353 = vpop.permute.xlu0 %5352
  %5354 = vrot.lane.b32.xlu0 %v5181, 16
  %v5355 = vpop.permute.xlu0 %5354
  %5356 = vrot.lane.b32.xlu0 %v5183, 16
  %v5357 = vpop.permute.xlu0 %5356
  %5358 = vrot.lane.b32.xlu0 %v5195, 16
  %v5359 = vpop.permute.xlu0 %5358
  %5360 = vrot.lane.b32.xlu0 %v5197, 16
  %v5361 = vpop.permute.xlu0 %5360
  %5362 = vrot.lane.b32.xlu0 %v5199, 16
  %v5363 = vpop.permute.xlu0 %5362
  %5364 = vrot.lane.b32.xlu0 %v5201, 16
  %v5365 = vpop.permute.xlu0 %5364
  %5366 = vrot.lane.b32.xlu0 %v5203, 16
  %v5367 = vpop.permute.xlu0 %5366
  %5368 = vrot.lane.b32.xlu0 %v5205, 16
  %v5369 = vpop.permute.xlu0 %5368
  %5370 = vrot.lane.b32.xlu0 %v5207, 16
  %v5371 = vpop.permute.xlu0 %5370
  %5372 = vrot.lane.b32.xlu0 %v5209, 16
  %v5373 = vpop.permute.xlu0 %5372
  %5374 = vrot.lane.b32.xlu0 %v5211, 16
  %v5375 = vpop.permute.xlu0 %5374
  %5376 = vrot.lane.b32.xlu0 %v5213, 16
  %v5377 = vpop.permute.xlu0 %5376
  %5378 = vrot.lane.b32.xlu0 %v5215, 16
  %v5379 = vpop.permute.xlu0 %5378
  %5380 = vrot.lane.b32.xlu0 %v5217, 16
  %v5381 = vpop.permute.xlu0 %5380
  %5382 = vrot.lane.b32.xlu0 %v5225, 16
  %v5383 = vpop.permute.xlu0 %5382
  %5384 = vrot.lane.b32.xlu0 %v5227, 16
  %v5385 = vpop.permute.xlu0 %5384
  %5386 = vrot.lane.b32.xlu0 %v5239, 16
  %v5387 = vpop.permute.xlu0 %5386
  %5388 = vrot.lane.b32.xlu0 %v5241, 16
  %v5389 = vpop.permute.xlu0 %5388
  %5390 = vrot.lane.b32.xlu0 %v5243, 16
  %v5391 = vpop.permute.xlu0 %5390
  %5392 = vrot.lane.b32.xlu0 %v5245, 16
  %v5393 = vpop.permute.xlu0 %5392
  %5394 = vrot.lane.b32.xlu0 %v5247, 16
  %v5395 = vpop.permute.xlu0 %5394
  %5396 = vrot.lane.b32.xlu0 %v5249, 16
  %v5397 = vpop.permute.xlu0 %5396
  %5398 = vrot.lane.b32.xlu0 %v5251, 32
  %v5399 = vpop.permute.xlu0 %5398
  %5400 = vrot.lane.b32.xlu0 %v5253, 32
  %v5401 = vpop.permute.xlu0 %5400
  %5402 = vrot.lane.b32.xlu0 %v5255, 32
  %v5403 = vpop.permute.xlu0 %5402
  %5404 = vrot.lane.b32.xlu0 %v5257, 32
  %v5405 = vpop.permute.xlu0 %5404
  %5406 = vrot.lane.b32.xlu0 %v5265, 32
  %v5407 = vpop.permute.xlu0 %5406
  %5408 = vrot.lane.b32.xlu0 %v5267, 32
  %v5409 = vpop.permute.xlu0 %5408
  %5410 = vrot.lane.b32.xlu0 %v5269, 32
  %v5411 = vpop.permute.xlu0 %5410
  %5412 = vrot.lane.b32.xlu0 %v5271, 32
  %v5413 = vpop.permute.xlu0 %5412
  %5414 = vrot.lane.b32.xlu0 %v5273, 32
  %v5415 = vpop.permute.xlu0 %5414
  %5416 = vrot.lane.b32.xlu0 %v5275, 32
  %v5417 = vpop.permute.xlu0 %5416
  %5418 = vrot.lane.b32.xlu0 %v5287, 32
  %v5419 = vpop.permute.xlu0 %5418
  %5420 = vrot.lane.b32.xlu0 %v5289, 32
  %v5421 = vpop.permute.xlu0 %5420
  %5422 = vrot.lane.b32.xlu0 %v5291, 32
  %v5423 = vpop.permute.xlu0 %5422
  %5424 = vrot.lane.b32.xlu0 %v5293, 32
  %v5425 = vpop.permute.xlu0 %5424
  %5426 = vrot.lane.b32.xlu0 %v5295, 32
  %v5427 = vpop.permute.xlu0 %5426
  %5428 = vrot.lane.b32.xlu0 %v5297, 32
  %v5429 = vpop.permute.xlu0 %5428
  %5430 = vrot.lane.b32.xlu0 %v5284, 32
  %v5431 = vpop.permute.xlu0 %5430
  %5432 = vrot.lane.b32.xlu0 %v5285, 32
  %v5433 = vpop.permute.xlu0 %5432
  %5434 = vrot.lane.b32.xlu0 %v5305, 32
  %v5435 = vpop.permute.xlu0 %5434
  %5436 = vrot.lane.b32.xlu0 %v5307, 32
  %v5437 = vpop.permute.xlu0 %5436
  %5438 = vrot.lane.b32.xlu0 %v5309, 32
  %v5439 = vpop.permute.xlu0 %5438
  %5440 = vrot.lane.b32.xlu0 %v5311, 32
  %v5441 = vpop.permute.xlu0 %5440
  %5442 = vrot.lane.b32.xlu0 %v5313, 32
  %v5443 = vpop.permute.xlu0 %5442
  %5444 = vrot.lane.b32.xlu0 %v5315, 32
  %v5445 = vpop.permute.xlu0 %5444
  %5446 = vrot.lane.b32.xlu0 %v5317, 32
  %v5447 = vpop.permute.xlu0 %5446
  %5448 = vrot.lane.b32.xlu0 %v5319, 32
  %v5449 = vpop.permute.xlu0 %5448
  %5450 = vrot.lane.b32.xlu0 %v5321, 32
  %v5451 = vpop.permute.xlu0 %5450
  %5452 = vrot.lane.b32.xlu0 %v5323, 32
  %v5453 = vpop.permute.xlu0 %5452
  %5454 = vrot.lane.b32.xlu0 %v5335, 32
  %v5455 = vpop.permute.xlu0 %5454
  %5456 = vrot.lane.b32.xlu0 %v5337, 32
  %v5457 = vpop.permute.xlu0 %5456
  %5458 = vrot.lane.b32.xlu0 %v5332, 48
  %v5459 = vpop.permute.xlu0 %5458
  %5460 = vrot.lane.b32.xlu0 %v5333, 48
  %v5461 = vpop.permute.xlu0 %5460
  %v5462 = vld [vmem:[%s6] sm:$0xff]
  %v5463 = vld [vmem:[%s6 + $0x8] sm:$0xff]
  %v5464 = vld [vmem:[%s6 + $0x10] sm:$0xff]
  %v5465 = vld [vmem:[%s6 + $0x18] sm:$0xff]
  %v5466 = vld [vmem:[%s6 + $0x20] sm:$0xff]
  %v5467 = vld [vmem:[%s6 + $0x28] sm:$0xff]
  %v5468 = vld [vmem:[%s6 + $0x30] sm:$0xf]
  %v5469 = vld [vmem:[%s6 + $0x34] sm:$0xff]
  %v5470 = vld [vmem:[%s6 + $0x3c] sm:$0xff]
  %v5471 = vld [vmem:[%s6 + $0x44] sm:$0xff]
  %v5472 = vld [vmem:[%s6 + $0x4c] sm:$0xff]
  %v5473 = vld [vmem:[%s6 + $0x54] sm:$0xff]
  %v5474 = vld [vmem:[%s6 + $0x5c] sm:$0xff]
  %v5475 = vld [vmem:[%s6 + $0x64] sm:$0xf]
  %v5476 = vld [vmem:[%s6 + $0x68] sm:$0xff]
  %v5477 = vld [vmem:[%s6 + $0x70] sm:$0xff]
  %v5478 = vld [vmem:[%s6 + $0x78] sm:$0xff]
  %v5479 = vld [vmem:[%s6 + $0x80] sm:$0xff]
  %v5480 = vld [vmem:[%s6 + $0x88] sm:$0xff]
  %v5481 = vld [vmem:[%s6 + $0x90] sm:$0xff]
  %v5482 = vld [vmem:[%s6 + $0x98] sm:$0xf]
  %v5483 = vld [vmem:[%s6 + $0x9c] sm:$0xff]
  %v5484 = vld [vmem:[%s6 + $0xa4] sm:$0xff]
  %v5485 = vld [vmem:[%s6 + $0xac] sm:$0xff]
  %v5486 = vld [vmem:[%s6 + $0xb4] sm:$0xff]
  %v5487 = vld [vmem:[%s6 + $0xbc] sm:$0xff]
  %v5488 = vld [vmem:[%s6 + $0xc4] sm:$0xff]
  %v5489 = vld [vmem:[%s6 + $0xcc] sm:$0xf]
  %v5490 = vld [vmem:[%s6 + $0xd0] sm:$0xff]
  %v5491 = vld [vmem:[%s6 + $0xd8] sm:$0xff]
  %v5492 = vld [vmem:[%s6 + $0xe0] sm:$0xff]
  %v5493 = vld [vmem:[%s6 + $0xe8] sm:$0xff]
  %v5494 = vld [vmem:[%s6 + $0xf0] sm:$0xff]
  %v5495 = vld [vmem:[%s6 + $0xf8] sm:$0xff]
  %v5496 = vld [vmem:[%s6 + $0x100] sm:$0xf]
  %v5497 = vld [vmem:[%s6 + $0x104] sm:$0xff]
  %v5498 = vld [vmem:[%s6 + $0x10c] sm:$0xff]
  %v5499 = vld [vmem:[%s6 + $0x114] sm:$0xff]
  %v5500 = vld [vmem:[%s6 + $0x11c] sm:$0xff]
  %v5501 = vld [vmem:[%s6 + $0x124] sm:$0xff]
  %v5502 = vld [vmem:[%s6 + $0x12c] sm:$0xff]
  %v5503 = vld [vmem:[%s6 + $0x134] sm:$0xf]
  %v5504 = vld [vmem:[%s6 + $0x138] sm:$0xff]
  %v5505 = vld [vmem:[%s6 + $0x140] sm:$0xff]
  %v5506 = vld [vmem:[%s6 + $0x148] sm:$0xff]
  %v5507 = vld [vmem:[%s6 + $0x150] sm:$0xff]
  %v5508 = vld [vmem:[%s6 + $0x158] sm:$0xff]
  %v5509 = vld [vmem:[%s6 + $0x160] sm:$0xff]
  %v5510 = vld [vmem:[%s6 + $0x168] sm:$0xf]
  %v5511 = vld [vmem:[%s6 + $0x16c] sm:$0xff]
  %v5512 = vld [vmem:[%s6 + $0x174] sm:$0xff]
  %v5513 = vld [vmem:[%s6 + $0x17c] sm:$0xff]
  %v5514 = vld [vmem:[%s6 + $0x184] sm:$0xff]
  %v5515 = vld [vmem:[%s6 + $0x18c] sm:$0xff]
  %v5516 = vld [vmem:[%s6 + $0x194] sm:$0xff]
  %v5517 = vld [vmem:[%s6 + $0x19c] sm:$0xf]
  %v5518 = vld [vmem:[%s6 + $0x1a0] sm:$0xff]
  %v5519 = vld [vmem:[%s6 + $0x1a8] sm:$0xff]
  %v5520 = vld [vmem:[%s6 + $0x1b0] sm:$0xff]
  %v5521 = vld [vmem:[%s6 + $0x1b8] sm:$0xff]
  %v5522 = vld [vmem:[%s6 + $0x1c0] sm:$0xff]
  %v5523 = vld [vmem:[%s6 + $0x1c8] sm:$0xff]
  %v5524 = vld [vmem:[%s6 + $0x1d0] sm:$0xf]
  %v5525 = vld [vmem:[%s6 + $0x1d4] sm:$0xff]
  %v5526 = vld [vmem:[%s6 + $0x1dc] sm:$0xff]
  %v5527 = vld [vmem:[%s6 + $0x1e4] sm:$0xff]
  %v5528 = vld [vmem:[%s6 + $0x1ec] sm:$0xff]
  %v5529 = vld [vmem:[%s6 + $0x1f4] sm:$0xff]
  %v5530 = vld [vmem:[%s6 + $0x1fc] sm:$0xff]
  %v5531 = vld [vmem:[%s6 + $0x204] sm:$0xf]
  %v5532 = vld [vmem:[%s6 + $0x208] sm:$0xff]
  %v5533 = vld [vmem:[%s6 + $0x210] sm:$0xff]
  %v5534 = vld [vmem:[%s6 + $0x218] sm:$0xff]
  %v5535 = vld [vmem:[%s6 + $0x220] sm:$0xff]
  %v5536 = vld [vmem:[%s6 + $0x228] sm:$0xff]
  %v5537 = vld [vmem:[%s6 + $0x230] sm:$0xff]
  %v5538 = vld [vmem:[%s6 + $0x238] sm:$0xf]
  %v5539 = vld [vmem:[%s6 + $0x23c] sm:$0xff]
  %v5540 = vld [vmem:[%s6 + $0x244] sm:$0xff]
  %v5541 = vld [vmem:[%s6 + $0x24c] sm:$0xff]
  %v5542 = vld [vmem:[%s6 + $0x254] sm:$0xff]
  %v5543 = vld [vmem:[%s6 + $0x25c] sm:$0xff]
  %v5544 = vld [vmem:[%s6 + $0x264] sm:$0xff]
  %v5545 = vld [vmem:[%s6 + $0x26c] sm:$0xf]
  %v5546 = vld [vmem:[%s6 + $0x270] sm:$0xff]
  %v5547 = vld [vmem:[%s6 + $0x278] sm:$0xff]
  %v5548 = vld [vmem:[%s6 + $0x280] sm:$0xff]
  %v5549 = vld [vmem:[%s6 + $0x288] sm:$0xff]
  %v5550 = vld [vmem:[%s6 + $0x290] sm:$0xff]
  %v5551 = vld [vmem:[%s6 + $0x298] sm:$0xff]
  %v5552 = vld [vmem:[%s6 + $0x2a0] sm:$0xf]
  %v5553 = vld [vmem:[%s6 + $0x2a4] sm:$0xff]
  %v5554 = vld [vmem:[%s6 + $0x2ac] sm:$0xff]
  %v5555 = vld [vmem:[%s6 + $0x2b4] sm:$0xff]
  %v5556 = vld [vmem:[%s6 + $0x2bc] sm:$0xff]
  %v5557 = vld [vmem:[%s6 + $0x2c4] sm:$0xff]
  %v5558 = vld [vmem:[%s6 + $0x2cc] sm:$0xff]
  %v5559 = vld [vmem:[%s6 + $0x2d4] sm:$0xf]
  %v5560 = vld [vmem:[%s6 + $0x2d8] sm:$0xff]
  %v5561 = vld [vmem:[%s6 + $0x2e0] sm:$0xff]
  %v5562 = vld [vmem:[%s6 + $0x2e8] sm:$0xff]
  %v5563 = vld [vmem:[%s6 + $0x2f0] sm:$0xff]
  %v5564 = vld [vmem:[%s6 + $0x2f8] sm:$0xff]
  %v5565 = vld [vmem:[%s6 + $0x300] sm:$0xff]
  %v5566 = vld [vmem:[%s6 + $0x308] sm:$0xf]
  %v5567 = vld [vmem:[%s6 + $0x30c] sm:$0xff]
  %v5568 = vld [vmem:[%s6 + $0x314] sm:$0xff]
  %v5569 = vld [vmem:[%s6 + $0x31c] sm:$0xff]
  %v5570 = vld [vmem:[%s6 + $0x324] sm:$0xff]
  %v5571 = vld [vmem:[%s6 + $0x32c] sm:$0xff]
  %v5572 = vld [vmem:[%s6 + $0x334] sm:$0xff]
  %v5573 = vld [vmem:[%s6 + $0x33c] sm:$0xf]
  %v5574 = vld [vmem:[%s7] sm:$0xff]
  %v5575 = vld [vmem:[%s7 + $0x8] sm:$0xff]
  %v5576 = vld [vmem:[%s7 + $0x10] sm:$0xff]
  %v5577 = vld [vmem:[%s7 + $0x18] sm:$0xff]
  %v5578 = vld [vmem:[%s7 + $0x20] sm:$0xff]
  %v5579 = vld [vmem:[%s7 + $0x28] sm:$0xff]
  %v5580 = vld [vmem:[%s7 + $0x30] sm:$0xff]
  %v5581 = vld [vmem:[%s7 + $0x38] sm:$0xff]
  %v5582 = vld [vmem:[%s7 + $0x40] sm:$0xff]
  %v5583 = vld [vmem:[%s7 + $0x48] sm:$0xff]
  %v5584 = vld [vmem:[%s7 + $0x50] sm:$0xff]
  %v5585 = vld [vmem:[%s7 + $0x58] sm:$0xff]
  %v5586 = vld [vmem:[%s7 + $0x60] sm:$0xff]
  %v5587 = vld [vmem:[%s7 + $0x68] sm:$0xff]
  %v5588 = vld [vmem:[%s7 + $0x70] sm:$0xff]
  %v5589 = vld [vmem:[%s7 + $0x78] sm:$0xff]
  %5591 = vset.pattern.permute.xlu0 0
  %5592 = vperm.xlu0 %5591, %v5574
  %v5593 = vpop.permute.xlu0 %5592
  %5596 = vset.pattern.permute.xlu0 0
  %5597 = vperm.xlu0 %5596, %v5575
  %v5598 = vpop.permute.xlu0 %5597
  %5601 = vset.pattern.permute.xlu0 0
  %5602 = vperm.xlu0 %5601, %v5576
  %v5603 = vpop.permute.xlu0 %5602
  %5606 = vset.pattern.permute.xlu0 0
  %5607 = vperm.xlu0 %5606, %v5577
  %v5608 = vpop.permute.xlu0 %5607
  %5611 = vset.pattern.permute.xlu0 0
  %5612 = vperm.xlu0 %5611, %v5578
  %v5613 = vpop.permute.xlu0 %5612
  %5616 = vset.pattern.permute.xlu0 0
  %5617 = vperm.xlu0 %5616, %v5579
  %v5618 = vpop.permute.xlu0 %5617
  %5621 = vset.pattern.permute.xlu0 0
  %5622 = vperm.xlu0 %5621, %v5580
  %v5623 = vpop.permute.xlu0 %5622
  %5626 = vset.pattern.permute.xlu0 0
  %5627 = vperm.xlu0 %5626, %v5581
  %v5628 = vpop.permute.xlu0 %5627
  %5631 = vset.pattern.permute.xlu0 0
  %5632 = vperm.xlu0 %5631, %v5582
  %v5633 = vpop.permute.xlu0 %5632
  %5636 = vset.pattern.permute.xlu0 0
  %5637 = vperm.xlu0 %5636, %v5583
  %v5638 = vpop.permute.xlu0 %5637
  %5641 = vset.pattern.permute.xlu0 0
  %5642 = vperm.xlu0 %5641, %v5584
  %v5643 = vpop.permute.xlu0 %5642
  %5646 = vset.pattern.permute.xlu0 0
  %5647 = vperm.xlu0 %5646, %v5585
  %v5648 = vpop.permute.xlu0 %5647
  %5651 = vset.pattern.permute.xlu0 0
  %5652 = vperm.xlu0 %5651, %v5586
  %v5653 = vpop.permute.xlu0 %5652
  %5656 = vset.pattern.permute.xlu0 0
  %5657 = vperm.xlu0 %5656, %v5587
  %v5658 = vpop.permute.xlu0 %5657
  %5661 = vset.pattern.permute.xlu0 0
  %5662 = vperm.xlu0 %5661, %v5588
  %v5663 = vpop.permute.xlu0 %5662
  %5666 = vset.pattern.permute.xlu0 0
  %5667 = vperm.xlu0 %5666, %v5589
  %v5668 = vpop.permute.xlu0 %5667
  %v5782 = vunpack.c.l.b16 %v5462
  %v5783 = vunpack.c.h.b16 %v5462
  %v5784 = vunpack.c.l.b16 %v5463
  %v5785 = vunpack.c.h.b16 %v5463
  %v5786 = vunpack.c.l.b16 %v5464
  %v5787 = vunpack.c.h.b16 %v5464
  %v5788 = vunpack.c.l.b16 %v5465
  %v5789 = vunpack.c.h.b16 %v5465
  %v5790 = vunpack.c.l.b16 %v5466
  %v5791 = vunpack.c.h.b16 %v5466
  %v5792 = vunpack.c.l.b16 %v5467
  %v5793 = vunpack.c.h.b16 %v5467
  %v5794 = vunpack.c.l.b16 %v5468
  %v5795 = vunpack.c.l.b16 %v5469
  %v5796 = vunpack.c.h.b16 %v5469
  %v5797 = vunpack.c.l.b16 %v5470
  %v5798 = vunpack.c.h.b16 %v5470
  %v5799 = vunpack.c.l.b16 %v5471
  %v5800 = vunpack.c.h.b16 %v5471
  %v5801 = vunpack.c.l.b16 %v5472
  %v5802 = vunpack.c.h.b16 %v5472
  %v5803 = vunpack.c.l.b16 %v5473
  %v5804 = vunpack.c.h.b16 %v5473
  %v5805 = vunpack.c.l.b16 %v5474
  %v5806 = vunpack.c.h.b16 %v5474
  %v5807 = vunpack.c.l.b16 %v5475
  %v5808 = vunpack.c.l.b16 %v5476
  %v5809 = vunpack.c.h.b16 %v5476
  %v5810 = vunpack.c.l.b16 %v5477
  %v5811 = vunpack.c.h.b16 %v5477
  %v5812 = vunpack.c.l.b16 %v5478
  %v5813 = vunpack.c.h.b16 %v5478
  %v5814 = vunpack.c.l.b16 %v5479
  %v5815 = vunpack.c.h.b16 %v5479
  %v5816 = vunpack.c.l.b16 %v5480
  %v5817 = vunpack.c.h.b16 %v5480
  %v5818 = vunpack.c.l.b16 %v5481
  %v5819 = vunpack.c.h.b16 %v5481
  %v5820 = vunpack.c.l.b16 %v5482
  %v5821 = vunpack.c.l.b16 %v5483
  %v5822 = vunpack.c.h.b16 %v5483
  %v5823 = vunpack.c.l.b16 %v5484
  %v5824 = vunpack.c.h.b16 %v5484
  %v5825 = vunpack.c.l.b16 %v5485
  %v5826 = vunpack.c.h.b16 %v5485
  %v5827 = vunpack.c.l.b16 %v5486
  %v5828 = vunpack.c.h.b16 %v5486
  %v5829 = vunpack.c.l.b16 %v5487
  %v5830 = vunpack.c.h.b16 %v5487
  %v5831 = vunpack.c.l.b16 %v5488
  %v5832 = vunpack.c.h.b16 %v5488
  %v5833 = vunpack.c.l.b16 %v5489
  %v5834 = vunpack.c.l.b16 %v5490
  %v5835 = vunpack.c.h.b16 %v5490
  %v5836 = vunpack.c.l.b16 %v5491
  %v5837 = vunpack.c.h.b16 %v5491
  %v5838 = vunpack.c.l.b16 %v5492
  %v5839 = vunpack.c.h.b16 %v5492
  %v5840 = vunpack.c.l.b16 %v5493
  %v5841 = vunpack.c.h.b16 %v5493
  %v5842 = vunpack.c.l.b16 %v5494
  %v5843 = vunpack.c.h.b16 %v5494
  %v5844 = vunpack.c.l.b16 %v5495
  %v5845 = vunpack.c.h.b16 %v5495
  %v5846 = vunpack.c.l.b16 %v5496
  %v5847 = vunpack.c.l.b16 %v5497
  %v5848 = vunpack.c.h.b16 %v5497
  %v5849 = vunpack.c.l.b16 %v5498
  %v5850 = vunpack.c.h.b16 %v5498
  %v5851 = vunpack.c.l.b16 %v5499
  %v5852 = vunpack.c.h.b16 %v5499
  %v5853 = vunpack.c.l.b16 %v5500
  %v5854 = vunpack.c.h.b16 %v5500
  %v5855 = vunpack.c.l.b16 %v5501
  %v5856 = vunpack.c.h.b16 %v5501
  %v5857 = vunpack.c.l.b16 %v5502
  %v5858 = vunpack.c.h.b16 %v5502
  %v5859 = vunpack.c.l.b16 %v5503
  %v5860 = vunpack.c.l.b16 %v5504
  %v5861 = vunpack.c.h.b16 %v5504
  %v5862 = vunpack.c.l.b16 %v5505
  %v5863 = vunpack.c.h.b16 %v5505
  %v5864 = vunpack.c.l.b16 %v5506
  %v5865 = vunpack.c.h.b16 %v5506
  %v5866 = vunpack.c.l.b16 %v5507
  %v5867 = vunpack.c.h.b16 %v5507
  %v5868 = vunpack.c.l.b16 %v5508
  %v5869 = vunpack.c.h.b16 %v5508
  %v5870 = vunpack.c.l.b16 %v5509
  %v5871 = vunpack.c.h.b16 %v5509
  %v5872 = vunpack.c.l.b16 %v5510
  %v5873 = vunpack.c.l.b16 %v5511
  %v5874 = vunpack.c.h.b16 %v5511
  %v5875 = vunpack.c.l.b16 %v5512
  %v5876 = vunpack.c.h.b16 %v5512
  %v5877 = vunpack.c.l.b16 %v5513
  %v5878 = vunpack.c.h.b16 %v5513
  %v5879 = vunpack.c.l.b16 %v5514
  %v5880 = vunpack.c.h.b16 %v5514
  %v5881 = vunpack.c.l.b16 %v5515
  %v5882 = vunpack.c.h.b16 %v5515
  %v5883 = vunpack.c.l.b16 %v5516
  %v5884 = vunpack.c.h.b16 %v5516
  %v5885 = vunpack.c.l.b16 %v5517
  %v5886 = vunpack.c.l.b16 %v5518
  %v5887 = vunpack.c.h.b16 %v5518
  %v5888 = vunpack.c.l.b16 %v5519
  %v5889 = vunpack.c.h.b16 %v5519
  %v5890 = vunpack.c.l.b16 %v5520
  %v5891 = vunpack.c.h.b16 %v5520
  %v5892 = vunpack.c.l.b16 %v5521
  %v5893 = vunpack.c.h.b16 %v5521
  %v5894 = vunpack.c.l.b16 %v5522
  %v5895 = vunpack.c.h.b16 %v5522
  %v5896 = vunpack.c.l.b16 %v5523
  %v5897 = vunpack.c.h.b16 %v5523
  %v5898 = vunpack.c.l.b16 %v5524
  %v5899 = vunpack.c.l.b16 %v5525
  %v5900 = vunpack.c.h.b16 %v5525
  %v5901 = vunpack.c.l.b16 %v5526
  %v5902 = vunpack.c.h.b16 %v5526
  %v5903 = vunpack.c.l.b16 %v5527
  %v5904 = vunpack.c.h.b16 %v5527
  %v5905 = vunpack.c.l.b16 %v5528
  %v5906 = vunpack.c.h.b16 %v5528
  %v5907 = vunpack.c.l.b16 %v5529
  %v5908 = vunpack.c.h.b16 %v5529
  %v5909 = vunpack.c.l.b16 %v5530
  %v5910 = vunpack.c.h.b16 %v5530
  %v5911 = vunpack.c.l.b16 %v5531
  %v5912 = vunpack.c.l.b16 %v5532
  %v5913 = vunpack.c.h.b16 %v5532
  %v5914 = vunpack.c.l.b16 %v5533
  %v5915 = vunpack.c.h.b16 %v5533
  %v5916 = vunpack.c.l.b16 %v5534
  %v5917 = vunpack.c.h.b16 %v5534
  %v5918 = vunpack.c.l.b16 %v5535
  %v5919 = vunpack.c.h.b16 %v5535
  %v5920 = vunpack.c.l.b16 %v5536
  %v5921 = vunpack.c.h.b16 %v5536
  %v5922 = vunpack.c.l.b16 %v5537
  %v5923 = vunpack.c.h.b16 %v5537
  %v5924 = vunpack.c.l.b16 %v5538
  %v5925 = vunpack.c.l.b16 %v5539
  %v5926 = vunpack.c.h.b16 %v5539
  %v5927 = vunpack.c.l.b16 %v5540
  %v5928 = vunpack.c.h.b16 %v5540
  %v5929 = vunpack.c.l.b16 %v5541
  %v5930 = vunpack.c.h.b16 %v5541
  %v5931 = vunpack.c.l.b16 %v5542
  %v5932 = vunpack.c.h.b16 %v5542
  %v5933 = vunpack.c.l.b16 %v5543
  %v5934 = vunpack.c.h.b16 %v5543
  %v5935 = vunpack.c.l.b16 %v5544
  %v5936 = vunpack.c.h.b16 %v5544
  %v5937 = vunpack.c.l.b16 %v5545
  %v5938 = vunpack.c.l.b16 %v5546
  %v5939 = vunpack.c.h.b16 %v5546
  %v5940 = vunpack.c.l.b16 %v5547
  %v5941 = vunpack.c.h.b16 %v5547
  %v5942 = vunpack.c.l.b16 %v5548
  %v5943 = vunpack.c.h.b16 %v5548
  %v5944 = vunpack.c.l.b16 %v5549
  %v5945 = vunpack.c.h.b16 %v5549
  %v5946 = vunpack.c.l.b16 %v5550
  %v5947 = vunpack.c.h.b16 %v5550
  %v5948 = vunpack.c.l.b16 %v5551
  %v5949 = vunpack.c.h.b16 %v5551
  %v5950 = vunpack.c.l.b16 %v5552
  %v5951 = vunpack.c.l.b16 %v5553
  %v5952 = vunpack.c.h.b16 %v5553
  %v5953 = vunpack.c.l.b16 %v5554
  %v5954 = vunpack.c.h.b16 %v5554
  %v5955 = vunpack.c.l.b16 %v5555
  %v5956 = vunpack.c.h.b16 %v5555
  %v5957 = vunpack.c.l.b16 %v5556
  %v5958 = vunpack.c.h.b16 %v5556
  %v5959 = vunpack.c.l.b16 %v5557
  %v5960 = vunpack.c.h.b16 %v5557
  %v5961 = vunpack.c.l.b16 %v5558
  %v5962 = vunpack.c.h.b16 %v5558
  %v5963 = vunpack.c.l.b16 %v5559
  %v5964 = vunpack.c.l.b16 %v5560
  %v5965 = vunpack.c.h.b16 %v5560
  %v5966 = vunpack.c.l.b16 %v5561
  %v5967 = vunpack.c.h.b16 %v5561
  %v5968 = vunpack.c.l.b16 %v5562
  %v5969 = vunpack.c.h.b16 %v5562
  %v5970 = vunpack.c.l.b16 %v5563
  %v5971 = vunpack.c.h.b16 %v5563
  %v5972 = vunpack.c.l.b16 %v5564
  %v5973 = vunpack.c.h.b16 %v5564
  %v5974 = vunpack.c.l.b16 %v5565
  %v5975 = vunpack.c.h.b16 %v5565
  %v5976 = vunpack.c.l.b16 %v5566
  %v5977 = vunpack.c.l.b16 %v5567
  %v5978 = vunpack.c.h.b16 %v5567
  %v5979 = vunpack.c.l.b16 %v5568
  %v5980 = vunpack.c.h.b16 %v5568
  %v5981 = vunpack.c.l.b16 %v5569
  %v5982 = vunpack.c.h.b16 %v5569
  %v5983 = vunpack.c.l.b16 %v5570
  %v5984 = vunpack.c.h.b16 %v5570
  %v5985 = vunpack.c.l.b16 %v5571
  %v5986 = vunpack.c.h.b16 %v5571
  %v5987 = vunpack.c.l.b16 %v5572
  %v5988 = vunpack.c.h.b16 %v5572
  %v5989 = vunpack.c.l.b16 %v5573
  %v5990 = vpack.c.b16 %v5795, %v5782
  %v5991 = vpack.c.b16 %v5796, %v5783
  %v5992 = vpack.c.b16 %v5797, %v5784
  %v5993 = vpack.c.b16 %v5798, %v5785
  %v5994 = vpack.c.b16 %v5799, %v5786
  %v5995 = vpack.c.b16 %v5800, %v5787
  %v5996 = vpack.c.b16 %v5801, %v5788
  %v5997 = vpack.c.b16 %v5802, %v5789
  %v5998 = vpack.c.b16 %v5803, %v5790
  %v5999 = vpack.c.b16 %v5804, %v5791
  %v6000 = vpack.c.b16 %v5805, %v5792
  %v6001 = vpack.c.b16 %v5806, %v5793
  %v6002 = vpack.c.b16 %v5807, %v5794
  %v6003 = vpack.c.b16 %v5821, %v5808
  %v6004 = vpack.c.b16 %v5822, %v5809
  %v6005 = vpack.c.b16 %v5823, %v5810
  %v6006 = vpack.c.b16 %v5824, %v5811
  %v6007 = vpack.c.b16 %v5825, %v5812
  %v6008 = vpack.c.b16 %v5826, %v5813
  %v6009 = vpack.c.b16 %v5827, %v5814
  %v6010 = vpack.c.b16 %v5828, %v5815
  %v6011 = vpack.c.b16 %v5829, %v5816
  %v6012 = vpack.c.b16 %v5830, %v5817
  %v6013 = vpack.c.b16 %v5831, %v5818
  %v6014 = vpack.c.b16 %v5832, %v5819
  %v6015 = vpack.c.b16 %v5833, %v5820
  %v6016 = vpack.c.b16 %v5847, %v5834
  %v6017 = vpack.c.b16 %v5848, %v5835
  %v6018 = vpack.c.b16 %v5849, %v5836
  %v6019 = vpack.c.b16 %v5850, %v5837
  %v6020 = vpack.c.b16 %v5851, %v5838
  %v6021 = vpack.c.b16 %v5852, %v5839
  %v6022 = vpack.c.b16 %v5853, %v5840
  %v6023 = vpack.c.b16 %v5854, %v5841
  %v6024 = vpack.c.b16 %v5855, %v5842
  %v6025 = vpack.c.b16 %v5856, %v5843
  %v6026 = vpack.c.b16 %v5857, %v5844
  %v6027 = vpack.c.b16 %v5858, %v5845
  %v6028 = vpack.c.b16 %v5859, %v5846
  %v6029 = vpack.c.b16 %v5873, %v5860
  %v6030 = vpack.c.b16 %v5874, %v5861
  %v6031 = vpack.c.b16 %v5875, %v5862
  %v6032 = vpack.c.b16 %v5876, %v5863
  %v6033 = vpack.c.b16 %v5877, %v5864
  %v6034 = vpack.c.b16 %v5878, %v5865
  %v6035 = vpack.c.b16 %v5879, %v5866
  %v6036 = vpack.c.b16 %v5880, %v5867
  %v6037 = vpack.c.b16 %v5881, %v5868
  %v6038 = vpack.c.b16 %v5882, %v5869
  %v6039 = vpack.c.b16 %v5883, %v5870
  %v6040 = vpack.c.b16 %v5884, %v5871
  %v6041 = vpack.c.b16 %v5885, %v5872
  %v6042 = vpack.c.b16 %v5899, %v5886
  %v6043 = vpack.c.b16 %v5900, %v5887
  %v6044 = vpack.c.b16 %v5901, %v5888
  %v6045 = vpack.c.b16 %v5902, %v5889
  %v6046 = vpack.c.b16 %v5903, %v5890
  %v6047 = vpack.c.b16 %v5904, %v5891
  %v6048 = vpack.c.b16 %v5905, %v5892
  %v6049 = vpack.c.b16 %v5906, %v5893
  %v6050 = vpack.c.b16 %v5907, %v5894
  %v6051 = vpack.c.b16 %v5908, %v5895
  %v6052 = vpack.c.b16 %v5909, %v5896
  %v6053 = vpack.c.b16 %v5910, %v5897
  %v6054 = vpack.c.b16 %v5911, %v5898
  %v6055 = vpack.c.b16 %v5925, %v5912
  %v6056 = vpack.c.b16 %v5926, %v5913
  %v6057 = vpack.c.b16 %v5927, %v5914
  %v6058 = vpack.c.b16 %v5928, %v5915
  %v6059 = vpack.c.b16 %v5929, %v5916
  %v6060 = vpack.c.b16 %v5930, %v5917
  %v6061 = vpack.c.b16 %v5931, %v5918
  %v6062 = vpack.c.b16 %v5932, %v5919
  %v6063 = vpack.c.b16 %v5933, %v5920
  %v6064 = vpack.c.b16 %v5934, %v5921
  %v6065 = vpack.c.b16 %v5935, %v5922
  %v6066 = vpack.c.b16 %v5936, %v5923
  %v6067 = vpack.c.b16 %v5937, %v5924
  %v6068 = vpack.c.b16 %v5951, %v5938
  %v6069 = vpack.c.b16 %v5952, %v5939
  %v6070 = vpack.c.b16 %v5953, %v5940
  %v6071 = vpack.c.b16 %v5954, %v5941
  %v6072 = vpack.c.b16 %v5955, %v5942
  %v6073 = vpack.c.b16 %v5956, %v5943
  %v6074 = vpack.c.b16 %v5957, %v5944
  %v6075 = vpack.c.b16 %v5958, %v5945
  %v6076 = vpack.c.b16 %v5959, %v5946
  %v6077 = vpack.c.b16 %v5960, %v5947
  %v6078 = vpack.c.b16 %v5961, %v5948
  %v6079 = vpack.c.b16 %v5962, %v5949
  %v6080 = vpack.c.b16 %v5963, %v5950
  %v6081 = vpack.c.b16 %v5977, %v5964
  %v6082 = vpack.c.b16 %v5978, %v5965
  %v6083 = vpack.c.b16 %v5979, %v5966
  %v6084 = vpack.c.b16 %v5980, %v5967
  %v6085 = vpack.c.b16 %v5981, %v5968
  %v6086 = vpack.c.b16 %v5982, %v5969
  %v6087 = vpack.c.b16 %v5983, %v5970
  %v6088 = vpack.c.b16 %v5984, %v5971
  %v6089 = vpack.c.b16 %v5985, %v5972
  %v6090 = vpack.c.b16 %v5986, %v5973
  %v6091 = vpack.c.b16 %v5987, %v5974
  %v6092 = vpack.c.b16 %v5988, %v5975
  %v6093 = vpack.c.b16 %v5989, %v5976
  %6190 = vrot.lane.b32.xlu0 %v5090, 66
  %v6191 = vpop.permute.xlu0 %6190
  %6192 = vrot.lane.b32.xlu0 %v5091, 66
  %v6193 = vpop.permute.xlu0 %6192
  %6194 = vrot.lane.b32.xlu0 %v5093, 66
  %v6195 = vpop.permute.xlu0 %6194
  %6196 = vrot.lane.b32.xlu0 %v5095, 66
  %v6197 = vpop.permute.xlu0 %6196
  %6198 = vrot.lane.b32.xlu0 %v5097, 66
  %v6199 = vpop.permute.xlu0 %6198
  %6200 = vrot.lane.b32.xlu0 %v5099, 66
  %v6201 = vpop.permute.xlu0 %6200
  %6202 = vrot.lane.b32.xlu0 %v5101, 66
  %v6203 = vpop.permute.xlu0 %6202
  %6204 = vrot.lane.b32.xlu0 %v5103, 66
  %v6205 = vpop.permute.xlu0 %6204
  %6206 = vrot.lane.b32.xlu0 %v5105, 66
  %v6207 = vpop.permute.xlu0 %6206
  %6208 = vrot.lane.b32.xlu0 %v5107, 66
  %v6209 = vpop.permute.xlu0 %6208
  %6210 = vrot.lane.b32.xlu0 %v5109, 66
  %v6211 = vpop.permute.xlu0 %6210
  %6212 = vrot.lane.b32.xlu0 %v5111, 66
  %v6213 = vpop.permute.xlu0 %6212
  %6214 = vrot.lane.b32.xlu0 %v5113, 66
  %v6215 = vpop.permute.xlu0 %6214
  %6216 = vrot.lane.b32.xlu0 %v5115, 66
  %v6217 = vpop.permute.xlu0 %6216
  %6218 = vrot.lane.b32.xlu0 %v5127, 66
  %v6219 = vpop.permute.xlu0 %6218
  %6220 = vrot.lane.b32.xlu0 %v5129, 66
  %v6221 = vpop.permute.xlu0 %6220
  %6222 = vrot.lane.b32.xlu0 %v5131, 66
  %v6223 = vpop.permute.xlu0 %6222
  %6224 = vrot.lane.b32.xlu0 %v5133, 66
  %v6225 = vpop.permute.xlu0 %6224
  %6226 = vrot.lane.b32.xlu0 %v5124, 66
  %v6227 = vpop.permute.xlu0 %6226
  %6228 = vrot.lane.b32.xlu0 %v5125, 66
  %v6229 = vpop.permute.xlu0 %6228
  %6230 = vrot.lane.b32.xlu0 %v5135, 66
  %v6231 = vpop.permute.xlu0 %6230
  %6232 = vrot.lane.b32.xlu0 %v5137, 66
  %v6233 = vpop.permute.xlu0 %6232
  %6234 = vrot.lane.b32.xlu0 %v5139, 66
  %v6235 = vpop.permute.xlu0 %6234
  %6236 = vrot.lane.b32.xlu0 %v5141, 66
  %v6237 = vpop.permute.xlu0 %6236
  %6238 = vrot.lane.b32.xlu0 %v5143, 66
  %v6239 = vpop.permute.xlu0 %6238
  %6240 = vrot.lane.b32.xlu0 %v5145, 66
  %v6241 = vpop.permute.xlu0 %6240
  %6242 = vrot.lane.b32.xlu0 %v5147, 66
  %v6243 = vpop.permute.xlu0 %6242
  %6244 = vrot.lane.b32.xlu0 %v5149, 66
  %v6245 = vpop.permute.xlu0 %6244
  %6246 = vrot.lane.b32.xlu0 %v5161, 66
  %v6247 = vpop.permute.xlu0 %6246
  %6248 = vrot.lane.b32.xlu0 %v5163, 66
  %v6249 = vpop.permute.xlu0 %6248
  %6250 = vrot.lane.b32.xlu0 %v5165, 66
  %v6251 = vpop.permute.xlu0 %6250
  %6252 = vrot.lane.b32.xlu0 %v5167, 66
  %v6253 = vpop.permute.xlu0 %6252
  %6254 = vrot.lane.b32.xlu0 %v5339, 66
  %v6255 = vpop.permute.xlu0 %6254
  %6256 = vrot.lane.b32.xlu0 %v5341, 66
  %v6257 = vpop.permute.xlu0 %6256
  %6258 = vrot.lane.b32.xlu0 %v5343, 66
  %v6259 = vpop.permute.xlu0 %6258
  %6260 = vrot.lane.b32.xlu0 %v5345, 66
  %v6261 = vpop.permute.xlu0 %6260
  %6262 = vrot.lane.b32.xlu0 %v5347, 66
  %v6263 = vpop.permute.xlu0 %6262
  %6264 = vrot.lane.b32.xlu0 %v5349, 66
  %v6265 = vpop.permute.xlu0 %6264
  %6266 = vrot.lane.b32.xlu0 %v5351, 66
  %v6267 = vpop.permute.xlu0 %6266
  %6268 = vrot.lane.b32.xlu0 %v5353, 66
  %v6269 = vpop.permute.xlu0 %6268
  %6270 = vrot.lane.b32.xlu0 %v5355, 66
  %v6271 = vpop.permute.xlu0 %6270
  %6272 = vrot.lane.b32.xlu0 %v5357, 66
  %v6273 = vpop.permute.xlu0 %6272
  %6274 = vrot.lane.b32.xlu0 %v5359, 66
  %v6275 = vpop.permute.xlu0 %6274
  %6276 = vrot.lane.b32.xlu0 %v5361, 66
  %v6277 = vpop.permute.xlu0 %6276
  %6278 = vrot.lane.b32.xlu0 %v5363, 66
  %v6279 = vpop.permute.xlu0 %6278
  %6280 = vrot.lane.b32.xlu0 %v5365, 66
  %v6281 = vpop.permute.xlu0 %6280
  %6282 = vrot.lane.b32.xlu0 %v5367, 66
  %v6283 = vpop.permute.xlu0 %6282
  %6284 = vrot.lane.b32.xlu0 %v5369, 66
  %v6285 = vpop.permute.xlu0 %6284
  %6286 = vrot.lane.b32.xlu0 %v5371, 66
  %v6287 = vpop.permute.xlu0 %6286
  %6288 = vrot.lane.b32.xlu0 %v5373, 66
  %v6289 = vpop.permute.xlu0 %6288
  %6290 = vrot.lane.b32.xlu0 %v5203, 66
  %v6291 = vpop.permute.xlu0 %6290
  %6292 = vrot.lane.b32.xlu0 %v5205, 66
  %v6293 = vpop.permute.xlu0 %6292
  %6294 = vrot.lane.b32.xlu0 %v5375, 66
  %v6295 = vpop.permute.xlu0 %6294
  %6296 = vrot.lane.b32.xlu0 %v5377, 66
  %v6297 = vpop.permute.xlu0 %6296
  %6298 = vrot.lane.b32.xlu0 %v5379, 66
  %v6299 = vpop.permute.xlu0 %6298
  %6300 = vrot.lane.b32.xlu0 %v5381, 66
  %v6301 = vpop.permute.xlu0 %6300
  %6302 = vrot.lane.b32.xlu0 %v5383, 66
  %v6303 = vpop.permute.xlu0 %6302
  %6304 = vrot.lane.b32.xlu0 %v5385, 66
  %v6305 = vpop.permute.xlu0 %6304
  %6306 = vrot.lane.b32.xlu0 %v5387, 66
  %v6307 = vpop.permute.xlu0 %6306
  %6308 = vrot.lane.b32.xlu0 %v5389, 66
  %v6309 = vpop.permute.xlu0 %6308
  %6310 = vrot.lane.b32.xlu0 %v5391, 66
  %v6311 = vpop.permute.xlu0 %6310
  %6312 = vrot.lane.b32.xlu0 %v5393, 66
  %v6313 = vpop.permute.xlu0 %6312
  %6314 = vrot.lane.b32.xlu0 %v5395, 66
  %v6315 = vpop.permute.xlu0 %6314
  %6316 = vrot.lane.b32.xlu0 %v5397, 66
  %v6317 = vpop.permute.xlu0 %6316
  %6318 = vrot.lane.b32.xlu0 %v5243, 66
  %v6319 = vpop.permute.xlu0 %6318
  %6320 = vrot.lane.b32.xlu0 %v5245, 66
  %v6321 = vpop.permute.xlu0 %6320
  %6322 = vrot.lane.b32.xlu0 %v5399, 66
  %v6323 = vpop.permute.xlu0 %6322
  %6324 = vrot.lane.b32.xlu0 %v5401, 66
  %v6325 = vpop.permute.xlu0 %6324
  %6326 = vrot.lane.b32.xlu0 %v5403, 66
  %v6327 = vpop.permute.xlu0 %6326
  %6328 = vrot.lane.b32.xlu0 %v5405, 66
  %v6329 = vpop.permute.xlu0 %6328
  %6330 = vrot.lane.b32.xlu0 %v5407, 66
  %v6331 = vpop.permute.xlu0 %6330
  %6332 = vrot.lane.b32.xlu0 %v5409, 66
  %v6333 = vpop.permute.xlu0 %6332
  %6334 = vrot.lane.b32.xlu0 %v5411, 66
  %v6335 = vpop.permute.xlu0 %6334
  %6336 = vrot.lane.b32.xlu0 %v5413, 66
  %v6337 = vpop.permute.xlu0 %6336
  %6338 = vrot.lane.b32.xlu0 %v5415, 66
  %v6339 = vpop.permute.xlu0 %6338
  %6340 = vrot.lane.b32.xlu0 %v5417, 66
  %v6341 = vpop.permute.xlu0 %6340
  %6342 = vrot.lane.b32.xlu0 %v5419, 66
  %v6343 = vpop.permute.xlu0 %6342
  %6344 = vrot.lane.b32.xlu0 %v5421, 66
  %v6345 = vpop.permute.xlu0 %6344
  %6346 = vrot.lane.b32.xlu0 %v5423, 66
  %v6347 = vpop.permute.xlu0 %6346
  %6348 = vrot.lane.b32.xlu0 %v5425, 66
  %v6349 = vpop.permute.xlu0 %6348
  %6350 = vrot.lane.b32.xlu0 %v5427, 66
  %v6351 = vpop.permute.xlu0 %6350
  %6352 = vrot.lane.b32.xlu0 %v5429, 66
  %v6353 = vpop.permute.xlu0 %6352
  %6354 = vrot.lane.b32.xlu0 %v5431, 66
  %v6355 = vpop.permute.xlu0 %6354
  %6356 = vrot.lane.b32.xlu0 %v5433, 66
  %v6357 = vpop.permute.xlu0 %6356
  %6358 = vrot.lane.b32.xlu0 %v5435, 66
  %v6359 = vpop.permute.xlu0 %6358
  %6360 = vrot.lane.b32.xlu0 %v5437, 66
  %v6361 = vpop.permute.xlu0 %6360
  %6362 = vrot.lane.b32.xlu0 %v5439, 66
  %v6363 = vpop.permute.xlu0 %6362
  %6364 = vrot.lane.b32.xlu0 %v5441, 66
  %v6365 = vpop.permute.xlu0 %6364
  %6366 = vrot.lane.b32.xlu0 %v5443, 66
  %v6367 = vpop.permute.xlu0 %6366
  %6368 = vrot.lane.b32.xlu0 %v5445, 66
  %v6369 = vpop.permute.xlu0 %6368
  %6370 = vrot.lane.b32.xlu0 %v5447, 66
  %v6371 = vpop.permute.xlu0 %6370
  %6372 = vrot.lane.b32.xlu0 %v5449, 66
  %v6373 = vpop.permute.xlu0 %6372
  %6374 = vrot.lane.b32.xlu0 %v5451, 66
  %v6375 = vpop.permute.xlu0 %6374
  %6376 = vrot.lane.b32.xlu0 %v5453, 66
  %v6377 = vpop.permute.xlu0 %6376
  %6378 = vrot.lane.b32.xlu0 %v5455, 66
  %v6379 = vpop.permute.xlu0 %6378
  %6380 = vrot.lane.b32.xlu0 %v5457, 66
  %v6381 = vpop.permute.xlu0 %6380
  %6382 = vrot.lane.b32.xlu0 %v5459, 66
  %v6383 = vpop.permute.xlu0 %6382
  %6384 = vrot.lane.b32.xlu0 %v5461, 66
  %v6385 = vpop.permute.xlu0 %6384
  %v6485 = vsel %vm1792, %v6002, 0
  %v6488 = vsel %vm1792, %v6015, 0
  %v6491 = vsel %vm1792, %v6028, 0
  %v6494 = vsel %vm1792, %v6041, 0
  %v6497 = vsel %vm1792, %v6054, 0
  %v6500 = vsel %vm1792, %v6067, 0
  %v6503 = vsel %vm1792, %v6080, 0
  %v6506 = vsel %vm1792, %v6093, 0
  %6508 = vmatpush.bf16.msra.mxu0 %v6205
  %6509 = vmatpush.bf16.msra.mxu0 %v6203
  %6510 = vmatpush.bf16.msra.mxu0 %v6201
  %6511 = vmatpush.bf16.msra.mxu0 %v6199
  %6512 = vmatpush.bf16.msra.mxu0 %v6197
  %6513 = vmatpush.bf16.msra.mxu0 %v6195
  %6514 = vmatpush.bf16.msra.mxu0 %v6193
  %6515 = vmatpush.bf16.msra.mxu0 %v6191
  %6516 = vmatmul.bf16.gmra.mxu0 %v5990
  %v6517 = vpop.f32.mrf.mxu0
  %v6518 = vadd.f32 %v5593, %v6517
  %v6519 = vpop.f32.mrf.mxu0
  %v6520 = vadd.f32 %v5598, %v6519
  %6521 = vmatmul.bf16.gmra.mxu0 %v6003
  %v6522 = vpop.f32.mrf.mxu0
  %v6523 = vadd.f32 %v5603, %v6522
  %v6524 = vpop.f32.mrf.mxu0
  %v6525 = vadd.f32 %v5608, %v6524
  %6526 = vmatmul.bf16.gmra.mxu0 %v6016
  %v6527 = vpop.f32.mrf.mxu0
  %v6528 = vadd.f32 %v5613, %v6527
  %v6529 = vpop.f32.mrf.mxu0
  %v6530 = vadd.f32 %v5618, %v6529
  %6531 = vmatmul.bf16.gmra.mxu0 %v6029
  %v6532 = vpop.f32.mrf.mxu0
  %v6533 = vadd.f32 %v5623, %v6532
  %v6534 = vpop.f32.mrf.mxu0
  %v6535 = vadd.f32 %v5628, %v6534
  %6536 = vmatmul.bf16.gmra.mxu0 %v6042
  %v6537 = vpop.f32.mrf.mxu0
  %v6538 = vadd.f32 %v5633, %v6537
  %v6539 = vpop.f32.mrf.mxu0
  %v6540 = vadd.f32 %v5638, %v6539
  %6541 = vmatmul.bf16.gmra.mxu0 %v6055
  %v6542 = vpop.f32.mrf.mxu0
  %v6543 = vadd.f32 %v5643, %v6542
  %v6544 = vpop.f32.mrf.mxu0
  %v6545 = vadd.f32 %v5648, %v6544
  %6546 = vmatmul.bf16.gmra.mxu0 %v6068
  %v6547 = vpop.f32.mrf.mxu0
  %v6548 = vadd.f32 %v5653, %v6547
  %v6549 = vpop.f32.mrf.mxu0
  %v6550 = vadd.f32 %v5658, %v6549
  %6551 = vmatmul.bf16.gmra.mxu0 %v6081
  %v6552 = vpop.f32.mrf.mxu0
  %v6553 = vadd.f32 %v5663, %v6552
  %v6554 = vpop.f32.mrf.mxu0
  %v6555 = vadd.f32 %v5668, %v6554
  %6556 = vdwg.mxu0
  %6557 = vmatpush.bf16.msra.mxu0 %v6221
  %6558 = vmatpush.bf16.msra.mxu0 %v6219
  %6559 = vmatpush.bf16.msra.mxu0 %v6217
  %6560 = vmatpush.bf16.msra.mxu0 %v6215
  %6561 = vmatpush.bf16.msra.mxu0 %v6213
  %6562 = vmatpush.bf16.msra.mxu0 %v6211
  %6563 = vmatpush.bf16.msra.mxu0 %v6209
  %6564 = vmatpush.bf16.msra.mxu0 %v6207
  %6565 = vmatmul.bf16.gmra.mxu0 %v5991
  %v6566 = vpop.f32.mrf.mxu0
  %v6567 = vadd.f32 %v6518, %v6566
  %v6568 = vpop.f32.mrf.mxu0
  %v6569 = vadd.f32 %v6520, %v6568
  %6570 = vmatmul.bf16.gmra.mxu0 %v6004
  %v6571 = vpop.f32.mrf.mxu0
  %v6572 = vadd.f32 %v6523, %v6571
  %v6573 = vpop.f32.mrf.mxu0
  %v6574 = vadd.f32 %v6525, %v6573
  %6575 = vmatmul.bf16.gmra.mxu0 %v6017
  %v6576 = vpop.f32.mrf.mxu0
  %v6577 = vadd.f32 %v6528, %v6576
  %v6578 = vpop.f32.mrf.mxu0
  %v6579 = vadd.f32 %v6530, %v6578
  %6580 = vmatmul.bf16.gmra.mxu0 %v6030
  %v6581 = vpop.f32.mrf.mxu0
  %v6582 = vadd.f32 %v6533, %v6581
  %v6583 = vpop.f32.mrf.mxu0
  %v6584 = vadd.f32 %v6535, %v6583
  %6585 = vmatmul.bf16.gmra.mxu0 %v6043
  %v6586 = vpop.f32.mrf.mxu0
  %v6587 = vadd.f32 %v6538, %v6586
  %v6588 = vpop.f32.mrf.mxu0
  %v6589 = vadd.f32 %v6540, %v6588
  %6590 = vmatmul.bf16.gmra.mxu0 %v6056
  %v6591 = vpop.f32.mrf.mxu0
  %v6592 = vadd.f32 %v6543, %v6591
  %v6593 = vpop.f32.mrf.mxu0
  %v6594 = vadd.f32 %v6545, %v6593
  %6595 = vmatmul.bf16.gmra.mxu0 %v6069
  %v6596 = vpop.f32.mrf.mxu0
  %v6597 = vadd.f32 %v6548, %v6596
  %v6598 = vpop.f32.mrf.mxu0
  %v6599 = vadd.f32 %v6550, %v6598
  %6600 = vmatmul.bf16.gmra.mxu0 %v6082
  %v6601 = vpop.f32.mrf.mxu0
  %v6602 = vadd.f32 %v6553, %v6601
  %v6603 = vpop.f32.mrf.mxu0
  %v6604 = vadd.f32 %v6555, %v6603
  %6605 = vdwg.mxu0
  %6606 = vmatpush.bf16.msra.mxu0 %v6237
  %6607 = vmatpush.bf16.msra.mxu0 %v6235
  %6608 = vmatpush.bf16.msra.mxu0 %v6233
  %6609 = vmatpush.bf16.msra.mxu0 %v6231
  %6610 = vmatpush.bf16.msra.mxu0 %v6229
  %6611 = vmatpush.bf16.msra.mxu0 %v6227
  %6612 = vmatpush.bf16.msra.mxu0 %v6225
  %6613 = vmatpush.bf16.msra.mxu0 %v6223
  %6614 = vmatmul.bf16.gmra.mxu0 %v5992
  %v6615 = vpop.f32.mrf.mxu0
  %v6616 = vadd.f32 %v6567, %v6615
  %v6617 = vpop.f32.mrf.mxu0
  %v6618 = vadd.f32 %v6569, %v6617
  %6619 = vmatmul.bf16.gmra.mxu0 %v6005
  %v6620 = vpop.f32.mrf.mxu0
  %v6621 = vadd.f32 %v6572, %v6620
  %v6622 = vpop.f32.mrf.mxu0
  %v6623 = vadd.f32 %v6574, %v6622
  %6624 = vmatmul.bf16.gmra.mxu0 %v6018
  %v6625 = vpop.f32.mrf.mxu0
  %v6626 = vadd.f32 %v6577, %v6625
  %v6627 = vpop.f32.mrf.mxu0
  %v6628 = vadd.f32 %v6579, %v6627
  %6629 = vmatmul.bf16.gmra.mxu0 %v6031
  %v6630 = vpop.f32.mrf.mxu0
  %v6631 = vadd.f32 %v6582, %v6630
  %v6632 = vpop.f32.mrf.mxu0
  %v6633 = vadd.f32 %v6584, %v6632
  %6634 = vmatmul.bf16.gmra.mxu0 %v6044
  %v6635 = vpop.f32.mrf.mxu0
  %v6636 = vadd.f32 %v6587, %v6635
  %v6637 = vpop.f32.mrf.mxu0
  %v6638 = vadd.f32 %v6589, %v6637
  %6639 = vmatmul.bf16.gmra.mxu0 %v6057
  %v6640 = vpop.f32.mrf.mxu0
  %v6641 = vadd.f32 %v6592, %v6640
  %v6642 = vpop.f32.mrf.mxu0
  %v6643 = vadd.f32 %v6594, %v6642
  %6644 = vmatmul.bf16.gmra.mxu0 %v6070
  %v6645 = vpop.f32.mrf.mxu0
  %v6646 = vadd.f32 %v6597, %v6645
  %v6647 = vpop.f32.mrf.mxu0
  %v6648 = vadd.f32 %v6599, %v6647
  %6649 = vmatmul.bf16.gmra.mxu0 %v6083
  %v6650 = vpop.f32.mrf.mxu0
  %v6651 = vadd.f32 %v6602, %v6650
  %v6652 = vpop.f32.mrf.mxu0
  %v6653 = vadd.f32 %v6604, %v6652
  %6654 = vdwg.mxu0
  %6655 = vmatpush.bf16.msra.mxu0 %v6253
  %6656 = vmatpush.bf16.msra.mxu0 %v6251
  %6657 = vmatpush.bf16.msra.mxu0 %v6249
  %6658 = vmatpush.bf16.msra.mxu0 %v6247
  %6659 = vmatpush.bf16.msra.mxu0 %v6245
  %6660 = vmatpush.bf16.msra.mxu0 %v6243
  %6661 = vmatpush.bf16.msra.mxu0 %v6241
  %6662 = vmatpush.bf16.msra.mxu0 %v6239
  %6663 = vmatmul.bf16.gmra.mxu0 %v5993
  %v6664 = vpop.f32.mrf.mxu0
  %v6665 = vadd.f32 %v6616, %v6664
  %v6666 = vpop.f32.mrf.mxu0
  %v6667 = vadd.f32 %v6618, %v6666
  %6668 = vmatmul.bf16.gmra.mxu0 %v6006
  %v6669 = vpop.f32.mrf.mxu0
  %v6670 = vadd.f32 %v6621, %v6669
  %v6671 = vpop.f32.mrf.mxu0
  %v6672 = vadd.f32 %v6623, %v6671
  %6673 = vmatmul.bf16.gmra.mxu0 %v6019
  %v6674 = vpop.f32.mrf.mxu0
  %v6675 = vadd.f32 %v6626, %v6674
  %v6676 = vpop.f32.mrf.mxu0
  %v6677 = vadd.f32 %v6628, %v6676
  %6678 = vmatmul.bf16.gmra.mxu0 %v6032
  %v6679 = vpop.f32.mrf.mxu0
  %v6680 = vadd.f32 %v6631, %v6679
  %v6681 = vpop.f32.mrf.mxu0
  %v6682 = vadd.f32 %v6633, %v6681
  %6683 = vmatmul.bf16.gmra.mxu0 %v6045
  %v6684 = vpop.f32.mrf.mxu0
  %v6685 = vadd.f32 %v6636, %v6684
  %v6686 = vpop.f32.mrf.mxu0
  %v6687 = vadd.f32 %v6638, %v6686
  %6688 = vmatmul.bf16.gmra.mxu0 %v6058
  %v6689 = vpop.f32.mrf.mxu0
  %v6690 = vadd.f32 %v6641, %v6689
  %v6691 = vpop.f32.mrf.mxu0
  %v6692 = vadd.f32 %v6643, %v6691
  %6693 = vmatmul.bf16.gmra.mxu0 %v6071
  %v6694 = vpop.f32.mrf.mxu0
  %v6695 = vadd.f32 %v6646, %v6694
  %v6696 = vpop.f32.mrf.mxu0
  %v6697 = vadd.f32 %v6648, %v6696
  %6698 = vmatmul.bf16.gmra.mxu0 %v6084
  %v6699 = vpop.f32.mrf.mxu0
  %v6700 = vadd.f32 %v6651, %v6699
  %v6701 = vpop.f32.mrf.mxu0
  %v6702 = vadd.f32 %v6653, %v6701
  %6703 = vdwg.mxu0
  %6704 = vmatpush.bf16.msra.mxu0 %v6269
  %6705 = vmatpush.bf16.msra.mxu0 %v6267
  %6706 = vmatpush.bf16.msra.mxu0 %v6265
  %6707 = vmatpush.bf16.msra.mxu0 %v6263
  %6708 = vmatpush.bf16.msra.mxu0 %v6261
  %6709 = vmatpush.bf16.msra.mxu0 %v6259
  %6710 = vmatpush.bf16.msra.mxu0 %v6257
  %6711 = vmatpush.bf16.msra.mxu0 %v6255
  %6712 = vmatmul.bf16.gmra.mxu0 %v5994
  %v6713 = vpop.f32.mrf.mxu0
  %v6714 = vadd.f32 %v6665, %v6713
  %v6715 = vpop.f32.mrf.mxu0
  %v6716 = vadd.f32 %v6667, %v6715
  %6717 = vmatmul.bf16.gmra.mxu0 %v6007
  %v6718 = vpop.f32.mrf.mxu0
  %v6719 = vadd.f32 %v6670, %v6718
  %v6720 = vpop.f32.mrf.mxu0
  %v6721 = vadd.f32 %v6672, %v6720
  %6722 = vmatmul.bf16.gmra.mxu0 %v6020
  %v6723 = vpop.f32.mrf.mxu0
  %v6724 = vadd.f32 %v6675, %v6723
  %v6725 = vpop.f32.mrf.mxu0
  %v6726 = vadd.f32 %v6677, %v6725
  %6727 = vmatmul.bf16.gmra.mxu0 %v6033
  %v6728 = vpop.f32.mrf.mxu0
  %v6729 = vadd.f32 %v6680, %v6728
  %v6730 = vpop.f32.mrf.mxu0
  %v6731 = vadd.f32 %v6682, %v6730
  %6732 = vmatmul.bf16.gmra.mxu0 %v6046
  %v6733 = vpop.f32.mrf.mxu0
  %v6734 = vadd.f32 %v6685, %v6733
  %v6735 = vpop.f32.mrf.mxu0
  %v6736 = vadd.f32 %v6687, %v6735
  %6737 = vmatmul.bf16.gmra.mxu0 %v6059
  %v6738 = vpop.f32.mrf.mxu0
  %v6739 = vadd.f32 %v6690, %v6738
  %v6740 = vpop.f32.mrf.mxu0
  %v6741 = vadd.f32 %v6692, %v6740
  %6742 = vmatmul.bf16.gmra.mxu0 %v6072
  %v6743 = vpop.f32.mrf.mxu0
  %v6744 = vadd.f32 %v6695, %v6743
  %v6745 = vpop.f32.mrf.mxu0
  %v6746 = vadd.f32 %v6697, %v6745
  %6747 = vmatmul.bf16.gmra.mxu0 %v6085
  %v6748 = vpop.f32.mrf.mxu0
  %v6749 = vadd.f32 %v6700, %v6748
  %v6750 = vpop.f32.mrf.mxu0
  %v6751 = vadd.f32 %v6702, %v6750
  %6752 = vdwg.mxu0
  %6753 = vmatpush.bf16.msra.mxu0 %v6285
  %6754 = vmatpush.bf16.msra.mxu0 %v6283
  %6755 = vmatpush.bf16.msra.mxu0 %v6281
  %6756 = vmatpush.bf16.msra.mxu0 %v6279
  %6757 = vmatpush.bf16.msra.mxu0 %v6277
  %6758 = vmatpush.bf16.msra.mxu0 %v6275
  %6759 = vmatpush.bf16.msra.mxu0 %v6273
  %6760 = vmatpush.bf16.msra.mxu0 %v6271
  %6761 = vmatmul.bf16.gmra.mxu0 %v5995
  %v6762 = vpop.f32.mrf.mxu0
  %v6763 = vadd.f32 %v6714, %v6762
  %v6764 = vpop.f32.mrf.mxu0
  %v6765 = vadd.f32 %v6716, %v6764
  %6766 = vmatmul.bf16.gmra.mxu0 %v6008
  %v6767 = vpop.f32.mrf.mxu0
  %v6768 = vadd.f32 %v6719, %v6767
  %v6769 = vpop.f32.mrf.mxu0
  %v6770 = vadd.f32 %v6721, %v6769
  %6771 = vmatmul.bf16.gmra.mxu0 %v6021
  %v6772 = vpop.f32.mrf.mxu0
  %v6773 = vadd.f32 %v6724, %v6772
  %v6774 = vpop.f32.mrf.mxu0
  %v6775 = vadd.f32 %v6726, %v6774
  %6776 = vmatmul.bf16.gmra.mxu0 %v6034
  %v6777 = vpop.f32.mrf.mxu0
  %v6778 = vadd.f32 %v6729, %v6777
  %v6779 = vpop.f32.mrf.mxu0
  %v6780 = vadd.f32 %v6731, %v6779
  %6781 = vmatmul.bf16.gmra.mxu0 %v6047
  %v6782 = vpop.f32.mrf.mxu0
  %v6783 = vadd.f32 %v6734, %v6782
  %v6784 = vpop.f32.mrf.mxu0
  %v6785 = vadd.f32 %v6736, %v6784
  %6786 = vmatmul.bf16.gmra.mxu0 %v6060
  %v6787 = vpop.f32.mrf.mxu0
  %v6788 = vadd.f32 %v6739, %v6787
  %v6789 = vpop.f32.mrf.mxu0
  %v6790 = vadd.f32 %v6741, %v6789
  %6791 = vmatmul.bf16.gmra.mxu0 %v6073
  %v6792 = vpop.f32.mrf.mxu0
  %v6793 = vadd.f32 %v6744, %v6792
  %v6794 = vpop.f32.mrf.mxu0
  %v6795 = vadd.f32 %v6746, %v6794
  %6796 = vmatmul.bf16.gmra.mxu0 %v6086
  %v6797 = vpop.f32.mrf.mxu0
  %v6798 = vadd.f32 %v6749, %v6797
  %v6799 = vpop.f32.mrf.mxu0
  %v6800 = vadd.f32 %v6751, %v6799
  %6801 = vdwg.mxu0
  %6802 = vmatpush.bf16.msra.mxu0 %v6301
  %6803 = vmatpush.bf16.msra.mxu0 %v6299
  %6804 = vmatpush.bf16.msra.mxu0 %v6297
  %6805 = vmatpush.bf16.msra.mxu0 %v6295
  %6806 = vmatpush.bf16.msra.mxu0 %v6293
  %6807 = vmatpush.bf16.msra.mxu0 %v6291
  %6808 = vmatpush.bf16.msra.mxu0 %v6289
  %6809 = vmatpush.bf16.msra.mxu0 %v6287
  %6810 = vmatmul.bf16.gmra.mxu0 %v5996
  %v6811 = vpop.f32.mrf.mxu0
  %v6812 = vadd.f32 %v6763, %v6811
  %v6813 = vpop.f32.mrf.mxu0
  %v6814 = vadd.f32 %v6765, %v6813
  %6815 = vmatmul.bf16.gmra.mxu0 %v6009
  %v6816 = vpop.f32.mrf.mxu0
  %v6817 = vadd.f32 %v6768, %v6816
  %v6818 = vpop.f32.mrf.mxu0
  %v6819 = vadd.f32 %v6770, %v6818
  %6820 = vmatmul.bf16.gmra.mxu0 %v6022
  %v6821 = vpop.f32.mrf.mxu0
  %v6822 = vadd.f32 %v6773, %v6821
  %v6823 = vpop.f32.mrf.mxu0
  %v6824 = vadd.f32 %v6775, %v6823
  %6825 = vmatmul.bf16.gmra.mxu0 %v6035
  %v6826 = vpop.f32.mrf.mxu0
  %v6827 = vadd.f32 %v6778, %v6826
  %v6828 = vpop.f32.mrf.mxu0
  %v6829 = vadd.f32 %v6780, %v6828
  %6830 = vmatmul.bf16.gmra.mxu0 %v6048
  %v6831 = vpop.f32.mrf.mxu0
  %v6832 = vadd.f32 %v6783, %v6831
  %v6833 = vpop.f32.mrf.mxu0
  %v6834 = vadd.f32 %v6785, %v6833
  %6835 = vmatmul.bf16.gmra.mxu0 %v6061
  %v6836 = vpop.f32.mrf.mxu0
  %v6837 = vadd.f32 %v6788, %v6836
  %v6838 = vpop.f32.mrf.mxu0
  %v6839 = vadd.f32 %v6790, %v6838
  %6840 = vmatmul.bf16.gmra.mxu0 %v6074
  %v6841 = vpop.f32.mrf.mxu0
  %v6842 = vadd.f32 %v6793, %v6841
  %v6843 = vpop.f32.mrf.mxu0
  %v6844 = vadd.f32 %v6795, %v6843
  %6845 = vmatmul.bf16.gmra.mxu0 %v6087
  %v6846 = vpop.f32.mrf.mxu0
  %v6847 = vadd.f32 %v6798, %v6846
  %v6848 = vpop.f32.mrf.mxu0
  %v6849 = vadd.f32 %v6800, %v6848
  %6850 = vdwg.mxu0
  %6851 = vmatpush.bf16.msra.mxu0 %v6317
  %6852 = vmatpush.bf16.msra.mxu0 %v6315
  %6853 = vmatpush.bf16.msra.mxu0 %v6313
  %6854 = vmatpush.bf16.msra.mxu0 %v6311
  %6855 = vmatpush.bf16.msra.mxu0 %v6309
  %6856 = vmatpush.bf16.msra.mxu0 %v6307
  %6857 = vmatpush.bf16.msra.mxu0 %v6305
  %6858 = vmatpush.bf16.msra.mxu0 %v6303
  %6859 = vmatmul.bf16.gmra.mxu0 %v5997
  %v6860 = vpop.f32.mrf.mxu0
  %v6861 = vadd.f32 %v6812, %v6860
  %v6862 = vpop.f32.mrf.mxu0
  %v6863 = vadd.f32 %v6814, %v6862
  %6864 = vmatmul.bf16.gmra.mxu0 %v6010
  %v6865 = vpop.f32.mrf.mxu0
  %v6866 = vadd.f32 %v6817, %v6865
  %v6867 = vpop.f32.mrf.mxu0
  %v6868 = vadd.f32 %v6819, %v6867
  %6869 = vmatmul.bf16.gmra.mxu0 %v6023
  %v6870 = vpop.f32.mrf.mxu0
  %v6871 = vadd.f32 %v6822, %v6870
  %v6872 = vpop.f32.mrf.mxu0
  %v6873 = vadd.f32 %v6824, %v6872
  %6874 = vmatmul.bf16.gmra.mxu0 %v6036
  %v6875 = vpop.f32.mrf.mxu0
  %v6876 = vadd.f32 %v6827, %v6875
  %v6877 = vpop.f32.mrf.mxu0
  %v6878 = vadd.f32 %v6829, %v6877
  %6879 = vmatmul.bf16.gmra.mxu0 %v6049
  %v6880 = vpop.f32.mrf.mxu0
  %v6881 = vadd.f32 %v6832, %v6880
  %v6882 = vpop.f32.mrf.mxu0
  %v6883 = vadd.f32 %v6834, %v6882
  %6884 = vmatmul.bf16.gmra.mxu0 %v6062
  %v6885 = vpop.f32.mrf.mxu0
  %v6886 = vadd.f32 %v6837, %v6885
  %v6887 = vpop.f32.mrf.mxu0
  %v6888 = vadd.f32 %v6839, %v6887
  %6889 = vmatmul.bf16.gmra.mxu0 %v6075
  %v6890 = vpop.f32.mrf.mxu0
  %v6891 = vadd.f32 %v6842, %v6890
  %v6892 = vpop.f32.mrf.mxu0
  %v6893 = vadd.f32 %v6844, %v6892
  %6894 = vmatmul.bf16.gmra.mxu0 %v6088
  %v6895 = vpop.f32.mrf.mxu0
  %v6896 = vadd.f32 %v6847, %v6895
  %v6897 = vpop.f32.mrf.mxu0
  %v6898 = vadd.f32 %v6849, %v6897
  %6899 = vdwg.mxu0
  %6900 = vmatpush.bf16.msra.mxu0 %v6333
  %6901 = vmatpush.bf16.msra.mxu0 %v6331
  %6902 = vmatpush.bf16.msra.mxu0 %v6329
  %6903 = vmatpush.bf16.msra.mxu0 %v6327
  %6904 = vmatpush.bf16.msra.mxu0 %v6325
  %6905 = vmatpush.bf16.msra.mxu0 %v6323
  %6906 = vmatpush.bf16.msra.mxu0 %v6321
  %6907 = vmatpush.bf16.msra.mxu0 %v6319
  %6908 = vmatmul.bf16.gmra.mxu0 %v5998
  %v6909 = vpop.f32.mrf.mxu0
  %v6910 = vadd.f32 %v6861, %v6909
  %v6911 = vpop.f32.mrf.mxu0
  %v6912 = vadd.f32 %v6863, %v6911
  %6913 = vmatmul.bf16.gmra.mxu0 %v6011
  %v6914 = vpop.f32.mrf.mxu0
  %v6915 = vadd.f32 %v6866, %v6914
  %v6916 = vpop.f32.mrf.mxu0
  %v6917 = vadd.f32 %v6868, %v6916
  %6918 = vmatmul.bf16.gmra.mxu0 %v6024
  %v6919 = vpop.f32.mrf.mxu0
  %v6920 = vadd.f32 %v6871, %v6919
  %v6921 = vpop.f32.mrf.mxu0
  %v6922 = vadd.f32 %v6873, %v6921
  %6923 = vmatmul.bf16.gmra.mxu0 %v6037
  %v6924 = vpop.f32.mrf.mxu0
  %v6925 = vadd.f32 %v6876, %v6924
  %v6926 = vpop.f32.mrf.mxu0
  %v6927 = vadd.f32 %v6878, %v6926
  %6928 = vmatmul.bf16.gmra.mxu0 %v6050
  %v6929 = vpop.f32.mrf.mxu0
  %v6930 = vadd.f32 %v6881, %v6929
  %v6931 = vpop.f32.mrf.mxu0
  %v6932 = vadd.f32 %v6883, %v6931
  %6933 = vmatmul.bf16.gmra.mxu0 %v6063
  %v6934 = vpop.f32.mrf.mxu0
  %v6935 = vadd.f32 %v6886, %v6934
  %v6936 = vpop.f32.mrf.mxu0
  %v6937 = vadd.f32 %v6888, %v6936
  %6938 = vmatmul.bf16.gmra.mxu0 %v6076
  %v6939 = vpop.f32.mrf.mxu0
  %v6940 = vadd.f32 %v6891, %v6939
  %v6941 = vpop.f32.mrf.mxu0
  %v6942 = vadd.f32 %v6893, %v6941
  %6943 = vmatmul.bf16.gmra.mxu0 %v6089
  %v6944 = vpop.f32.mrf.mxu0
  %v6945 = vadd.f32 %v6896, %v6944
  %v6946 = vpop.f32.mrf.mxu0
  %v6947 = vadd.f32 %v6898, %v6946
  %6948 = vdwg.mxu0
  %6949 = vmatpush.bf16.msra.mxu0 %v6349
  %6950 = vmatpush.bf16.msra.mxu0 %v6347
  %6951 = vmatpush.bf16.msra.mxu0 %v6345
  %6952 = vmatpush.bf16.msra.mxu0 %v6343
  %6953 = vmatpush.bf16.msra.mxu0 %v6341
  %6954 = vmatpush.bf16.msra.mxu0 %v6339
  %6955 = vmatpush.bf16.msra.mxu0 %v6337
  %6956 = vmatpush.bf16.msra.mxu0 %v6335
  %6957 = vmatmul.bf16.gmra.mxu0 %v5999
  %v6958 = vpop.f32.mrf.mxu0
  %v6959 = vadd.f32 %v6910, %v6958
  %v6960 = vpop.f32.mrf.mxu0
  %v6961 = vadd.f32 %v6912, %v6960
  %6962 = vmatmul.bf16.gmra.mxu0 %v6012
  %v6963 = vpop.f32.mrf.mxu0
  %v6964 = vadd.f32 %v6915, %v6963
  %v6965 = vpop.f32.mrf.mxu0
  %v6966 = vadd.f32 %v6917, %v6965
  %6967 = vmatmul.bf16.gmra.mxu0 %v6025
  %v6968 = vpop.f32.mrf.mxu0
  %v6969 = vadd.f32 %v6920, %v6968
  %v6970 = vpop.f32.mrf.mxu0
  %v6971 = vadd.f32 %v6922, %v6970
  %6972 = vmatmul.bf16.gmra.mxu0 %v6038
  %v6973 = vpop.f32.mrf.mxu0
  %v6974 = vadd.f32 %v6925, %v6973
  %v6975 = vpop.f32.mrf.mxu0
  %v6976 = vadd.f32 %v6927, %v6975
  %6977 = vmatmul.bf16.gmra.mxu0 %v6051
  %v6978 = vpop.f32.mrf.mxu0
  %v6979 = vadd.f32 %v6930, %v6978
  %v6980 = vpop.f32.mrf.mxu0
  %v6981 = vadd.f32 %v6932, %v6980
  %6982 = vmatmul.bf16.gmra.mxu0 %v6064
  %v6983 = vpop.f32.mrf.mxu0
  %v6984 = vadd.f32 %v6935, %v6983
  %v6985 = vpop.f32.mrf.mxu0
  %v6986 = vadd.f32 %v6937, %v6985
  %6987 = vmatmul.bf16.gmra.mxu0 %v6077
  %v6988 = vpop.f32.mrf.mxu0
  %v6989 = vadd.f32 %v6940, %v6988
  %v6990 = vpop.f32.mrf.mxu0
  %v6991 = vadd.f32 %v6942, %v6990
  %6992 = vmatmul.bf16.gmra.mxu0 %v6090
  %v6993 = vpop.f32.mrf.mxu0
  %v6994 = vadd.f32 %v6945, %v6993
  %v6995 = vpop.f32.mrf.mxu0
  %v6996 = vadd.f32 %v6947, %v6995
  %6997 = vdwg.mxu0
  %6998 = vmatpush.bf16.msra.mxu0 %v6365
  %6999 = vmatpush.bf16.msra.mxu0 %v6363
  %7000 = vmatpush.bf16.msra.mxu0 %v6361
  %7001 = vmatpush.bf16.msra.mxu0 %v6359
  %7002 = vmatpush.bf16.msra.mxu0 %v6357
  %7003 = vmatpush.bf16.msra.mxu0 %v6355
  %7004 = vmatpush.bf16.msra.mxu0 %v6353
  %7005 = vmatpush.bf16.msra.mxu0 %v6351
  %7006 = vmatmul.bf16.gmra.mxu0 %v6000
  %v7007 = vpop.f32.mrf.mxu0
  %v7008 = vadd.f32 %v6959, %v7007
  %v7009 = vpop.f32.mrf.mxu0
  %v7010 = vadd.f32 %v6961, %v7009
  %7011 = vmatmul.bf16.gmra.mxu0 %v6013
  %v7012 = vpop.f32.mrf.mxu0
  %v7013 = vadd.f32 %v6964, %v7012
  %v7014 = vpop.f32.mrf.mxu0
  %v7015 = vadd.f32 %v6966, %v7014
  %7016 = vmatmul.bf16.gmra.mxu0 %v6026
  %v7017 = vpop.f32.mrf.mxu0
  %v7018 = vadd.f32 %v6969, %v7017
  %v7019 = vpop.f32.mrf.mxu0
  %v7020 = vadd.f32 %v6971, %v7019
  %7021 = vmatmul.bf16.gmra.mxu0 %v6039
  %v7022 = vpop.f32.mrf.mxu0
  %v7023 = vadd.f32 %v6974, %v7022
  %v7024 = vpop.f32.mrf.mxu0
  %v7025 = vadd.f32 %v6976, %v7024
  %7026 = vmatmul.bf16.gmra.mxu0 %v6052
  %v7027 = vpop.f32.mrf.mxu0
  %v7028 = vadd.f32 %v6979, %v7027
  %v7029 = vpop.f32.mrf.mxu0
  %v7030 = vadd.f32 %v6981, %v7029
  %7031 = vmatmul.bf16.gmra.mxu0 %v6065
  %v7032 = vpop.f32.mrf.mxu0
  %v7033 = vadd.f32 %v6984, %v7032
  %v7034 = vpop.f32.mrf.mxu0
  %v7035 = vadd.f32 %v6986, %v7034
  %7036 = vmatmul.bf16.gmra.mxu0 %v6078
  %v7037 = vpop.f32.mrf.mxu0
  %v7038 = vadd.f32 %v6989, %v7037
  %v7039 = vpop.f32.mrf.mxu0
  %v7040 = vadd.f32 %v6991, %v7039
  %7041 = vmatmul.bf16.gmra.mxu0 %v6091
  %v7042 = vpop.f32.mrf.mxu0
  %v7043 = vadd.f32 %v6994, %v7042
  %v7044 = vpop.f32.mrf.mxu0
  %v7045 = vadd.f32 %v6996, %v7044
  %7046 = vdwg.mxu0
  %7047 = vmatpush.bf16.msra.mxu0 %v6381
  %7048 = vmatpush.bf16.msra.mxu0 %v6379
  %7049 = vmatpush.bf16.msra.mxu0 %v6377
  %7050 = vmatpush.bf16.msra.mxu0 %v6375
  %7051 = vmatpush.bf16.msra.mxu0 %v6373
  %7052 = vmatpush.bf16.msra.mxu0 %v6371
  %7053 = vmatpush.bf16.msra.mxu0 %v6369
  %7054 = vmatpush.bf16.msra.mxu0 %v6367
  %7055 = vmatmul.bf16.gmra.mxu0 %v6001
  %v7056 = vpop.f32.mrf.mxu0
  %v7057 = vadd.f32 %v7008, %v7056
  %v7058 = vpop.f32.mrf.mxu0
  %v7059 = vadd.f32 %v7010, %v7058
  %7060 = vmatmul.bf16.gmra.mxu0 %v6014
  %v7061 = vpop.f32.mrf.mxu0
  %v7062 = vadd.f32 %v7013, %v7061
  %v7063 = vpop.f32.mrf.mxu0
  %v7064 = vadd.f32 %v7015, %v7063
  %7065 = vmatmul.bf16.gmra.mxu0 %v6027
  %v7066 = vpop.f32.mrf.mxu0
  %v7067 = vadd.f32 %v7018, %v7066
  %v7068 = vpop.f32.mrf.mxu0
  %v7069 = vadd.f32 %v7020, %v7068
  %7070 = vmatmul.bf16.gmra.mxu0 %v6040
  %v7071 = vpop.f32.mrf.mxu0
  %v7072 = vadd.f32 %v7023, %v7071
  %v7073 = vpop.f32.mrf.mxu0
  %v7074 = vadd.f32 %v7025, %v7073
  %7075 = vmatmul.bf16.gmra.mxu0 %v6053
  %v7076 = vpop.f32.mrf.mxu0
  %v7077 = vadd.f32 %v7028, %v7076
  %v7078 = vpop.f32.mrf.mxu0
  %v7079 = vadd.f32 %v7030, %v7078
  %7080 = vmatmul.bf16.gmra.mxu0 %v6066
  %v7081 = vpop.f32.mrf.mxu0
  %v7082 = vadd.f32 %v7033, %v7081
  %v7083 = vpop.f32.mrf.mxu0
  %v7084 = vadd.f32 %v7035, %v7083
  %7085 = vmatmul.bf16.gmra.mxu0 %v6079
  %v7086 = vpop.f32.mrf.mxu0
  %v7087 = vadd.f32 %v7038, %v7086
  %v7088 = vpop.f32.mrf.mxu0
  %v7089 = vadd.f32 %v7040, %v7088
  %7090 = vmatmul.bf16.gmra.mxu0 %v6092
  %v7091 = vpop.f32.mrf.mxu0
  %v7092 = vadd.f32 %v7043, %v7091
  %v7093 = vpop.f32.mrf.mxu0
  %v7094 = vadd.f32 %v7045, %v7093
  %7095 = vdwg.mxu0
  %7096 = vmatpush.bf16.msra.mxu0 0
  %7097 = vmatpush.bf16.msra.mxu0 0
  %7098 = vmatpush.bf16.msra.mxu0 0
  %7099 = vmatpush.bf16.msra.mxu0 0
  %7100 = vmatpush.bf16.msra.mxu0 0
  %7101 = vmatpush.bf16.msra.mxu0 0
  %7102 = vmatpush.bf16.msra.mxu0 %v6385
  %7103 = vmatpush.bf16.msra.mxu0 %v6383
  %7104 = vmatmul.bf16.gmra.mxu0 %v6485
  %v7105 = vpop.f32.mrf.mxu0
  %v7106 = vadd.f32 %v7057, %v7105
  %v7107 = vpop.f32.mrf.mxu0
  %v7108 = vadd.f32 %v7059, %v7107
  %7109 = vmatmul.bf16.gmra.mxu0 %v6488
  %v7110 = vpop.f32.mrf.mxu0
  %v7111 = vadd.f32 %v7062, %v7110
  %v7112 = vpop.f32.mrf.mxu0
  %v7113 = vadd.f32 %v7064, %v7112
  %7114 = vmatmul.bf16.gmra.mxu0 %v6491
  %v7115 = vpop.f32.mrf.mxu0
  %v7116 = vadd.f32 %v7067, %v7115
  %v7117 = vpop.f32.mrf.mxu0
  %v7118 = vadd.f32 %v7069, %v7117
  %7119 = vmatmul.bf16.gmra.mxu0 %v6494
  %v7120 = vpop.f32.mrf.mxu0
  %v7121 = vadd.f32 %v7072, %v7120
  %v7122 = vpop.f32.mrf.mxu0
  %v7123 = vadd.f32 %v7074, %v7122
  %7124 = vmatmul.bf16.gmra.mxu0 %v6497
  %v7125 = vpop.f32.mrf.mxu0
  %v7126 = vadd.f32 %v7077, %v7125
  %v7127 = vpop.f32.mrf.mxu0
  %v7128 = vadd.f32 %v7079, %v7127
  %7129 = vmatmul.bf16.gmra.mxu0 %v6500
  %v7130 = vpop.f32.mrf.mxu0
  %v7131 = vadd.f32 %v7082, %v7130
  %v7132 = vpop.f32.mrf.mxu0
  %v7133 = vadd.f32 %v7084, %v7132
  %7134 = vmatmul.bf16.gmra.mxu0 %v6503
  %v7135 = vpop.f32.mrf.mxu0
  %v7136 = vadd.f32 %v7087, %v7135
  %v7137 = vpop.f32.mrf.mxu0
  %v7138 = vadd.f32 %v7089, %v7137
  %7139 = vmatmul.bf16.gmra.mxu0 %v6506
  %v7140 = vpop.f32.mrf.mxu0
  %v7141 = vadd.f32 %v7092, %v7140
  %v7142 = vpop.f32.mrf.mxu0
  %v7143 = vadd.f32 %v7094, %v7142
  %7144 = vdwg.mxu0
  %v7145 = vmax.f32 %v7106, 0.0
  %v7146 = vmax.f32 %v7108, 0.0
  %v7147 = vmax.f32 %v7111, 0.0
  %v7148 = vmax.f32 %v7113, 0.0
  %v7149 = vmax.f32 %v7116, 0.0
  %v7150 = vmax.f32 %v7118, 0.0
  %v7151 = vmax.f32 %v7121, 0.0
  %v7152 = vmax.f32 %v7123, 0.0
  %v7153 = vmax.f32 %v7126, 0.0
  %v7154 = vmax.f32 %v7128, 0.0
  %v7155 = vmax.f32 %v7131, 0.0
  %v7156 = vmax.f32 %v7133, 0.0
  %v7157 = vmax.f32 %v7136, 0.0
  %v7158 = vmax.f32 %v7138, 0.0
  %v7159 = vmax.f32 %v7141, 0.0
  %v7160 = vmax.f32 %v7143, 0.0
  %v7161 = vpack.c.bf16 %v7146, %v7145
  %v7162 = vpack.c.bf16 %v7148, %v7147
  %v7163 = vpack.c.bf16 %v7150, %v7149
  %v7164 = vpack.c.bf16 %v7152, %v7151
  %v7165 = vpack.c.bf16 %v7154, %v7153
  %v7166 = vpack.c.bf16 %v7156, %v7155
  %v7167 = vpack.c.bf16 %v7158, %v7157
  %v7168 = vpack.c.bf16 %v7160, %v7159
  %v7169 = vld [vmem:[%s8] sm:$0xf]
  %v7170 = vld [vmem:[%s8 + $0x4] sm:$0x1]
  %v7171 = vld [vmem:[%s9] sm:$0xff]
  %v7172 = vld [vmem:[%s9 + $0x8] sm:$0x1]
  %7174 = vset.pattern.permute.xlu0 0
  %7175 = vperm.xlu0 %7174, %v7171
  %v7176 = vpop.permute.xlu0 %7175
  %7179 = vset.pattern.permute.xlu0 0
  %7180 = vperm.xlu0 %7179, %v7172
  %v7181 = vpop.permute.xlu0 %7180
  %v7185 = vunpack.c.l.b16 %v7169
  %v7186 = vunpack.c.l.b16 %v7170
  %v7187 = vpack.c.b16 %v7186, %v7185
  %7189 = vmatpush.bf16.msra.mxu0 %v7168
  %7190 = vmatpush.bf16.msra.mxu0 %v7167
  %7191 = vmatpush.bf16.msra.mxu0 %v7166
  %7192 = vmatpush.bf16.msra.mxu0 %v7165
  %7193 = vmatpush.bf16.msra.mxu0 %v7164
  %7194 = vmatpush.bf16.msra.mxu0 %v7163
  %7195 = vmatpush.bf16.msra.mxu0 %v7162
  %7196 = vmatpush.bf16.msra.mxu0 %v7161
  %7197 = vmatmul.bf16.gmra.mxu0 %v7187
  %v7198 = vpop.f32.mrf.mxu0
  %v7199 = vadd.f32 %v7176, %v7198
  %v7200 = vpop.f32.mrf.mxu0
  %v7201 = vadd.f32 %v7181, %v7200
  %7202 = vdwg.mxu0
  %vm7203 = vcmask 15360
  %7204 = vst.msk [vmem:[%s10] sm:$0xff] %vm7203, %v7199
  %vm7205 = vcmask 8192
  %7206 = vst.msk [vmem:[%s10 + $0x8] sm:$0x1] %vm7205, %v7201
  // Predicated region
  $region42: #{cnn_forward.1} parent=0 // pred_check
    _
  $region43: #{cnn_forward.1} parent=0 // pred_check_branch
    %7208 = sbr.rel (0) target = $region45
  $region44: #{cnn_forward.1} parent=0 // pred_region
    _
  $region45: #{cnn_forward.1} parent=0 // pred_fallthru
    _
  // Predicated region
  $region46: #{cnn_forward.1} parent=0 // pred_check
    _
  $region47: #{cnn_forward.1} parent=0 // pred_check_branch
    %7210 = sbr.rel (0) target = $region49
  $region48: #{cnn_forward.1} parent=0 // pred_region
    _
  $region49: #{cnn_forward.1} parent=0 // pred_fallthru
    _

</llo_original>
